<compile_context>
chip_gen: v5e
topology: v5e:2x2
jax: 0.10.0
libtpu: 0.0.40
codegen_flags: <defaults>
</compile_context>

<pallas_src>
import functools

import jax
import jax.numpy as jnp
from jax.experimental import pallas as pl
from jax.experimental.pallas import tpu as pltpu

HIDDEN = 30           # per-head hidden dim, fixed in the torch module
CPAD = 32             # per-head hidden padded to a power-of-two lane offset
LANES = 128           # lane-dense slab / output width
NEG_INF = jnp.float32(-1e30)

_VMEM = pl.BlockSpec(memory_space=pltpu.MemorySpace.VMEM)


# --------------------------------- kernel -----------------------------------

def _fused_gcn_kernel(x_ref, maskb_ref, slab_ref, out_ref, *, layout):
    """Whole forward pass; everything stays VMEM/vreg resident."""
    mask_bias = maskb_ref[...]                                  # [N, N]

    def gatv2(h, lay, apply_relu):
        off_w, k, off_v, heads = lay
        w = slab_ref[off_w:off_w + k, :]                        # [K, 128] static view
        vec = slab_ref[off_v:off_v + 8, :]                      # rows: b | att | bias
        # One fat MXU dot = lin_l + lin_r for every head, summed over all
        # input-head blocks.  proj cols = [xl_h0|..|xl_hH-1 | xr_h0|..|xr_hH-1].
        proj = jnp.dot(h, w, preferred_element_type=jnp.float32) + vec[0:1, :]
        outs = []
        for hd in range(heads):                                 # static (1 or 2)
            xl = proj[:, hd * CPAD:(hd + 1) * CPAD]                       # [N, 32]
            xr = proj[:, (heads + hd) * CPAD:(heads + hd + 1) * CPAD]     # [N, 32]
            att = vec[1:2, hd * CPAD:(hd + 1) * CPAD]                     # [1, 32]
            bias = vec[2:3, hd * CPAD:(hd + 1) * CPAD]                    # [1, 32]
            # e[i, j] = att . LeakyReLU_{0.2}(xr[i] + xl[j])
            s = xr[:, None, :] + xl[None, :, :]                           # [N, N, 32]
            s = jnp.where(s > 0, s, 0.2 * s)
            e = jnp.sum(s * att[None, :, :], axis=-1)                     # [N, N]
            e = e + mask_bias                    # additive -inf mask; exp -> 0 off-graph
            m = jnp.max(e, axis=1, keepdims=True)
            p = jnp.exp(e - m)
            denom = jnp.sum(p, axis=1, keepdims=True)          # >= exp(self-loop) > 0
            alpha = p * pl.reciprocal(denom, approx=True)      # EUP slot
            o = jnp.dot(alpha, xl, preferred_element_type=jnp.float32) + bias
            if apply_relu:
                o = jnp.maximum(o, 0.0)
            outs.append(o)                                      # [N, 32], pad lanes stay 0
        return outs[0] if heads == 1 else jnp.concatenate(outs, axis=-1)

    h = x_ref[...]                                              # [N, F0]
    h = gatv2(h, layout["gat1"], apply_relu=True)               # [N, 64]
    h = gatv2(h, layout["gat2"], apply_relu=True)               # [N, 32]
    h = gatv2(h, layout["gat3"], apply_relu=False)              # [N, 64]

    off_w, k, off_b = layout["lin"]
    w = slab_ref[off_w:off_w + k, :]                            # [64, 128] (zero-padded)
    b = slab_ref[off_b:off_b + 1, :]                            # [1, 128]
    out_ref[...] = jnp.dot(h, w, preferred_element_type=jnp.float32) + b


# ------------------------------- JAX wrapper ---------------------------------

def build_mask_bias(edge_index, num_nodes):
    """Graph-static additive mask; build once per graph (feedback #6)."""
    src, dst = edge_index[0], edge_index[1]
    adj = jnp.zeros((num_nodes, num_nodes), jnp.float32).at[dst, src].set(1.0)
    adj = jnp.maximum(adj, jnp.eye(num_nodes, dtype=jnp.float32))   # self loops
    return jnp.where(adj > 0, 0.0, NEG_INF).astype(jnp.float32)


def simplicial_gcn_forward(x, mask_bias, slab, *, layout, output_dim):
    num_nodes = x.shape[0]
    kern = functools.partial(_fused_gcn_kernel, layout=layout)
    pred_pad = pl.pallas_call(
        kern,
        out_shape=jax.ShapeDtypeStruct((num_nodes, LANES), jnp.float32),
        in_specs=[_VMEM, _VMEM, _VMEM],
        out_specs=_VMEM,
    )(x, mask_bias, slab)
    return pred_pad[:, :output_dim]


# ------------------------ parameter creation & packing -----------------------

def _glorot(key, shape):
    limit = (6.0 / (shape[0] + shape[1])) ** 0.5
    return jax.random.uniform(key, shape, jnp.float32, -limit, limit)


def make_params(key, n_neurons, hidden, output_dim):
    """Random parameters in the torch/PyG layout."""
    k = jax.random.split(key, 10)

    def gat(k0, k1, k2, in_dim, heads):
        return dict(
            wl=_glorot(k0, (in_dim, heads * hidden)),
            wr=_glorot(k1, (in_dim, heads * hidden)),
            bl=jnp.zeros((heads * hidden,), jnp.float32),
            br=jnp.zeros((heads * hidden,), jnp.float32),
            att=_glorot(k2, (heads, hidden)),
            bias=jnp.zeros((heads * hidden,), jnp.float32),
            heads=heads)

    return dict(
        gat1=gat(k[0], k[1], k[2], n_neurons, 2),
        gat2=gat(k[3], k[4], k[5], hidden * 2, 1),
        gat3=gat(k[6], k[7], k[8], hidden, 2),
        lin_w=_glorot(k[9], (hidden * 2, output_dim)),
        lin_b=jnp.zeros((output_dim,), jnp.float32))


def _round8(n):
    return (n + 7) // 8 * 8


def _expand_head_cols(w, heads, real_c):
    """[K, heads*real_c] -> [K, heads*CPAD] (each head block zero-padded)."""
    out = jnp.zeros((w.shape[0], heads * CPAD), jnp.float32)
    for h in range(heads):
        out = out.at[:, h * CPAD:h * CPAD + real_c].set(w[:, h * real_c:(h + 1) * real_c])
    return out


def _expand_in_rows(w, in_blocks, k_alloc):
    """Scatter real input rows into the padded activation row-layout."""
    out = jnp.zeros((k_alloc, w.shape[1]), jnp.float32)
    r = 0
    for start, width in in_blocks:
        out = out.at[start:start + width, :].set(w[r:r + width, :])
        r += width
    return out


def _pack_gat(p, in_blocks, k_alloc, hidden):
    heads = p["heads"]
    wl = _expand_head_cols(p["wl"], heads, hidden)        # [in_real, heads*CPAD]
    wr = _expand_head_cols(p["wr"], heads, hidden)
    w = jnp.concatenate([wl, wr], axis=1)                 # [in_real, 2*heads*CPAD]
    w = _expand_in_rows(w, in_blocks, k_alloc)            # [k_alloc, 2*heads*CPAD]
    w_block = jnp.zeros((k_alloc, LANES), jnp.float32).at[:, :w.shape[1]].set(w)

    def head_row(v):                                      # [heads*hidden] -> [1, LANES]
        vv = _expand_head_cols(v.reshape(1, heads * hidden), heads, hidden)
        return jnp.zeros((1, LANES), jnp.float32).at[:, :vv.shape[1]].set(vv)

    b_row = jnp.zeros((1, LANES), jnp.float32)
    b_row = b_row.at[:, :heads * CPAD].set(
        _expand_head_cols(p["bl"].reshape(1, -1), heads, hidden))
    b_row = b_row.at[:, heads * CPAD:2 * heads * CPAD].set(
        _expand_head_cols(p["br"].reshape(1, -1), heads, hidden))
    att_row = head_row(p["att"].reshape(-1))
    bias_row = head_row(p["bias"])
    vec_block = jnp.concatenate(
        [b_row, att_row, bias_row, jnp.zeros((5, LANES), jnp.float32)], axis=0)
    return w_block, vec_block


def _pack_linear(w, b, in_blocks, k_alloc):
    w_rows = _expand_in_rows(w, in_blocks, k_alloc)                   # [k_alloc, out]
    w_block = jnp.zeros((k_alloc, LANES), jnp.float32).at[:, :w_rows.shape[1]].set(w_rows)
    b_row = jnp.zeros((1, LANES), jnp.float32).at[:, :b.shape[0]].set(b)
    vec_block = jnp.concatenate([b_row, jnp.zeros((7, LANES), jnp.float32)], axis=0)
    return w_block, vec_block


def pack_params(params, n_neurons, hidden, output_dim):
    """Pack everything into one lane-dense [R, 128] slab + static offsets."""
    blocks = []

    def add(arr):
        off = sum(b.shape[0] for b in blocks)
        blocks.append(arr)
        return off

    layout = {}
    in1 = [(0, n_neurons)]
    in2 = [(0, hidden), (CPAD, hidden)]          # concat of 2 padded head blocks
    in3 = [(0, hidden)]

    w, v = _pack_gat(params["gat1"], in1, _round8(n_neurons), hidden)
    ow, ov = add(w), add(v)
    layout["gat1"] = (ow, n_neurons, ov, 2)

    w, v = _pack_gat(params["gat2"], in2, 2 * CPAD, hidden)
    ow, ov = add(w), add(v)
    layout["gat2"] = (ow, 2 * CPAD, ov, 1)

    w, v = _pack_gat(params["gat3"], in3, CPAD, hidden)
    ow, ov = add(w), add(v)
    layout["gat3"] = (ow, CPAD, ov, 2)

    w, v = _pack_linear(params["lin_w"], params["lin_b"], in2, 2 * CPAD)
    ow, ov = add(w), add(v)
    layout["lin"] = (ow, 2 * CPAD, ov)

    slab = jnp.concatenate(blocks, axis=0)       # [208, 128] f32 (~104 KiB)
    return slab, layout


# ------------------------------ pure-JAX reference ---------------------------

def _reference_forward(x, mask_bias, params):
    def gat(h, p):
        xl = h @ p["wl"] + p["bl"]
        xr = h @ p["wr"] + p["br"]
        outs = []
        for hd in range(p["heads"]):
            xlh = xl[:, hd * HIDDEN:(hd + 1) * HIDDEN]
            xrh = xr[:, hd * HIDDEN:(hd + 1) * HIDDEN]
            s = xrh[:, None, :] + xlh[None, :, :]
            s = jnp.where(s > 0, s, 0.2 * s)
            e = jnp.sum(s * p["att"][hd][None, None, :], axis=-1) + mask_bias
            a = jax.nn.softmax(e, axis=1)
            outs.append(a @ xlh + p["bias"][hd * HIDDEN:(hd + 1) * HIDDEN])
        return jnp.concatenate(outs, axis=-1)

    h = jax.nn.relu(gat(x, params["gat1"]))
    h = jax.nn.relu(gat(h, params["gat2"]))
    h = gat(h, params["gat3"])
    return h @ params["lin_w"] + params["lin_b"]


# ----------------------------------- main ------------------------------------

if __name__ == "__main__":
    N_NODES = 16          # number of nodes / simplices
    N_NEURONS = 16        # input feature dim (params.n_neurons)
    OUTPUT_DIM = 4        # params.output_dim

    key = jax.random.PRNGKey(0)
    kx, kp = jax.random.split(key)

    x = jax.random.normal(kx, (N_NODES, N_NEURONS), jnp.float32)

    # deterministic ring graph (both directions): edge_index [2, E]
    idx = jnp.arange(N_NODES, dtype=jnp.int32)
    src = jnp.concatenate([idx, (idx + 1) % N_NODES])
    dst = jnp.concatenate([(idx + 1) % N_NODES, idx])
    edge_index = jnp.stack([src, dst], axis=0)

    params = make_params(kp, N_NEURONS, HIDDEN, OUTPUT_DIM)
    slab, layout = pack_params(params, N_NEURONS, HIDDEN, OUTPUT_DIM)

    # Graph-static mask built ONCE outside the jitted per-call path.
    mask_bias = build_mask_bias(edge_index, N_NODES)

    fwd = jax.jit(functools.partial(simplicial_gcn_forward,
                                    layout=layout, output_dim=OUTPUT_DIM))
    pred = jax.block_until_ready(fwd(x, mask_bias, slab))
    assert pred.shape == (N_NODES, OUTPUT_DIM)

    # Correctness check against a pure-JAX reference (approx reciprocal -> ~2^-12).
    ref = jax.block_until_ready(_reference_forward(x, mask_bias, params))
    tol = 1e-2 * max(1.0, float(jnp.max(jnp.abs(ref))))
    assert float(jnp.max(jnp.abs(pred - ref))) < tol, "mismatch vs reference"

    print("KERNEL_OK")
</pallas_src>

<mosaic_0001>
module attributes {stable_mosaic.version = 11 : i64} {
  func.func @_fused_gcn_kernel(%arg0: memref<16x16xf32, #tpu.memory_space<vmem>>, %arg1: memref<16x16xf32, #tpu.memory_space<vmem>>, %arg2: memref<208x128xf32, #tpu.memory_space<vmem>>, %arg3: memref<16x128xf32, #tpu.memory_space<vmem>>) attributes {dimension_semantics = [], scalar_prefetch = 0 : i64, scratch_operands = 0 : i64, tpu.core_type = #tpu.core_type<tc>} {
    %c0 = arith.constant 0 : index
    %c0_0 = arith.constant 0 : index
    %0 = vector.load %arg1[%c0, %c0_0] : memref<16x16xf32, #tpu.memory_space<vmem>>, vector<16x16xf32>
    %c0_1 = arith.constant 0 : index
    %c0_2 = arith.constant 0 : index
    %1 = vector.load %arg0[%c0_1, %c0_2] : memref<16x16xf32, #tpu.memory_space<vmem>>, vector<16x16xf32>
    %c0_3 = arith.constant 0 : index
    %c0_4 = arith.constant 0 : index
    %2 = vector.load %arg2[%c0_3, %c0_4] : memref<208x128xf32, #tpu.memory_space<vmem>>, vector<16x128xf32>
    %c16 = arith.constant 16 : index
    %c0_5 = arith.constant 0 : index
    %3 = vector.load %arg2[%c16, %c0_5] : memref<208x128xf32, #tpu.memory_space<vmem>>, vector<8x128xf32>
    %cst = arith.constant dense<0.000000e+00> : vector<16x128xf32>
    %4 = tpu.matmul %1, %2, %cst {dimension_numbers = #tpu.dot_dimension_numbers<[1], [0], [0], [1], [0, 0, 1, 1], [], []>} : vector<16x16xf32>, vector<16x128xf32>, vector<16x128xf32> -> vector<16x128xf32>
    %5 = vector.extract_strided_slice %3 {offsets = [0, 0], sizes = [1, 128], strides = [1, 1]} : vector<8x128xf32> to vector<1x128xf32>
    %6 = vector.broadcast %5 : vector<1x128xf32> to vector<16x128xf32>
    %7 = arith.addf %4, %6 : vector<16x128xf32>
    %8 = vector.extract_strided_slice %7 {offsets = [0, 0], sizes = [16, 32], strides = [1, 1]} : vector<16x128xf32> to vector<16x32xf32>
    %9 = vector.extract_strided_slice %7 {offsets = [0, 64], sizes = [16, 32], strides = [1, 1]} : vector<16x128xf32> to vector<16x32xf32>
    %10 = vector.extract_strided_slice %3 {offsets = [1, 0], sizes = [1, 32], strides = [1, 1]} : vector<8x128xf32> to vector<1x32xf32>
    %11 = vector.extract_strided_slice %3 {offsets = [2, 0], sizes = [1, 32], strides = [1, 1]} : vector<8x128xf32> to vector<1x32xf32>
    %12 = vector.shape_cast %9 : vector<16x32xf32> to vector<16x1x32xf32>
    %13 = vector.shape_cast %8 : vector<16x32xf32> to vector<1x16x32xf32>
    %14 = vector.broadcast %12 : vector<16x1x32xf32> to vector<16x16x32xf32>
    %15 = vector.broadcast %13 : vector<1x16x32xf32> to vector<16x16x32xf32>
    %16 = arith.addf %14, %15 : vector<16x16x32xf32>
    %cst_6 = arith.constant 0.000000e+00 : f32
    %17 = vector.broadcast %cst_6 : f32 to vector<16x16x32xf32>
    %18 = arith.cmpf ogt, %16, %17 : vector<16x16x32xf32>
    %cst_7 = arith.constant 2.000000e-01 : f32
    %19 = vector.broadcast %cst_7 : f32 to vector<16x16x32xf32>
    %20 = arith.mulf %19, %16 : vector<16x16x32xf32>
    %21 = arith.select %18, %16, %20 : vector<16x16x32xi1>, vector<16x16x32xf32>
    %22 = vector.shape_cast %10 : vector<1x32xf32> to vector<1x1x32xf32>
    %23 = vector.broadcast %22 : vector<1x1x32xf32> to vector<16x16x32xf32>
    %24 = arith.mulf %21, %23 : vector<16x16x32xf32>
    %cst_8 = arith.constant dense<0.000000e+00> : vector<16x16xf32>
    %25 = vector.multi_reduction <add>, %24, %cst_8 [2] : vector<16x16x32xf32> to vector<16x16xf32>
    %26 = arith.addf %25, %0 : vector<16x16xf32>
    %cst_9 = arith.constant dense<0xFF800000> : vector<16xf32>
    %27 = vector.multi_reduction <maximumf>, %26, %cst_9 [1] : vector<16x16xf32> to vector<16xf32>
    %28 = vector.shape_cast %27 : vector<16xf32> to vector<16x1xf32>
    %29 = vector.broadcast %28 : vector<16x1xf32> to vector<16x16xf32>
    %30 = arith.subf %26, %29 : vector<16x16xf32>
    %31 = math.exp %30 : vector<16x16xf32>
    %cst_10 = arith.constant dense<0.000000e+00> : vector<16xf32>
    %32 = vector.multi_reduction <add>, %31, %cst_10 [1] : vector<16x16xf32> to vector<16xf32>
    %33 = vector.shape_cast %32 : vector<16xf32> to vector<16x1xf32>
    %34 = tpu.reciprocal %33 {approx = true} : vector<16x1xf32> -> vector<16x1xf32>
    %35 = vector.broadcast %34 : vector<16x1xf32> to vector<16x16xf32>
    %36 = arith.mulf %31, %35 : vector<16x16xf32>
    %cst_11 = arith.constant dense<0.000000e+00> : vector<16x32xf32>
    %37 = tpu.matmul %36, %8, %cst_11 {dimension_numbers = #tpu.dot_dimension_numbers<[1], [0], [0], [1], [0, 0, 1, 1], [], []>} : vector<16x16xf32>, vector<16x32xf32>, vector<16x32xf32> -> vector<16x32xf32>
    %38 = vector.broadcast %11 : vector<1x32xf32> to vector<16x32xf32>
    %39 = arith.addf %37, %38 : vector<16x32xf32>
    %cst_12 = arith.constant 0.000000e+00 : f32
    %40 = vector.broadcast %cst_12 : f32 to vector<16x32xf32>
    %41 = arith.maximumf %39, %40 : vector<16x32xf32>
    %42 = vector.extract_strided_slice %7 {offsets = [0, 32], sizes = [16, 32], strides = [1, 1]} : vector<16x128xf32> to vector<16x32xf32>
    %43 = vector.extract_strided_slice %7 {offsets = [0, 96], sizes = [16, 32], strides = [1, 1]} : vector<16x128xf32> to vector<16x32xf32>
    %44 = vector.extract_strided_slice %3 {offsets = [1, 32], sizes = [1, 32], strides = [1, 1]} : vector<8x128xf32> to vector<1x32xf32>
    %45 = vector.extract_strided_slice %3 {offsets = [2, 32], sizes = [1, 32], strides = [1, 1]} : vector<8x128xf32> to vector<1x32xf32>
    %46 = vector.shape_cast %43 : vector<16x32xf32> to vector<16x1x32xf32>
    %47 = vector.shape_cast %42 : vector<16x32xf32> to vector<1x16x32xf32>
    %48 = vector.broadcast %46 : vector<16x1x32xf32> to vector<16x16x32xf32>
    %49 = vector.broadcast %47 : vector<1x16x32xf32> to vector<16x16x32xf32>
    %50 = arith.addf %48, %49 : vector<16x16x32xf32>
    %cst_13 = arith.constant 0.000000e+00 : f32
    %51 = vector.broadcast %cst_13 : f32 to vector<16x16x32xf32>
    %52 = arith.cmpf ogt, %50, %51 : vector<16x16x32xf32>
    %cst_14 = arith.constant 2.000000e-01 : f32
    %53 = vector.broadcast %cst_14 : f32 to vector<16x16x32xf32>
    %54 = arith.mulf %53, %50 : vector<16x16x32xf32>
    %55 = arith.select %52, %50, %54 : vector<16x16x32xi1>, vector<16x16x32xf32>
    %56 = vector.shape_cast %44 : vector<1x32xf32> to vector<1x1x32xf32>
    %57 = vector.broadcast %56 : vector<1x1x32xf32> to vector<16x16x32xf32>
    %58 = arith.mulf %55, %57 : vector<16x16x32xf32>
    %cst_15 = arith.constant dense<0.000000e+00> : vector<16x16xf32>
    %59 = vector.multi_reduction <add>, %58, %cst_15 [2] : vector<16x16x32xf32> to vector<16x16xf32>
    %60 = arith.addf %59, %0 : vector<16x16xf32>
    %cst_16 = arith.constant dense<0xFF800000> : vector<16xf32>
    %61 = vector.multi_reduction <maximumf>, %60, %cst_16 [1] : vector<16x16xf32> to vector<16xf32>
    %62 = vector.shape_cast %61 : vector<16xf32> to vector<16x1xf32>
    %63 = vector.broadcast %62 : vector<16x1xf32> to vector<16x16xf32>
    %64 = arith.subf %60, %63 : vector<16x16xf32>
    %65 = math.exp %64 : vector<16x16xf32>
    %cst_17 = arith.constant dense<0.000000e+00> : vector<16xf32>
    %66 = vector.multi_reduction <add>, %65, %cst_17 [1] : vector<16x16xf32> to vector<16xf32>
    %67 = vector.shape_cast %66 : vector<16xf32> to vector<16x1xf32>
    %68 = tpu.reciprocal %67 {approx = true} : vector<16x1xf32> -> vector<16x1xf32>
    %69 = vector.broadcast %68 : vector<16x1xf32> to vector<16x16xf32>
    %70 = arith.mulf %65, %69 : vector<16x16xf32>
    %cst_18 = arith.constant dense<0.000000e+00> : vector<16x32xf32>
    %71 = tpu.matmul %70, %42, %cst_18 {dimension_numbers = #tpu.dot_dimension_numbers<[1], [0], [0], [1], [0, 0, 1, 1], [], []>} : vector<16x16xf32>, vector<16x32xf32>, vector<16x32xf32> -> vector<16x32xf32>
    %72 = vector.broadcast %45 : vector<1x32xf32> to vector<16x32xf32>
    %73 = arith.addf %71, %72 : vector<16x32xf32>
    %cst_19 = arith.constant 0.000000e+00 : f32
    %74 = vector.broadcast %cst_19 : f32 to vector<16x32xf32>
    %75 = arith.maximumf %73, %74 : vector<16x32xf32>
    %76 = tpu.concatenate %41, %75 in 1 : vector<16x32xf32>, vector<16x32xf32> -> vector<16x64xf32>
    %c24 = arith.constant 24 : index
    %c0_20 = arith.constant 0 : index
    %77 = vector.load %arg2[%c24, %c0_20] : memref<208x128xf32, #tpu.memory_space<vmem>>, vector<64x128xf32>
    %c88 = arith.constant 88 : index
    %c0_21 = arith.constant 0 : index
    %78 = vector.load %arg2[%c88, %c0_21] : memref<208x128xf32, #tpu.memory_space<vmem>>, vector<8x128xf32>
    %cst_22 = arith.constant dense<0.000000e+00> : vector<16x128xf32>
    %79 = tpu.matmul %76, %77, %cst_22 {dimension_numbers = #tpu.dot_dimension_numbers<[1], [0], [0], [1], [0, 0, 1, 1], [], []>} : vector<16x64xf32>, vector<64x128xf32>, vector<16x128xf32> -> vector<16x128xf32>
    %80 = vector.extract_strided_slice %78 {offsets = [0, 0], sizes = [1, 128], strides = [1, 1]} : vector<8x128xf32> to vector<1x128xf32>
    %81 = vector.broadcast %80 : vector<1x128xf32> to vector<16x128xf32>
    %82 = arith.addf %79, %81 : vector<16x128xf32>
    %83 = vector.extract_strided_slice %82 {offsets = [0, 0], sizes = [16, 32], strides = [1, 1]} : vector<16x128xf32> to vector<16x32xf32>
    %84 = vector.extract_strided_slice %82 {offsets = [0, 32], sizes = [16, 32], strides = [1, 1]} : vector<16x128xf32> to vector<16x32xf32>
    %85 = vector.extract_strided_slice %78 {offsets = [1, 0], sizes = [1, 32], strides = [1, 1]} : vector<8x128xf32> to vector<1x32xf32>
    %86 = vector.extract_strided_slice %78 {offsets = [2, 0], sizes = [1, 32], strides = [1, 1]} : vector<8x128xf32> to vector<1x32xf32>
    %87 = vector.shape_cast %84 : vector<16x32xf32> to vector<16x1x32xf32>
    %88 = vector.shape_cast %83 : vector<16x32xf32> to vector<1x16x32xf32>
    %89 = vector.broadcast %87 : vector<16x1x32xf32> to vector<16x16x32xf32>
    %90 = vector.broadcast %88 : vector<1x16x32xf32> to vector<16x16x32xf32>
    %91 = arith.addf %89, %90 : vector<16x16x32xf32>
    %cst_23 = arith.constant 0.000000e+00 : f32
    %92 = vector.broadcast %cst_23 : f32 to vector<16x16x32xf32>
    %93 = arith.cmpf ogt, %91, %92 : vector<16x16x32xf32>
    %cst_24 = arith.constant 2.000000e-01 : f32
    %94 = vector.broadcast %cst_24 : f32 to vector<16x16x32xf32>
    %95 = arith.mulf %94, %91 : vector<16x16x32xf32>
    %96 = arith.select %93, %91, %95 : vector<16x16x32xi1>, vector<16x16x32xf32>
    %97 = vector.shape_cast %85 : vector<1x32xf32> to vector<1x1x32xf32>
    %98 = vector.broadcast %97 : vector<1x1x32xf32> to vector<16x16x32xf32>
    %99 = arith.mulf %96, %98 : vector<16x16x32xf32>
    %cst_25 = arith.constant dense<0.000000e+00> : vector<16x16xf32>
    %100 = vector.multi_reduction <add>, %99, %cst_25 [2] : vector<16x16x32xf32> to vector<16x16xf32>
    %101 = arith.addf %100, %0 : vector<16x16xf32>
    %cst_26 = arith.constant dense<0xFF800000> : vector<16xf32>
    %102 = vector.multi_reduction <maximumf>, %101, %cst_26 [1] : vector<16x16xf32> to vector<16xf32>
    %103 = vector.shape_cast %102 : vector<16xf32> to vector<16x1xf32>
    %104 = vector.broadcast %103 : vector<16x1xf32> to vector<16x16xf32>
    %105 = arith.subf %101, %104 : vector<16x16xf32>
    %106 = math.exp %105 : vector<16x16xf32>
    %cst_27 = arith.constant dense<0.000000e+00> : vector<16xf32>
    %107 = vector.multi_reduction <add>, %106, %cst_27 [1] : vector<16x16xf32> to vector<16xf32>
    %108 = vector.shape_cast %107 : vector<16xf32> to vector<16x1xf32>
    %109 = tpu.reciprocal %108 {approx = true} : vector<16x1xf32> -> vector<16x1xf32>
    %110 = vector.broadcast %109 : vector<16x1xf32> to vector<16x16xf32>
    %111 = arith.mulf %106, %110 : vector<16x16xf32>
    %cst_28 = arith.constant dense<0.000000e+00> : vector<16x32xf32>
    %112 = tpu.matmul %111, %83, %cst_28 {dimension_numbers = #tpu.dot_dimension_numbers<[1], [0], [0], [1], [0, 0, 1, 1], [], []>} : vector<16x16xf32>, vector<16x32xf32>, vector<16x32xf32> -> vector<16x32xf32>
    %113 = vector.broadcast %86 : vector<1x32xf32> to vector<16x32xf32>
    %114 = arith.addf %112, %113 : vector<16x32xf32>
    %cst_29 = arith.constant 0.000000e+00 : f32
    %115 = vector.broadcast %cst_29 : f32 to vector<16x32xf32>
    %116 = arith.maximumf %114, %115 : vector<16x32xf32>
    %c96 = arith.constant 96 : index
    %c0_30 = arith.constant 0 : index
    %117 = vector.load %arg2[%c96, %c0_30] : memref<208x128xf32, #tpu.memory_space<vmem>>, vector<32x128xf32>
    %c128 = arith.constant 128 : index
    %c0_31 = arith.constant 0 : index
    %118 = vector.load %arg2[%c128, %c0_31] : memref<208x128xf32, #tpu.memory_space<vmem>>, vector<8x128xf32>
    %cst_32 = arith.constant dense<0.000000e+00> : vector<16x128xf32>
    %119 = tpu.matmul %116, %117, %cst_32 {dimension_numbers = #tpu.dot_dimension_numbers<[1], [0], [0], [1], [0, 0, 1, 1], [], []>} : vector<16x32xf32>, vector<32x128xf32>, vector<16x128xf32> -> vector<16x128xf32>
    %120 = vector.extract_strided_slice %118 {offsets = [0, 0], sizes = [1, 128], strides = [1, 1]} : vector<8x128xf32> to vector<1x128xf32>
    %121 = vector.broadcast %120 : vector<1x128xf32> to vector<16x128xf32>
    %122 = arith.addf %119, %121 : vector<16x128xf32>
    %123 = vector.extract_strided_slice %122 {offsets = [0, 0], sizes = [16, 32], strides = [1, 1]} : vector<16x128xf32> to vector<16x32xf32>
    %124 = vector.extract_strided_slice %122 {offsets = [0, 64], sizes = [16, 32], strides = [1, 1]} : vector<16x128xf32> to vector<16x32xf32>
    %125 = vector.extract_strided_slice %118 {offsets = [1, 0], sizes = [1, 32], strides = [1, 1]} : vector<8x128xf32> to vector<1x32xf32>
    %126 = vector.extract_strided_slice %118 {offsets = [2, 0], sizes = [1, 32], strides = [1, 1]} : vector<8x128xf32> to vector<1x32xf32>
    %127 = vector.shape_cast %124 : vector<16x32xf32> to vector<16x1x32xf32>
    %128 = vector.shape_cast %123 : vector<16x32xf32> to vector<1x16x32xf32>
    %129 = vector.broadcast %127 : vector<16x1x32xf32> to vector<16x16x32xf32>
    %130 = vector.broadcast %128 : vector<1x16x32xf32> to vector<16x16x32xf32>
    %131 = arith.addf %129, %130 : vector<16x16x32xf32>
    %cst_33 = arith.constant 0.000000e+00 : f32
    %132 = vector.broadcast %cst_33 : f32 to vector<16x16x32xf32>
    %133 = arith.cmpf ogt, %131, %132 : vector<16x16x32xf32>
    %cst_34 = arith.constant 2.000000e-01 : f32
    %134 = vector.broadcast %cst_34 : f32 to vector<16x16x32xf32>
    %135 = arith.mulf %134, %131 : vector<16x16x32xf32>
    %136 = arith.select %133, %131, %135 : vector<16x16x32xi1>, vector<16x16x32xf32>
    %137 = vector.shape_cast %125 : vector<1x32xf32> to vector<1x1x32xf32>
    %138 = vector.broadcast %137 : vector<1x1x32xf32> to vector<16x16x32xf32>
    %139 = arith.mulf %136, %138 : vector<16x16x32xf32>
    %cst_35 = arith.constant dense<0.000000e+00> : vector<16x16xf32>
    %140 = vector.multi_reduction <add>, %139, %cst_35 [2] : vector<16x16x32xf32> to vector<16x16xf32>
    %141 = arith.addf %140, %0 : vector<16x16xf32>
    %cst_36 = arith.constant dense<0xFF800000> : vector<16xf32>
    %142 = vector.multi_reduction <maximumf>, %141, %cst_36 [1] : vector<16x16xf32> to vector<16xf32>
    %143 = vector.shape_cast %142 : vector<16xf32> to vector<16x1xf32>
    %144 = vector.broadcast %143 : vector<16x1xf32> to vector<16x16xf32>
    %145 = arith.subf %141, %144 : vector<16x16xf32>
    %146 = math.exp %145 : vector<16x16xf32>
    %cst_37 = arith.constant dense<0.000000e+00> : vector<16xf32>
    %147 = vector.multi_reduction <add>, %146, %cst_37 [1] : vector<16x16xf32> to vector<16xf32>
    %148 = vector.shape_cast %147 : vector<16xf32> to vector<16x1xf32>
    %149 = tpu.reciprocal %148 {approx = true} : vector<16x1xf32> -> vector<16x1xf32>
    %150 = vector.broadcast %149 : vector<16x1xf32> to vector<16x16xf32>
    %151 = arith.mulf %146, %150 : vector<16x16xf32>
    %cst_38 = arith.constant dense<0.000000e+00> : vector<16x32xf32>
    %152 = tpu.matmul %151, %123, %cst_38 {dimension_numbers = #tpu.dot_dimension_numbers<[1], [0], [0], [1], [0, 0, 1, 1], [], []>} : vector<16x16xf32>, vector<16x32xf32>, vector<16x32xf32> -> vector<16x32xf32>
    %153 = vector.broadcast %126 : vector<1x32xf32> to vector<16x32xf32>
    %154 = arith.addf %152, %153 : vector<16x32xf32>
    %155 = vector.extract_strided_slice %122 {offsets = [0, 32], sizes = [16, 32], strides = [1, 1]} : vector<16x128xf32> to vector<16x32xf32>
    %156 = vector.extract_strided_slice %122 {offsets = [0, 96], sizes = [16, 32], strides = [1, 1]} : vector<16x128xf32> to vector<16x32xf32>
    %157 = vector.extract_strided_slice %118 {offsets = [1, 32], sizes = [1, 32], strides = [1, 1]} : vector<8x128xf32> to vector<1x32xf32>
    %158 = vector.extract_strided_slice %118 {offsets = [2, 32], sizes = [1, 32], strides = [1, 1]} : vector<8x128xf32> to vector<1x32xf32>
    %159 = vector.shape_cast %156 : vector<16x32xf32> to vector<16x1x32xf32>
    %160 = vector.shape_cast %155 : vector<16x32xf32> to vector<1x16x32xf32>
    %161 = vector.broadcast %159 : vector<16x1x32xf32> to vector<16x16x32xf32>
    %162 = vector.broadcast %160 : vector<1x16x32xf32> to vector<16x16x32xf32>
    %163 = arith.addf %161, %162 : vector<16x16x32xf32>
    %cst_39 = arith.constant 0.000000e+00 : f32
    %164 = vector.broadcast %cst_39 : f32 to vector<16x16x32xf32>
    %165 = arith.cmpf ogt, %163, %164 : vector<16x16x32xf32>
    %cst_40 = arith.constant 2.000000e-01 : f32
    %166 = vector.broadcast %cst_40 : f32 to vector<16x16x32xf32>
    %167 = arith.mulf %166, %163 : vector<16x16x32xf32>
    %168 = arith.select %165, %163, %167 : vector<16x16x32xi1>, vector<16x16x32xf32>
    %169 = vector.shape_cast %157 : vector<1x32xf32> to vector<1x1x32xf32>
    %170 = vector.broadcast %169 : vector<1x1x32xf32> to vector<16x16x32xf32>
    %171 = arith.mulf %168, %170 : vector<16x16x32xf32>
    %cst_41 = arith.constant dense<0.000000e+00> : vector<16x16xf32>
    %172 = vector.multi_reduction <add>, %171, %cst_41 [2] : vector<16x16x32xf32> to vector<16x16xf32>
    %173 = arith.addf %172, %0 : vector<16x16xf32>
    %cst_42 = arith.constant dense<0xFF800000> : vector<16xf32>
    %174 = vector.multi_reduction <maximumf>, %173, %cst_42 [1] : vector<16x16xf32> to vector<16xf32>
    %175 = vector.shape_cast %174 : vector<16xf32> to vector<16x1xf32>
    %176 = vector.broadcast %175 : vector<16x1xf32> to vector<16x16xf32>
    %177 = arith.subf %173, %176 : vector<16x16xf32>
    %178 = math.exp %177 : vector<16x16xf32>
    %cst_43 = arith.constant dense<0.000000e+00> : vector<16xf32>
    %179 = vector.multi_reduction <add>, %178, %cst_43 [1] : vector<16x16xf32> to vector<16xf32>
    %180 = vector.shape_cast %179 : vector<16xf32> to vector<16x1xf32>
    %181 = tpu.reciprocal %180 {approx = true} : vector<16x1xf32> -> vector<16x1xf32>
    %182 = vector.broadcast %181 : vector<16x1xf32> to vector<16x16xf32>
    %183 = arith.mulf %178, %182 : vector<16x16xf32>
    %cst_44 = arith.constant dense<0.000000e+00> : vector<16x32xf32>
    %184 = tpu.matmul %183, %155, %cst_44 {dimension_numbers = #tpu.dot_dimension_numbers<[1], [0], [0], [1], [0, 0, 1, 1], [], []>} : vector<16x16xf32>, vector<16x32xf32>, vector<16x32xf32> -> vector<16x32xf32>
    %185 = vector.broadcast %158 : vector<1x32xf32> to vector<16x32xf32>
    %186 = arith.addf %184, %185 : vector<16x32xf32>
    %187 = tpu.concatenate %154, %186 in 1 : vector<16x32xf32>, vector<16x32xf32> -> vector<16x64xf32>
    %c136 = arith.constant 136 : index
    %c0_45 = arith.constant 0 : index
    %188 = vector.load %arg2[%c136, %c0_45] : memref<208x128xf32, #tpu.memory_space<vmem>>, vector<64x128xf32>
    %c200 = arith.constant 200 : index
    %c0_46 = arith.constant 0 : index
    %189 = vector.load %arg2[%c200, %c0_46] : memref<208x128xf32, #tpu.memory_space<vmem>>, vector<1x128xf32>
    %cst_47 = arith.constant dense<0.000000e+00> : vector<16x128xf32>
    %190 = tpu.matmul %187, %188, %cst_47 {dimension_numbers = #tpu.dot_dimension_numbers<[1], [0], [0], [1], [0, 0, 1, 1], [], []>} : vector<16x64xf32>, vector<64x128xf32>, vector<16x128xf32> -> vector<16x128xf32>
    %191 = vector.broadcast %189 : vector<1x128xf32> to vector<16x128xf32>
    %192 = arith.addf %190, %191 : vector<16x128xf32>
    %c0_48 = arith.constant 0 : index
    %c0_49 = arith.constant 0 : index
    %193 = vector.load %arg3[%c0_48, %c0_49] : memref<16x128xf32, #tpu.memory_space<vmem>>, vector<16x128xf32>
    tpu.vector_store %arg3[%c0_48, %c0_49], %192 {strides = array<i32>} : memref<16x128xf32, #tpu.memory_space<vmem>>, vector<16x128xf32>,
    return
  }
}

</mosaic_0001>

<llo_original>
// kernel: simplicial_gcn_forward.1
$region0: #{simplicial_gcn_forward.1}
  #allocation0 [shape = 'u32[]', space=smem, size = 0x4, offset = 0x4, fixed_abs, tag = 'smem constant byte address 0x4 - core index']
  #allocation1 [shape = 'u32[72,128]{1,0:T(1,128)}', space=vmem, size = 0x9000, scoped, tag = 'internal scratch']
  %s0 = inlined_call_operand.hbm [shape: f32[16,16], index: 0, kind: input, shape index: {}]
  %s1 = inlined_call_operand.hbm [shape: f32[16,16], index: 1, kind: input, shape index: {}]
  %s2 = inlined_call_operand.hbm [shape: f32[208,128], index: 2, kind: input, shape index: {}]
  %s3 = inlined_call_operand.vmem [shape: f32[16,128], index: 3, kind: output, shape index: {}]
  %s4 = sld [smem:[#allocation0]]
  $region34: #{simplicial_gcn_forward.1} parent=0
    _
  %s6 = ssub.s32 1, %s4
  %s7 = scalar_select 0, %s6, %s4
  $region1: #{simplicial_gcn_forward.1} parent=0
    #allocation2 [shape = 'u8[8192]{0}', space=vmem, size = 0x2000, scoped, tag = 'input window, operand 0, single buffered']
    #allocation3 [shape = 's32[1]{0}', space=sflag, size = 0x4, scoped, tag = 'scoped memory for simplicial_gcn_forward.1']
    #allocation4 [shape = 'u8[8192]{0}', space=vmem, size = 0x2000, scoped, tag = 'input window, operand 1, single buffered']
    #allocation5 [shape = 's32[1]{0}', space=sflag, size = 0x4, scoped, tag = 'scoped memory for simplicial_gcn_forward.1']
    #allocation6 [shape = 'u8[106496]{0}', space=vmem, size = 0x1a000, scoped, tag = 'input window, operand 2, single buffered']
    %8 = vsyncpa [#allocation3], 0
    %9 = vsyncpa [#allocation5], 0
    // Predicated region
    $region2: #{simplicial_gcn_forward.1} parent=1 // pred_check
      _
    $region3: #{simplicial_gcn_forward.1} parent=1 // pred_check_branch
      %11 = sbr.rel (0) target = $region5
    $region4: #{simplicial_gcn_forward.1} parent=1 // pred_region
      %13 = vsyncadd [#allocation3], 0
      %s14 = sshll.u32 %s0, 4
      %s15 = int_to_ptr.hbm [resolvable:$true] %s14
      %s16 = sshll.u32 [#allocation2], 4
      %s17 = int_to_ptr.vmem [resolvable:$true] %s16
      %22 = dma.hbm_to_vmem [thread:$0]  %s15, 256, %s17, [#allocation3], 128, 128, 8
    $region5: #{simplicial_gcn_forward.1} parent=1 // pred_fallthru
      _
    // Predicated region
    $region6: #{simplicial_gcn_forward.1} parent=1 // pred_check
      _
    $region7: #{simplicial_gcn_forward.1} parent=1 // pred_check_branch
      %24 = sbr.rel (0) target = $region9
    $region8: #{simplicial_gcn_forward.1} parent=1 // pred_region
      %26 = vsyncadd [#allocation5], 0
      %s27 = sshll.u32 %s1, 4
      %s28 = int_to_ptr.hbm [resolvable:$true] %s27
      %s29 = sshll.u32 [#allocation4], 4
      %s30 = int_to_ptr.vmem [resolvable:$true] %s29
      %35 = dma.hbm_to_vmem [thread:$0]  %s28, 256, %s30, [#allocation5], 128, 128, 8
    $region9: #{simplicial_gcn_forward.1} parent=1 // pred_fallthru
      _
    // Predicated region
    $region10: #{simplicial_gcn_forward.1} parent=1 // pred_check
      _
    $region11: #{simplicial_gcn_forward.1} parent=1 // pred_check_branch
      %37 = sbr.rel (0) target = $region13
    $region12: #{simplicial_gcn_forward.1} parent=1 // pred_region
      %39 = vsyncadd [#allocation5], 0
      %s40 = sshll.u32 %s2, 4
      %s41 = int_to_ptr.hbm [resolvable:$true] %s40
      %s42 = sshll.u32 [#allocation6], 4
      %s43 = int_to_ptr.vmem [resolvable:$true] %s42
      %48 = dma.hbm_to_vmem [thread:$0]  %s41, 3328, %s43, [#allocation5], 128, 128, 8
    $region13: #{simplicial_gcn_forward.1} parent=1 // pred_fallthru
      _
    // Predicated region
    $region14: #{simplicial_gcn_forward.1} parent=1 // pred_check
      _
    $region15: #{simplicial_gcn_forward.1} parent=1 // pred_check_branch
      %50 = sbr.rel (0) target = $region17
    $region16: #{simplicial_gcn_forward.1} parent=1 // pred_region
      %52 = dma.done [#allocation3], 256
    $region17: #{simplicial_gcn_forward.1} parent=1 // pred_fallthru
      _
    // Predicated region
    $region18: #{simplicial_gcn_forward.1} parent=1 // pred_check
      _
    $region19: #{simplicial_gcn_forward.1} parent=1 // pred_check_branch
      %54 = sbr.rel (0) target = $region21
    $region20: #{simplicial_gcn_forward.1} parent=1 // pred_region
      %56 = dma.done [#allocation5], 256
    $region21: #{simplicial_gcn_forward.1} parent=1 // pred_fallthru
      _
    // Predicated region
    $region22: #{simplicial_gcn_forward.1} parent=1 // pred_check
      _
    $region23: #{simplicial_gcn_forward.1} parent=1 // pred_check_branch
      %58 = sbr.rel (0) target = $region25
    $region24: #{simplicial_gcn_forward.1} parent=1 // pred_region
      %60 = dma.done [#allocation5], 3328
    $region25: #{simplicial_gcn_forward.1} parent=1 // pred_fallthru
      _
    %v61 = vld [vmem:[#allocation4] sm:$0xff]
    %v62 = vld [vmem:[#allocation4 + $0x8] sm:$0xff]
    %v63 = vld [vmem:[#allocation2] sm:$0xff]
    %v64 = vld [vmem:[#allocation2 + $0x8] sm:$0xff]
    %v65 = vld [vmem:[#allocation6] sm:$0xff]
    %v66 = vld [vmem:[#allocation6 + $0x8] sm:$0xff]
    %v67 = vld [vmem:[#allocation6 + $0x10] sm:$0xff]
    %v68 = vperm.slane %v67, 0
    %vm69 = vcmask 130048
    %v71 = vsel %vm69, %v63, 0
    %v74 = vsel %vm69, %v64, 0
    %76 = vmatpush.msra.mxu0 0.0
    %77 = vmatpush.msra.mxu0 0.0
    %78 = vmatpush.msra.mxu0 0.0
    %79 = vmatpush.msra.mxu0 0.0
    %80 = vmatpush.msra.mxu0 0.0
    %81 = vmatpush.msra.mxu0 0.0
    %82 = vmatpush.msra.mxu0 0.0
    %83 = vmatpush.msra.mxu0 0.0
    %84 = vmatpush.msra.mxu0 0.0
    %85 = vmatpush.msra.mxu0 0.0
    %86 = vmatpush.msra.mxu0 0.0
    %87 = vmatpush.msra.mxu0 0.0
    %88 = vmatpush.msra.mxu0 0.0
    %89 = vmatpush.msra.mxu0 0.0
    %90 = vmatpush.msra.mxu0 %v66
    %91 = vmatpush.msra.mxu0 %v65
    %92 = vmatmul.f32.gmra.mxu0 %v71
    %v93 = vpop.f32.mrf.mxu0
    %v94 = vadd.f32 %v68, %v93
    %95 = vmatmul.f32.gmra.mxu0 %v74
    %v96 = vpop.f32.mrf.mxu0
    %v97 = vadd.f32 %v68, %v96
    %98 = vdwg.mxu0
    %v101 = vrot.slane %v94, 1
    %v102 = vrot.slane %v94, 2
    %v103 = vrot.slane %v94, 3
    %v104 = vrot.slane %v94, 4
    %v105 = vrot.slane %v94, 5
    %v106 = vrot.slane %v94, 6
    %v107 = vrot.slane %v94, 7
    %v108 = vrot.slane %v97, 1
    %v109 = vrot.slane %v97, 2
    %v110 = vrot.slane %v97, 3
    %v111 = vrot.slane %v97, 4
    %v112 = vrot.slane %v97, 5
    %v113 = vrot.slane %v97, 6
    %v114 = vrot.slane %v97, 7
    %v115 = vperm.slane %v94, 0
    %v116 = vperm.slane %v101, 0
    %v117 = vperm.slane %v102, 0
    %v118 = vperm.slane %v103, 0
    %v119 = vperm.slane %v104, 0
    %v120 = vperm.slane %v105, 0
    %v121 = vperm.slane %v106, 0
    %v122 = vperm.slane %v107, 0
    %v123 = vperm.slane %v97, 0
    %v124 = vperm.slane %v108, 0
    %v125 = vperm.slane %v109, 0
    %v126 = vperm.slane %v110, 0
    %v127 = vperm.slane %v111, 0
    %v128 = vperm.slane %v112, 0
    %v129 = vperm.slane %v113, 0
    %v130 = vperm.slane %v114, 0
    %147 = vrot.lane.b32.xlu0 %v94, 64
    %v148 = vpop.permute.xlu0 %147
    %149 = vrot.lane.b32.xlu0 %v97, 64
    %v150 = vpop.permute.xlu0 %149
    %v153 = vadd.f32 %v115, %v148
    %v154 = vadd.f32 %v115, %v150
    %v155 = vadd.f32 %v116, %v148
    %v156 = vadd.f32 %v116, %v150
    %v157 = vadd.f32 %v117, %v148
    %v158 = vadd.f32 %v117, %v150
    %v159 = vadd.f32 %v118, %v148
    %v160 = vadd.f32 %v118, %v150
    %v161 = vadd.f32 %v119, %v148
    %v162 = vadd.f32 %v119, %v150
    %v163 = vadd.f32 %v120, %v148
    %v164 = vadd.f32 %v120, %v150
    %v165 = vadd.f32 %v121, %v148
    %v166 = vadd.f32 %v121, %v150
    %v167 = vadd.f32 %v122, %v148
    %v168 = vadd.f32 %v122, %v150
    %v169 = vadd.f32 %v123, %v148
    %v170 = vadd.f32 %v123, %v150
    %v171 = vadd.f32 %v124, %v148
    %v172 = vadd.f32 %v124, %v150
    %v173 = vadd.f32 %v125, %v148
    %v174 = vadd.f32 %v125, %v150
    %v175 = vadd.f32 %v126, %v148
    %v176 = vadd.f32 %v126, %v150
    %v177 = vadd.f32 %v127, %v148
    %v178 = vadd.f32 %v127, %v150
    %v179 = vadd.f32 %v128, %v148
    %v180 = vadd.f32 %v128, %v150
    %v181 = vadd.f32 %v129, %v148
    %v182 = vadd.f32 %v129, %v150
    %v183 = vadd.f32 %v130, %v148
    %v184 = vadd.f32 %v130, %v150
    %vm185 = vcmp.gt.f32.partialorder %v153, 0.0
    %vm186 = vcmp.gt.f32.partialorder %v154, 0.0
    %vm187 = vcmp.gt.f32.partialorder %v155, 0.0
    %vm188 = vcmp.gt.f32.partialorder %v156, 0.0
    %vm189 = vcmp.gt.f32.partialorder %v157, 0.0
    %vm190 = vcmp.gt.f32.partialorder %v158, 0.0
    %vm191 = vcmp.gt.f32.partialorder %v159, 0.0
    %vm192 = vcmp.gt.f32.partialorder %v160, 0.0
    %vm193 = vcmp.gt.f32.partialorder %v161, 0.0
    %vm194 = vcmp.gt.f32.partialorder %v162, 0.0
    %vm195 = vcmp.gt.f32.partialorder %v163, 0.0
    %vm196 = vcmp.gt.f32.partialorder %v164, 0.0
    %vm197 = vcmp.gt.f32.partialorder %v165, 0.0
    %vm198 = vcmp.gt.f32.partialorder %v166, 0.0
    %vm199 = vcmp.gt.f32.partialorder %v167, 0.0
    %vm200 = vcmp.gt.f32.partialorder %v168, 0.0
    %vm201 = vcmp.gt.f32.partialorder %v169, 0.0
    %vm202 = vcmp.gt.f32.partialorder %v170, 0.0
    %vm203 = vcmp.gt.f32.partialorder %v171, 0.0
    %vm204 = vcmp.gt.f32.partialorder %v172, 0.0
    %vm205 = vcmp.gt.f32.partialorder %v173, 0.0
    %vm206 = vcmp.gt.f32.partialorder %v174, 0.0
    %vm207 = vcmp.gt.f32.partialorder %v175, 0.0
    %vm208 = vcmp.gt.f32.partialorder %v176, 0.0
    %vm209 = vcmp.gt.f32.partialorder %v177, 0.0
    %vm210 = vcmp.gt.f32.partialorder %v178, 0.0
    %vm211 = vcmp.gt.f32.partialorder %v179, 0.0
    %vm212 = vcmp.gt.f32.partialorder %v180, 0.0
    %vm213 = vcmp.gt.f32.partialorder %v181, 0.0
    %vm214 = vcmp.gt.f32.partialorder %v182, 0.0
    %vm215 = vcmp.gt.f32.partialorder %v183, 0.0
    %vm216 = vcmp.gt.f32.partialorder %v184, 0.0
    %v217 = vmul.f32 %v153, 0.2
    %v218 = vmul.f32 %v154, 0.2
    %v219 = vmul.f32 %v155, 0.2
    %v220 = vmul.f32 %v156, 0.2
    %v221 = vmul.f32 %v157, 0.2
    %v222 = vmul.f32 %v158, 0.2
    %v223 = vmul.f32 %v159, 0.2
    %v224 = vmul.f32 %v160, 0.2
    %v225 = vmul.f32 %v161, 0.2
    %v226 = vmul.f32 %v162, 0.2
    %v227 = vmul.f32 %v163, 0.2
    %v228 = vmul.f32 %v164, 0.2
    %v229 = vmul.f32 %v165, 0.2
    %v230 = vmul.f32 %v166, 0.2
    %v231 = vmul.f32 %v167, 0.2
    %v232 = vmul.f32 %v168, 0.2
    %v233 = vmul.f32 %v169, 0.2
    %v234 = vmul.f32 %v170, 0.2
    %v235 = vmul.f32 %v171, 0.2
    %v236 = vmul.f32 %v172, 0.2
    %v237 = vmul.f32 %v173, 0.2
    %v238 = vmul.f32 %v174, 0.2
    %v239 = vmul.f32 %v175, 0.2
    %v240 = vmul.f32 %v176, 0.2
    %v241 = vmul.f32 %v177, 0.2
    %v242 = vmul.f32 %v178, 0.2
    %v243 = vmul.f32 %v179, 0.2
    %v244 = vmul.f32 %v180, 0.2
    %v245 = vmul.f32 %v181, 0.2
    %v246 = vmul.f32 %v182, 0.2
    %v247 = vmul.f32 %v183, 0.2
    %v248 = vmul.f32 %v184, 0.2
    %v249 = vsel %vm185, %v153, %v217
    %v250 = vsel %vm186, %v154, %v218
    %v251 = vsel %vm187, %v155, %v219
    %v252 = vsel %vm188, %v156, %v220
    %v253 = vsel %vm189, %v157, %v221
    %v254 = vsel %vm190, %v158, %v222
    %v255 = vsel %vm191, %v159, %v223
    %v256 = vsel %vm192, %v160, %v224
    %v257 = vsel %vm193, %v161, %v225
    %v258 = vsel %vm194, %v162, %v226
    %v259 = vsel %vm195, %v163, %v227
    %v260 = vsel %vm196, %v164, %v228
    %v261 = vsel %vm197, %v165, %v229
    %v262 = vsel %vm198, %v166, %v230
    %v263 = vsel %vm199, %v167, %v231
    %v264 = vsel %vm200, %v168, %v232
    %v265 = vsel %vm201, %v169, %v233
    %v266 = vsel %vm202, %v170, %v234
    %v267 = vsel %vm203, %v171, %v235
    %v268 = vsel %vm204, %v172, %v236
    %v269 = vsel %vm205, %v173, %v237
    %v270 = vsel %vm206, %v174, %v238
    %v271 = vsel %vm207, %v175, %v239
    %v272 = vsel %vm208, %v176, %v240
    %v273 = vsel %vm209, %v177, %v241
    %v274 = vsel %vm210, %v178, %v242
    %v275 = vsel %vm211, %v179, %v243
    %v276 = vsel %vm212, %v180, %v244
    %v277 = vsel %vm213, %v181, %v245
    %v278 = vsel %vm214, %v182, %v246
    %v279 = vsel %vm215, %v183, %v247
    %v280 = vsel %vm216, %v184, %v248
    %v281 = vperm.slane %v67, 1
    %283 = vrot.lane.b32.xlu0 %v281, 64
    %v284 = vpop.permute.xlu0 %283
    %v286 = vmul.f32 %v249, %v284
    %v287 = vmul.f32 %v250, %v284
    %v288 = vmul.f32 %v251, %v284
    %v289 = vmul.f32 %v252, %v284
    %v290 = vmul.f32 %v253, %v284
    %v291 = vmul.f32 %v254, %v284
    %v292 = vmul.f32 %v255, %v284
    %v293 = vmul.f32 %v256, %v284
    %v294 = vmul.f32 %v257, %v284
    %v295 = vmul.f32 %v258, %v284
    %v296 = vmul.f32 %v259, %v284
    %v297 = vmul.f32 %v260, %v284
    %v298 = vmul.f32 %v261, %v284
    %v299 = vmul.f32 %v262, %v284
    %v300 = vmul.f32 %v263, %v284
    %v301 = vmul.f32 %v264, %v284
    %v302 = vmul.f32 %v265, %v284
    %v303 = vmul.f32 %v266, %v284
    %v304 = vmul.f32 %v267, %v284
    %v305 = vmul.f32 %v268, %v284
    %v306 = vmul.f32 %v269, %v284
    %v307 = vmul.f32 %v270, %v284
    %v308 = vmul.f32 %v271, %v284
    %v309 = vmul.f32 %v272, %v284
    %v310 = vmul.f32 %v273, %v284
    %v311 = vmul.f32 %v274, %v284
    %v312 = vmul.f32 %v275, %v284
    %v313 = vmul.f32 %v276, %v284
    %v314 = vmul.f32 %v277, %v284
    %v315 = vmul.f32 %v278, %v284
    %v316 = vmul.f32 %v279, %v284
    %v317 = vmul.f32 %v280, %v284
    %350 = vrot.lane.b32.xlu0 %v286, 64
    %v351 = vpop.permute.xlu0 %350
    %352 = vrot.lane.b32.xlu0 %v287, 64
    %v353 = vpop.permute.xlu0 %352
    %354 = vrot.lane.b32.xlu0 %v288, 64
    %v355 = vpop.permute.xlu0 %354
    %356 = vrot.lane.b32.xlu0 %v289, 64
    %v357 = vpop.permute.xlu0 %356
    %358 = vrot.lane.b32.xlu0 %v290, 64
    %v359 = vpop.permute.xlu0 %358
    %360 = vrot.lane.b32.xlu0 %v291, 64
    %v361 = vpop.permute.xlu0 %360
    %362 = vrot.lane.b32.xlu0 %v292, 64
    %v363 = vpop.permute.xlu0 %362
    %364 = vrot.lane.b32.xlu0 %v293, 64
    %v365 = vpop.permute.xlu0 %364
    %366 = vrot.lane.b32.xlu0 %v294, 64
    %v367 = vpop.permute.xlu0 %366
    %368 = vrot.lane.b32.xlu0 %v295, 64
    %v369 = vpop.permute.xlu0 %368
    %370 = vrot.lane.b32.xlu0 %v296, 64
    %v371 = vpop.permute.xlu0 %370
    %372 = vrot.lane.b32.xlu0 %v297, 64
    %v373 = vpop.permute.xlu0 %372
    %374 = vrot.lane.b32.xlu0 %v298, 64
    %v375 = vpop.permute.xlu0 %374
    %376 = vrot.lane.b32.xlu0 %v299, 64
    %v377 = vpop.permute.xlu0 %376
    %378 = vrot.lane.b32.xlu0 %v300, 64
    %v379 = vpop.permute.xlu0 %378
    %380 = vrot.lane.b32.xlu0 %v301, 64
    %v381 = vpop.permute.xlu0 %380
    %382 = vrot.lane.b32.xlu0 %v302, 64
    %v383 = vpop.permute.xlu0 %382
    %384 = vrot.lane.b32.xlu0 %v303, 64
    %v385 = vpop.permute.xlu0 %384
    %386 = vrot.lane.b32.xlu0 %v304, 64
    %v387 = vpop.permute.xlu0 %386
    %388 = vrot.lane.b32.xlu0 %v305, 64
    %v389 = vpop.permute.xlu0 %388
    %390 = vrot.lane.b32.xlu0 %v306, 64
    %v391 = vpop.permute.xlu0 %390
    %392 = vrot.lane.b32.xlu0 %v307, 64
    %v393 = vpop.permute.xlu0 %392
    %394 = vrot.lane.b32.xlu0 %v308, 64
    %v395 = vpop.permute.xlu0 %394
    %396 = vrot.lane.b32.xlu0 %v309, 64
    %v397 = vpop.permute.xlu0 %396
    %398 = vrot.lane.b32.xlu0 %v310, 64
    %v399 = vpop.permute.xlu0 %398
    %400 = vrot.lane.b32.xlu0 %v311, 64
    %v401 = vpop.permute.xlu0 %400
    %402 = vrot.lane.b32.xlu0 %v312, 64
    %v403 = vpop.permute.xlu0 %402
    %404 = vrot.lane.b32.xlu0 %v313, 64
    %v405 = vpop.permute.xlu0 %404
    %406 = vrot.lane.b32.xlu0 %v314, 64
    %v407 = vpop.permute.xlu0 %406
    %408 = vrot.lane.b32.xlu0 %v315, 64
    %v409 = vpop.permute.xlu0 %408
    %410 = vrot.lane.b32.xlu0 %v316, 64
    %v411 = vpop.permute.xlu0 %410
    %412 = vrot.lane.b32.xlu0 %v317, 64
    %v413 = vpop.permute.xlu0 %412
    %vm446 = vcmask 261120
    %v447 = vsel %vm446, %v351, 0.0
    %448 = vadd.xlane.f32.xlu0 %v447
    %v449 = vpop.xlane.xlu0 %448
    %v450 = vsel %vm446, %v353, 0.0
    %451 = vadd.xlane.f32.xlu0 %v450
    %v452 = vpop.xlane.xlu0 %451
    %v453 = vsel %vm446, %v355, 0.0
    %454 = vadd.xlane.f32.xlu0 %v453
    %v455 = vpop.xlane.xlu0 %454
    %v456 = vsel %vm446, %v357, 0.0
    %457 = vadd.xlane.f32.xlu0 %v456
    %v458 = vpop.xlane.xlu0 %457
    %v459 = vsel %vm446, %v359, 0.0
    %460 = vadd.xlane.f32.xlu0 %v459
    %v461 = vpop.xlane.xlu0 %460
    %v462 = vsel %vm446, %v361, 0.0
    %463 = vadd.xlane.f32.xlu0 %v462
    %v464 = vpop.xlane.xlu0 %463
    %v465 = vsel %vm446, %v363, 0.0
    %466 = vadd.xlane.f32.xlu0 %v465
    %v467 = vpop.xlane.xlu0 %466
    %v468 = vsel %vm446, %v365, 0.0
    %469 = vadd.xlane.f32.xlu0 %v468
    %v470 = vpop.xlane.xlu0 %469
    %v471 = vsel %vm446, %v367, 0.0
    %472 = vadd.xlane.f32.xlu0 %v471
    %v473 = vpop.xlane.xlu0 %472
    %v474 = vsel %vm446, %v369, 0.0
    %475 = vadd.xlane.f32.xlu0 %v474
    %v476 = vpop.xlane.xlu0 %475
    %v477 = vsel %vm446, %v371, 0.0
    %478 = vadd.xlane.f32.xlu0 %v477
    %v479 = vpop.xlane.xlu0 %478
    %v480 = vsel %vm446, %v373, 0.0
    %481 = vadd.xlane.f32.xlu0 %v480
    %v482 = vpop.xlane.xlu0 %481
    %v483 = vsel %vm446, %v375, 0.0
    %484 = vadd.xlane.f32.xlu0 %v483
    %v485 = vpop.xlane.xlu0 %484
    %v486 = vsel %vm446, %v377, 0.0
    %487 = vadd.xlane.f32.xlu0 %v486
    %v488 = vpop.xlane.xlu0 %487
    %v489 = vsel %vm446, %v379, 0.0
    %490 = vadd.xlane.f32.xlu0 %v489
    %v491 = vpop.xlane.xlu0 %490
    %v492 = vsel %vm446, %v381, 0.0
    %493 = vadd.xlane.f32.xlu0 %v492
    %v494 = vpop.xlane.xlu0 %493
    %v495 = vsel %vm446, %v383, 0.0
    %496 = vadd.xlane.f32.xlu0 %v495
    %v497 = vpop.xlane.xlu0 %496
    %v498 = vsel %vm446, %v385, 0.0
    %499 = vadd.xlane.f32.xlu0 %v498
    %v500 = vpop.xlane.xlu0 %499
    %v501 = vsel %vm446, %v387, 0.0
    %502 = vadd.xlane.f32.xlu0 %v501
    %v503 = vpop.xlane.xlu0 %502
    %v504 = vsel %vm446, %v389, 0.0
    %505 = vadd.xlane.f32.xlu0 %v504
    %v506 = vpop.xlane.xlu0 %505
    %v507 = vsel %vm446, %v391, 0.0
    %508 = vadd.xlane.f32.xlu0 %v507
    %v509 = vpop.xlane.xlu0 %508
    %v510 = vsel %vm446, %v393, 0.0
    %511 = vadd.xlane.f32.xlu0 %v510
    %v512 = vpop.xlane.xlu0 %511
    %v513 = vsel %vm446, %v395, 0.0
    %514 = vadd.xlane.f32.xlu0 %v513
    %v515 = vpop.xlane.xlu0 %514
    %v516 = vsel %vm446, %v397, 0.0
    %517 = vadd.xlane.f32.xlu0 %v516
    %v518 = vpop.xlane.xlu0 %517
    %v519 = vsel %vm446, %v399, 0.0
    %520 = vadd.xlane.f32.xlu0 %v519
    %v521 = vpop.xlane.xlu0 %520
    %v522 = vsel %vm446, %v401, 0.0
    %523 = vadd.xlane.f32.xlu0 %v522
    %v524 = vpop.xlane.xlu0 %523
    %v525 = vsel %vm446, %v403, 0.0
    %526 = vadd.xlane.f32.xlu0 %v525
    %v527 = vpop.xlane.xlu0 %526
    %v528 = vsel %vm446, %v405, 0.0
    %529 = vadd.xlane.f32.xlu0 %v528
    %v530 = vpop.xlane.xlu0 %529
    %v531 = vsel %vm446, %v407, 0.0
    %532 = vadd.xlane.f32.xlu0 %v531
    %v533 = vpop.xlane.xlu0 %532
    %v534 = vsel %vm446, %v409, 0.0
    %535 = vadd.xlane.f32.xlu0 %v534
    %v536 = vpop.xlane.xlu0 %535
    %v537 = vsel %vm446, %v411, 0.0
    %538 = vadd.xlane.f32.xlu0 %v537
    %v539 = vpop.xlane.xlu0 %538
    %v540 = vsel %vm446, %v413, 0.0
    %541 = vadd.xlane.f32.xlu0 %v540
    %v542 = vpop.xlane.xlu0 %541
    %v545 = vperm.slane %v61, 0
    %v546 = vlaneseq
    %v547 = vshrl.u32 %v546, 7
    %549 = vset.pattern.permute.xlu0 %v547
    %550 = vperm.xlu0 %549, %v545
    %v551 = vpop.permute.xlu0 %550
    %v552 = vlaneseq
    %v553 = vshrl.u32 %v552, 7
    %v554 = vadd.s32 %v553, 8
    %555 = vset.pattern.permute.xlu0 %v554
    %556 = vperm.xlu0 %555, %v545
    %v557 = vpop.permute.xlu0 %556
    %v558 = vperm.slane %v61, 1
    %v559 = vlaneseq
    %v560 = vshrl.u32 %v559, 7
    %562 = vset.pattern.permute.xlu0 %v560
    %563 = vperm.xlu0 %562, %v558
    %v564 = vpop.permute.xlu0 %563
    %v565 = vlaneseq
    %v566 = vshrl.u32 %v565, 7
    %v567 = vadd.s32 %v566, 8
    %568 = vset.pattern.permute.xlu0 %v567
    %569 = vperm.xlu0 %568, %v558
    %v570 = vpop.permute.xlu0 %569
    %v571 = vperm.slane %v61, 2
    %v572 = vlaneseq
    %v573 = vshrl.u32 %v572, 7
    %575 = vset.pattern.permute.xlu0 %v573
    %576 = vperm.xlu0 %575, %v571
    %v577 = vpop.permute.xlu0 %576
    %v578 = vlaneseq
    %v579 = vshrl.u32 %v578, 7
    %v580 = vadd.s32 %v579, 8
    %581 = vset.pattern.permute.xlu0 %v580
    %582 = vperm.xlu0 %581, %v571
    %v583 = vpop.permute.xlu0 %582
    %v584 = vperm.slane %v61, 3
    %v585 = vlaneseq
    %v586 = vshrl.u32 %v585, 7
    %588 = vset.pattern.permute.xlu0 %v586
    %589 = vperm.xlu0 %588, %v584
    %v590 = vpop.permute.xlu0 %589
    %v591 = vlaneseq
    %v592 = vshrl.u32 %v591, 7
    %v593 = vadd.s32 %v592, 8
    %594 = vset.pattern.permute.xlu0 %v593
    %595 = vperm.xlu0 %594, %v584
    %v596 = vpop.permute.xlu0 %595
    %v597 = vperm.slane %v61, 4
    %v598 = vlaneseq
    %v599 = vshrl.u32 %v598, 7
    %601 = vset.pattern.permute.xlu0 %v599
    %602 = vperm.xlu0 %601, %v597
    %v603 = vpop.permute.xlu0 %602
    %v604 = vlaneseq
    %v605 = vshrl.u32 %v604, 7
    %v606 = vadd.s32 %v605, 8
    %607 = vset.pattern.permute.xlu0 %v606
    %608 = vperm.xlu0 %607, %v597
    %v609 = vpop.permute.xlu0 %608
    %v610 = vperm.slane %v61, 5
    %v611 = vlaneseq
    %v612 = vshrl.u32 %v611, 7
    %614 = vset.pattern.permute.xlu0 %v612
    %615 = vperm.xlu0 %614, %v610
    %v616 = vpop.permute.xlu0 %615
    %v617 = vlaneseq
    %v618 = vshrl.u32 %v617, 7
    %v619 = vadd.s32 %v618, 8
    %620 = vset.pattern.permute.xlu0 %v619
    %621 = vperm.xlu0 %620, %v610
    %v622 = vpop.permute.xlu0 %621
    %v623 = vperm.slane %v61, 6
    %v624 = vlaneseq
    %v625 = vshrl.u32 %v624, 7
    %627 = vset.pattern.permute.xlu0 %v625
    %628 = vperm.xlu0 %627, %v623
    %v629 = vpop.permute.xlu0 %628
    %v630 = vlaneseq
    %v631 = vshrl.u32 %v630, 7
    %v632 = vadd.s32 %v631, 8
    %633 = vset.pattern.permute.xlu0 %v632
    %634 = vperm.xlu0 %633, %v623
    %v635 = vpop.permute.xlu0 %634
    %v636 = vperm.slane %v61, 7
    %v637 = vlaneseq
    %v638 = vshrl.u32 %v637, 7
    %640 = vset.pattern.permute.xlu0 %v638
    %641 = vperm.xlu0 %640, %v636
    %v642 = vpop.permute.xlu0 %641
    %v643 = vlaneseq
    %v644 = vshrl.u32 %v643, 7
    %v645 = vadd.s32 %v644, 8
    %646 = vset.pattern.permute.xlu0 %v645
    %647 = vperm.xlu0 %646, %v636
    %v648 = vpop.permute.xlu0 %647
    %v649 = vperm.slane %v62, 0
    %v650 = vlaneseq
    %v651 = vshrl.u32 %v650, 7
    %653 = vset.pattern.permute.xlu0 %v651
    %654 = vperm.xlu0 %653, %v649
    %v655 = vpop.permute.xlu0 %654
    %v656 = vlaneseq
    %v657 = vshrl.u32 %v656, 7
    %v658 = vadd.s32 %v657, 8
    %659 = vset.pattern.permute.xlu0 %v658
    %660 = vperm.xlu0 %659, %v649
    %v661 = vpop.permute.xlu0 %660
    %v662 = vperm.slane %v62, 1
    %v663 = vlaneseq
    %v664 = vshrl.u32 %v663, 7
    %666 = vset.pattern.permute.xlu0 %v664
    %667 = vperm.xlu0 %666, %v662
    %v668 = vpop.permute.xlu0 %667
    %v669 = vlaneseq
    %v670 = vshrl.u32 %v669, 7
    %v671 = vadd.s32 %v670, 8
    %672 = vset.pattern.permute.xlu0 %v671
    %673 = vperm.xlu0 %672, %v662
    %v674 = vpop.permute.xlu0 %673
    %v675 = vperm.slane %v62, 2
    %v676 = vlaneseq
    %v677 = vshrl.u32 %v676, 7
    %679 = vset.pattern.permute.xlu0 %v677
    %680 = vperm.xlu0 %679, %v675
    %v681 = vpop.permute.xlu0 %680
    %v682 = vlaneseq
    %v683 = vshrl.u32 %v682, 7
    %v684 = vadd.s32 %v683, 8
    %685 = vset.pattern.permute.xlu0 %v684
    %686 = vperm.xlu0 %685, %v675
    %v687 = vpop.permute.xlu0 %686
    %v688 = vperm.slane %v62, 3
    %v689 = vlaneseq
    %v690 = vshrl.u32 %v689, 7
    %692 = vset.pattern.permute.xlu0 %v690
    %693 = vperm.xlu0 %692, %v688
    %v694 = vpop.permute.xlu0 %693
    %v695 = vlaneseq
    %v696 = vshrl.u32 %v695, 7
    %v697 = vadd.s32 %v696, 8
    %698 = vset.pattern.permute.xlu0 %v697
    %699 = vperm.xlu0 %698, %v688
    %v700 = vpop.permute.xlu0 %699
    %v701 = vperm.slane %v62, 4
    %v702 = vlaneseq
    %v703 = vshrl.u32 %v702, 7
    %705 = vset.pattern.permute.xlu0 %v703
    %706 = vperm.xlu0 %705, %v701
    %v707 = vpop.permute.xlu0 %706
    %v708 = vlaneseq
    %v709 = vshrl.u32 %v708, 7
    %v710 = vadd.s32 %v709, 8
    %711 = vset.pattern.permute.xlu0 %v710
    %712 = vperm.xlu0 %711, %v701
    %v713 = vpop.permute.xlu0 %712
    %v714 = vperm.slane %v62, 5
    %v715 = vlaneseq
    %v716 = vshrl.u32 %v715, 7
    %718 = vset.pattern.permute.xlu0 %v716
    %719 = vperm.xlu0 %718, %v714
    %v720 = vpop.permute.xlu0 %719
    %v721 = vlaneseq
    %v722 = vshrl.u32 %v721, 7
    %v723 = vadd.s32 %v722, 8
    %724 = vset.pattern.permute.xlu0 %v723
    %725 = vperm.xlu0 %724, %v714
    %v726 = vpop.permute.xlu0 %725
    %v727 = vperm.slane %v62, 6
    %v728 = vlaneseq
    %v729 = vshrl.u32 %v728, 7
    %731 = vset.pattern.permute.xlu0 %v729
    %732 = vperm.xlu0 %731, %v727
    %v733 = vpop.permute.xlu0 %732
    %v734 = vlaneseq
    %v735 = vshrl.u32 %v734, 7
    %v736 = vadd.s32 %v735, 8
    %737 = vset.pattern.permute.xlu0 %v736
    %738 = vperm.xlu0 %737, %v727
    %v739 = vpop.permute.xlu0 %738
    %v740 = vperm.slane %v62, 7
    %v741 = vlaneseq
    %v742 = vshrl.u32 %v741, 7
    %744 = vset.pattern.permute.xlu0 %v742
    %745 = vperm.xlu0 %744, %v740
    %v746 = vpop.permute.xlu0 %745
    %v747 = vlaneseq
    %v748 = vshrl.u32 %v747, 7
    %v749 = vadd.s32 %v748, 8
    %750 = vset.pattern.permute.xlu0 %v749
    %751 = vperm.xlu0 %750, %v740
    %v752 = vpop.permute.xlu0 %751
    %v785 = vadd.f32 %v449, %v551
    %v786 = vadd.f32 %v452, %v557
    %v787 = vadd.f32 %v455, %v564
    %v788 = vadd.f32 %v458, %v570
    %v789 = vadd.f32 %v461, %v577
    %v790 = vadd.f32 %v464, %v583
    %v791 = vadd.f32 %v467, %v590
    %v792 = vadd.f32 %v470, %v596
    %v793 = vadd.f32 %v473, %v603
    %v794 = vadd.f32 %v476, %v609
    %v795 = vadd.f32 %v479, %v616
    %v796 = vadd.f32 %v482, %v622
    %v797 = vadd.f32 %v485, %v629
    %v798 = vadd.f32 %v488, %v635
    %v799 = vadd.f32 %v491, %v642
    %v800 = vadd.f32 %v494, %v648
    %v801 = vadd.f32 %v497, %v655
    %v802 = vadd.f32 %v500, %v661
    %v803 = vadd.f32 %v503, %v668
    %v804 = vadd.f32 %v506, %v674
    %v805 = vadd.f32 %v509, %v681
    %v806 = vadd.f32 %v512, %v687
    %v807 = vadd.f32 %v515, %v694
    %v808 = vadd.f32 %v518, %v700
    %v809 = vadd.f32 %v521, %v707
    %v810 = vadd.f32 %v524, %v713
    %v811 = vadd.f32 %v527, %v720
    %v812 = vadd.f32 %v530, %v726
    %v813 = vadd.f32 %v533, %v733
    %v814 = vadd.f32 %v536, %v739
    %v815 = vadd.f32 %v539, %v746
    %v816 = vadd.f32 %v542, %v752
    %849 = vset.pattern.permute.xlu0 0
    %850 = vperm.xlu0 %849, %v785
    %v851 = vpop.permute.xlu0 %850
    %852 = vset.pattern.permute.xlu0 0
    %853 = vperm.xlu0 %852, %v786
    %v854 = vpop.permute.xlu0 %853
    %855 = vset.pattern.permute.xlu0 0
    %856 = vperm.xlu0 %855, %v787
    %v857 = vpop.permute.xlu0 %856
    %858 = vset.pattern.permute.xlu0 0
    %859 = vperm.xlu0 %858, %v788
    %v860 = vpop.permute.xlu0 %859
    %861 = vset.pattern.permute.xlu0 0
    %862 = vperm.xlu0 %861, %v789
    %v863 = vpop.permute.xlu0 %862
    %864 = vset.pattern.permute.xlu0 0
    %865 = vperm.xlu0 %864, %v790
    %v866 = vpop.permute.xlu0 %865
    %867 = vset.pattern.permute.xlu0 0
    %868 = vperm.xlu0 %867, %v791
    %v869 = vpop.permute.xlu0 %868
    %870 = vset.pattern.permute.xlu0 0
    %871 = vperm.xlu0 %870, %v792
    %v872 = vpop.permute.xlu0 %871
    %873 = vset.pattern.permute.xlu0 0
    %874 = vperm.xlu0 %873, %v793
    %v875 = vpop.permute.xlu0 %874
    %876 = vset.pattern.permute.xlu0 0
    %877 = vperm.xlu0 %876, %v794
    %v878 = vpop.permute.xlu0 %877
    %879 = vset.pattern.permute.xlu0 0
    %880 = vperm.xlu0 %879, %v795
    %v881 = vpop.permute.xlu0 %880
    %882 = vset.pattern.permute.xlu0 0
    %883 = vperm.xlu0 %882, %v796
    %v884 = vpop.permute.xlu0 %883
    %885 = vset.pattern.permute.xlu0 0
    %886 = vperm.xlu0 %885, %v797
    %v887 = vpop.permute.xlu0 %886
    %888 = vset.pattern.permute.xlu0 0
    %889 = vperm.xlu0 %888, %v798
    %v890 = vpop.permute.xlu0 %889
    %891 = vset.pattern.permute.xlu0 0
    %892 = vperm.xlu0 %891, %v799
    %v893 = vpop.permute.xlu0 %892
    %894 = vset.pattern.permute.xlu0 0
    %895 = vperm.xlu0 %894, %v800
    %v896 = vpop.permute.xlu0 %895
    %897 = vset.pattern.permute.xlu0 0
    %898 = vperm.xlu0 %897, %v801
    %v899 = vpop.permute.xlu0 %898
    %900 = vset.pattern.permute.xlu0 0
    %901 = vperm.xlu0 %900, %v802
    %v902 = vpop.permute.xlu0 %901
    %903 = vset.pattern.permute.xlu0 0
    %904 = vperm.xlu0 %903, %v803
    %v905 = vpop.permute.xlu0 %904
    %906 = vset.pattern.permute.xlu0 0
    %907 = vperm.xlu0 %906, %v804
    %v908 = vpop.permute.xlu0 %907
    %909 = vset.pattern.permute.xlu0 0
    %910 = vperm.xlu0 %909, %v805
    %v911 = vpop.permute.xlu0 %910
    %912 = vset.pattern.permute.xlu0 0
    %913 = vperm.xlu0 %912, %v806
    %v914 = vpop.permute.xlu0 %913
    %915 = vset.pattern.permute.xlu0 0
    %916 = vperm.xlu0 %915, %v807
    %v917 = vpop.permute.xlu0 %916
    %918 = vset.pattern.permute.xlu0 0
    %919 = vperm.xlu0 %918, %v808
    %v920 = vpop.permute.xlu0 %919
    %921 = vset.pattern.permute.xlu0 0
    %922 = vperm.xlu0 %921, %v809
    %v923 = vpop.permute.xlu0 %922
    %924 = vset.pattern.permute.xlu0 0
    %925 = vperm.xlu0 %924, %v810
    %v926 = vpop.permute.xlu0 %925
    %927 = vset.pattern.permute.xlu0 0
    %928 = vperm.xlu0 %927, %v811
    %v929 = vpop.permute.xlu0 %928
    %930 = vset.pattern.permute.xlu0 0
    %931 = vperm.xlu0 %930, %v812
    %v932 = vpop.permute.xlu0 %931
    %933 = vset.pattern.permute.xlu0 0
    %934 = vperm.xlu0 %933, %v813
    %v935 = vpop.permute.xlu0 %934
    %936 = vset.pattern.permute.xlu0 0
    %937 = vperm.xlu0 %936, %v814
    %v938 = vpop.permute.xlu0 %937
    %939 = vset.pattern.permute.xlu0 0
    %940 = vperm.xlu0 %939, %v815
    %v941 = vpop.permute.xlu0 %940
    %942 = vset.pattern.permute.xlu0 0
    %943 = vperm.xlu0 %942, %v816
    %v944 = vpop.permute.xlu0 %943
    %v945 = vlaneseq
    %v946 = vand.u32 %v945, 127
    %v947 = vperm.slane %v851, %v946
    %v948 = vadd.s32 %v946, 4294967288
    %v949 = vperm.slane %v854, %v948
    %vm950 = vcmask 130112
    %v951 = vsel %vm950, %v949, %v947
    %v952 = vperm.slane %v857, %v946
    %v953 = vperm.slane %v860, %v948
    %v954 = vsel %vm950, %v953, %v952
    %v955 = vperm.slane %v863, %v946
    %v956 = vperm.slane %v866, %v948
    %v957 = vsel %vm950, %v956, %v955
    %v958 = vperm.slane %v869, %v946
    %v959 = vperm.slane %v872, %v948
    %v960 = vsel %vm950, %v959, %v958
    %v961 = vperm.slane %v875, %v946
    %v962 = vperm.slane %v878, %v948
    %v963 = vsel %vm950, %v962, %v961
    %v964 = vperm.slane %v881, %v946
    %v965 = vperm.slane %v884, %v948
    %v966 = vsel %vm950, %v965, %v964
    %v967 = vperm.slane %v887, %v946
    %v968 = vperm.slane %v890, %v948
    %v969 = vsel %vm950, %v968, %v967
    %v970 = vperm.slane %v893, %v946
    %v971 = vperm.slane %v896, %v948
    %v972 = vsel %vm950, %v971, %v970
    %v973 = vperm.slane %v899, %v946
    %v974 = vperm.slane %v902, %v948
    %v975 = vsel %vm950, %v974, %v973
    %v976 = vperm.slane %v905, %v946
    %v977 = vperm.slane %v908, %v948
    %v978 = vsel %vm950, %v977, %v976
    %v979 = vperm.slane %v911, %v946
    %v980 = vperm.slane %v914, %v948
    %v981 = vsel %vm950, %v980, %v979
    %v982 = vperm.slane %v917, %v946
    %v983 = vperm.slane %v920, %v948
    %v984 = vsel %vm950, %v983, %v982
    %v985 = vperm.slane %v923, %v946
    %v986 = vperm.slane %v926, %v948
    %v987 = vsel %vm950, %v986, %v985
    %v988 = vperm.slane %v929, %v946
    %v989 = vperm.slane %v932, %v948
    %v990 = vsel %vm950, %v989, %v988
    %v991 = vperm.slane %v935, %v946
    %v992 = vperm.slane %v938, %v948
    %v993 = vsel %vm950, %v992, %v991
    %v994 = vperm.slane %v941, %v946
    %v995 = vperm.slane %v944, %v948
    %v996 = vsel %vm950, %v995, %v994
    %vm997 = vcmask 1041409
    %v998 = vsel %vm997, %v954, %v951
    %vm999 = vcmask 1042434
    %v1000 = vsel %vm999, %v957, %v998
    %vm1001 = vcmask 1043459
    %v1002 = vsel %vm1001, %v960, %v1000
    %vm1003 = vcmask 1044484
    %v1004 = vsel %vm1003, %v963, %v1002
    %vm1005 = vcmask 1045509
    %v1006 = vsel %vm1005, %v966, %v1004
    %vm1007 = vcmask 1046534
    %v1008 = vsel %vm1007, %v969, %v1006
    %vm1009 = vcmask 1047559
    %v1010 = vsel %vm1009, %v972, %v1008
    %v1011 = vsel %vm997, %v978, %v975
    %v1012 = vsel %vm999, %v981, %v1011
    %v1013 = vsel %vm1001, %v984, %v1012
    %v1014 = vsel %vm1003, %v987, %v1013
    %v1015 = vsel %vm1005, %v990, %v1014
    %v1016 = vsel %vm1007, %v993, %v1015
    %v1017 = vsel %vm1009, %v996, %v1016
    %v1020 = vsel %vm69, %v1010, -inf
    %1021 = vmax.xlane.f32.xlu0 %v1020
    %v1022 = vpop.xlane.xlu0 %1021
    %v1023 = vsel %vm69, %v1017, -inf
    %1024 = vmax.xlane.f32.xlu0 %v1023
    %v1025 = vpop.xlane.xlu0 %1024
    %v1028 = vperm.slane %v1022, 0
    %v1029 = vperm.slane %v1022, 1
    %v1030 = vperm.slane %v1022, 2
    %v1031 = vperm.slane %v1022, 3
    %v1032 = vperm.slane %v1022, 4
    %v1033 = vperm.slane %v1022, 5
    %v1034 = vperm.slane %v1022, 6
    %v1035 = vperm.slane %v1022, 7
    %v1036 = vperm.slane %v1025, 0
    %v1037 = vperm.slane %v1025, 1
    %v1038 = vperm.slane %v1025, 2
    %v1039 = vperm.slane %v1025, 3
    %v1040 = vperm.slane %v1025, 4
    %v1041 = vperm.slane %v1025, 5
    %v1042 = vperm.slane %v1025, 6
    %v1043 = vperm.slane %v1025, 7
    %v1060 = vsub.f32 %v785, %v1028
    %v1061 = vsub.f32 %v786, %v1028
    %v1062 = vsub.f32 %v787, %v1029
    %v1063 = vsub.f32 %v788, %v1029
    %v1064 = vsub.f32 %v789, %v1030
    %v1065 = vsub.f32 %v790, %v1030
    %v1066 = vsub.f32 %v791, %v1031
    %v1067 = vsub.f32 %v792, %v1031
    %v1068 = vsub.f32 %v793, %v1032
    %v1069 = vsub.f32 %v794, %v1032
    %v1070 = vsub.f32 %v795, %v1033
    %v1071 = vsub.f32 %v796, %v1033
    %v1072 = vsub.f32 %v797, %v1034
    %v1073 = vsub.f32 %v798, %v1034
    %v1074 = vsub.f32 %v799, %v1035
    %v1075 = vsub.f32 %v800, %v1035
    %v1076 = vsub.f32 %v801, %v1036
    %v1077 = vsub.f32 %v802, %v1036
    %v1078 = vsub.f32 %v803, %v1037
    %v1079 = vsub.f32 %v804, %v1037
    %v1080 = vsub.f32 %v805, %v1038
    %v1081 = vsub.f32 %v806, %v1038
    %v1082 = vsub.f32 %v807, %v1039
    %v1083 = vsub.f32 %v808, %v1039
    %v1084 = vsub.f32 %v809, %v1040
    %v1085 = vsub.f32 %v810, %v1040
    %v1086 = vsub.f32 %v811, %v1041
    %v1087 = vsub.f32 %v812, %v1041
    %v1088 = vsub.f32 %v813, %v1042
    %v1089 = vsub.f32 %v814, %v1042
    %v1090 = vsub.f32 %v815, %v1043
    %v1091 = vsub.f32 %v816, %v1043
    %v1092 = vmul.f32 %v1060, 1.442695
    %v1093 = vpow.pop %v1092
    %v1094 = vmul.f32 %v1061, 1.442695
    %v1095 = vpow.pop %v1094
    %v1096 = vmul.f32 %v1062, 1.442695
    %v1097 = vpow.pop %v1096
    %v1098 = vmul.f32 %v1063, 1.442695
    %v1099 = vpow.pop %v1098
    %v1100 = vmul.f32 %v1064, 1.442695
    %v1101 = vpow.pop %v1100
    %v1102 = vmul.f32 %v1065, 1.442695
    %v1103 = vpow.pop %v1102
    %v1104 = vmul.f32 %v1066, 1.442695
    %v1105 = vpow.pop %v1104
    %v1106 = vmul.f32 %v1067, 1.442695
    %v1107 = vpow.pop %v1106
    %v1108 = vmul.f32 %v1068, 1.442695
    %v1109 = vpow.pop %v1108
    %v1110 = vmul.f32 %v1069, 1.442695
    %v1111 = vpow.pop %v1110
    %v1112 = vmul.f32 %v1070, 1.442695
    %v1113 = vpow.pop %v1112
    %v1114 = vmul.f32 %v1071, 1.442695
    %v1115 = vpow.pop %v1114
    %v1116 = vmul.f32 %v1072, 1.442695
    %v1117 = vpow.pop %v1116
    %v1118 = vmul.f32 %v1073, 1.442695
    %v1119 = vpow.pop %v1118
    %v1120 = vmul.f32 %v1074, 1.442695
    %v1121 = vpow.pop %v1120
    %v1122 = vmul.f32 %v1075, 1.442695
    %v1123 = vpow.pop %v1122
    %v1124 = vmul.f32 %v1076, 1.442695
    %v1125 = vpow.pop %v1124
    %v1126 = vmul.f32 %v1077, 1.442695
    %v1127 = vpow.pop %v1126
    %v1128 = vmul.f32 %v1078, 1.442695
    %v1129 = vpow.pop %v1128
    %v1130 = vmul.f32 %v1079, 1.442695
    %v1131 = vpow.pop %v1130
    %v1132 = vmul.f32 %v1080, 1.442695
    %v1133 = vpow.pop %v1132
    %v1134 = vmul.f32 %v1081, 1.442695
    %v1135 = vpow.pop %v1134
    %v1136 = vmul.f32 %v1082, 1.442695
    %v1137 = vpow.pop %v1136
    %v1138 = vmul.f32 %v1083, 1.442695
    %v1139 = vpow.pop %v1138
    %v1140 = vmul.f32 %v1084, 1.442695
    %v1141 = vpow.pop %v1140
    %v1142 = vmul.f32 %v1085, 1.442695
    %v1143 = vpow.pop %v1142
    %v1144 = vmul.f32 %v1086, 1.442695
    %v1145 = vpow.pop %v1144
    %v1146 = vmul.f32 %v1087, 1.442695
    %v1147 = vpow.pop %v1146
    %v1148 = vmul.f32 %v1088, 1.442695
    %v1149 = vpow.pop %v1148
    %v1150 = vmul.f32 %v1089, 1.442695
    %v1151 = vpow.pop %v1150
    %v1152 = vmul.f32 %v1090, 1.442695
    %v1153 = vpow.pop %v1152
    %v1154 = vmul.f32 %v1091, 1.442695
    %v1155 = vpow.pop %v1154
    %1188 = vset.pattern.permute.xlu0 0
    %1189 = vperm.xlu0 %1188, %v1093
    %v1190 = vpop.permute.xlu0 %1189
    %1191 = vset.pattern.permute.xlu0 0
    %1192 = vperm.xlu0 %1191, %v1095
    %v1193 = vpop.permute.xlu0 %1192
    %1194 = vset.pattern.permute.xlu0 0
    %1195 = vperm.xlu0 %1194, %v1097
    %v1196 = vpop.permute.xlu0 %1195
    %1197 = vset.pattern.permute.xlu0 0
    %1198 = vperm.xlu0 %1197, %v1099
    %v1199 = vpop.permute.xlu0 %1198
    %1200 = vset.pattern.permute.xlu0 0
    %1201 = vperm.xlu0 %1200, %v1101
    %v1202 = vpop.permute.xlu0 %1201
    %1203 = vset.pattern.permute.xlu0 0
    %1204 = vperm.xlu0 %1203, %v1103
    %v1205 = vpop.permute.xlu0 %1204
    %1206 = vset.pattern.permute.xlu0 0
    %1207 = vperm.xlu0 %1206, %v1105
    %v1208 = vpop.permute.xlu0 %1207
    %1209 = vset.pattern.permute.xlu0 0
    %1210 = vperm.xlu0 %1209, %v1107
    %v1211 = vpop.permute.xlu0 %1210
    %1212 = vset.pattern.permute.xlu0 0
    %1213 = vperm.xlu0 %1212, %v1109
    %v1214 = vpop.permute.xlu0 %1213
    %1215 = vset.pattern.permute.xlu0 0
    %1216 = vperm.xlu0 %1215, %v1111
    %v1217 = vpop.permute.xlu0 %1216
    %1218 = vset.pattern.permute.xlu0 0
    %1219 = vperm.xlu0 %1218, %v1113
    %v1220 = vpop.permute.xlu0 %1219
    %1221 = vset.pattern.permute.xlu0 0
    %1222 = vperm.xlu0 %1221, %v1115
    %v1223 = vpop.permute.xlu0 %1222
    %1224 = vset.pattern.permute.xlu0 0
    %1225 = vperm.xlu0 %1224, %v1117
    %v1226 = vpop.permute.xlu0 %1225
    %1227 = vset.pattern.permute.xlu0 0
    %1228 = vperm.xlu0 %1227, %v1119
    %v1229 = vpop.permute.xlu0 %1228
    %1230 = vset.pattern.permute.xlu0 0
    %1231 = vperm.xlu0 %1230, %v1121
    %v1232 = vpop.permute.xlu0 %1231
    %1233 = vset.pattern.permute.xlu0 0
    %1234 = vperm.xlu0 %1233, %v1123
    %v1235 = vpop.permute.xlu0 %1234
    %1236 = vset.pattern.permute.xlu0 0
    %1237 = vperm.xlu0 %1236, %v1125
    %v1238 = vpop.permute.xlu0 %1237
    %1239 = vset.pattern.permute.xlu0 0
    %1240 = vperm.xlu0 %1239, %v1127
    %v1241 = vpop.permute.xlu0 %1240
    %1242 = vset.pattern.permute.xlu0 0
    %1243 = vperm.xlu0 %1242, %v1129
    %v1244 = vpop.permute.xlu0 %1243
    %1245 = vset.pattern.permute.xlu0 0
    %1246 = vperm.xlu0 %1245, %v1131
    %v1247 = vpop.permute.xlu0 %1246
    %1248 = vset.pattern.permute.xlu0 0
    %1249 = vperm.xlu0 %1248, %v1133
    %v1250 = vpop.permute.xlu0 %1249
    %1251 = vset.pattern.permute.xlu0 0
    %1252 = vperm.xlu0 %1251, %v1135
    %v1253 = vpop.permute.xlu0 %1252
    %1254 = vset.pattern.permute.xlu0 0
    %1255 = vperm.xlu0 %1254, %v1137
    %v1256 = vpop.permute.xlu0 %1255
    %1257 = vset.pattern.permute.xlu0 0
    %1258 = vperm.xlu0 %1257, %v1139
    %v1259 = vpop.permute.xlu0 %1258
    %1260 = vset.pattern.permute.xlu0 0
    %1261 = vperm.xlu0 %1260, %v1141
    %v1262 = vpop.permute.xlu0 %1261
    %1263 = vset.pattern.permute.xlu0 0
    %1264 = vperm.xlu0 %1263, %v1143
    %v1265 = vpop.permute.xlu0 %1264
    %1266 = vset.pattern.permute.xlu0 0
    %1267 = vperm.xlu0 %1266, %v1145
    %v1268 = vpop.permute.xlu0 %1267
    %1269 = vset.pattern.permute.xlu0 0
    %1270 = vperm.xlu0 %1269, %v1147
    %v1271 = vpop.permute.xlu0 %1270
    %1272 = vset.pattern.permute.xlu0 0
    %1273 = vperm.xlu0 %1272, %v1149
    %v1274 = vpop.permute.xlu0 %1273
    %1275 = vset.pattern.permute.xlu0 0
    %1276 = vperm.xlu0 %1275, %v1151
    %v1277 = vpop.permute.xlu0 %1276
    %1278 = vset.pattern.permute.xlu0 0
    %1279 = vperm.xlu0 %1278, %v1153
    %v1280 = vpop.permute.xlu0 %1279
    %1281 = vset.pattern.permute.xlu0 0
    %1282 = vperm.xlu0 %1281, %v1155
    %v1283 = vpop.permute.xlu0 %1282
    %v1284 = vperm.slane %v1190, %v946
    %v1285 = vperm.slane %v1193, %v948
    %v1286 = vsel %vm950, %v1285, %v1284
    %v1287 = vperm.slane %v1196, %v946
    %v1288 = vperm.slane %v1199, %v948
    %v1289 = vsel %vm950, %v1288, %v1287
    %v1290 = vperm.slane %v1202, %v946
    %v1291 = vperm.slane %v1205, %v948
    %v1292 = vsel %vm950, %v1291, %v1290
    %v1293 = vperm.slane %v1208, %v946
    %v1294 = vperm.slane %v1211, %v948
    %v1295 = vsel %vm950, %v1294, %v1293
    %v1296 = vperm.slane %v1214, %v946
    %v1297 = vperm.slane %v1217, %v948
    %v1298 = vsel %vm950, %v1297, %v1296
    %v1299 = vperm.slane %v1220, %v946
    %v1300 = vperm.slane %v1223, %v948
    %v1301 = vsel %vm950, %v1300, %v1299
    %v1302 = vperm.slane %v1226, %v946
    %v1303 = vperm.slane %v1229, %v948
    %v1304 = vsel %vm950, %v1303, %v1302
    %v1305 = vperm.slane %v1232, %v946
    %v1306 = vperm.slane %v1235, %v948
    %v1307 = vsel %vm950, %v1306, %v1305
    %v1308 = vperm.slane %v1238, %v946
    %v1309 = vperm.slane %v1241, %v948
    %v1310 = vsel %vm950, %v1309, %v1308
    %v1311 = vperm.slane %v1244, %v946
    %v1312 = vperm.slane %v1247, %v948
    %v1313 = vsel %vm950, %v1312, %v1311
    %v1314 = vperm.slane %v1250, %v946
    %v1315 = vperm.slane %v1253, %v948
    %v1316 = vsel %vm950, %v1315, %v1314
    %v1317 = vperm.slane %v1256, %v946
    %v1318 = vperm.slane %v1259, %v948
    %v1319 = vsel %vm950, %v1318, %v1317
    %v1320 = vperm.slane %v1262, %v946
    %v1321 = vperm.slane %v1265, %v948
    %v1322 = vsel %vm950, %v1321, %v1320
    %v1323 = vperm.slane %v1268, %v946
    %v1324 = vperm.slane %v1271, %v948
    %v1325 = vsel %vm950, %v1324, %v1323
    %v1326 = vperm.slane %v1274, %v946
    %v1327 = vperm.slane %v1277, %v948
    %v1328 = vsel %vm950, %v1327, %v1326
    %v1329 = vperm.slane %v1280, %v946
    %v1330 = vperm.slane %v1283, %v948
    %v1331 = vsel %vm950, %v1330, %v1329
    %v1332 = vsel %vm997, %v1289, %v1286
    %v1333 = vsel %vm999, %v1292, %v1332
    %v1334 = vsel %vm1001, %v1295, %v1333
    %v1335 = vsel %vm1003, %v1298, %v1334
    %v1336 = vsel %vm1005, %v1301, %v1335
    %v1337 = vsel %vm1007, %v1304, %v1336
    %v1338 = vsel %vm1009, %v1307, %v1337
    %v1339 = vsel %vm997, %v1313, %v1310
    %v1340 = vsel %vm999, %v1316, %v1339
    %v1341 = vsel %vm1001, %v1319, %v1340
    %v1342 = vsel %vm1003, %v1322, %v1341
    %v1343 = vsel %vm1005, %v1325, %v1342
    %v1344 = vsel %vm1007, %v1328, %v1343
    %v1345 = vsel %vm1009, %v1331, %v1344
    %v1348 = vsel %vm69, %v1338, 0.0
    %1349 = vadd.xlane.f32.xlu0 %v1348
    %v1350 = vpop.xlane.xlu0 %1349
    %v1351 = vsel %vm69, %v1345, 0.0
    %1352 = vadd.xlane.f32.xlu0 %v1351
    %v1353 = vpop.xlane.xlu0 %1352
    %v1354 = vrcp.pop %v1350
    %v1355 = vrcp.pop %v1353
    %v1358 = vperm.slane %v1354, 0
    %v1359 = vperm.slane %v1354, 1
    %v1360 = vperm.slane %v1354, 2
    %v1361 = vperm.slane %v1354, 3
    %v1362 = vperm.slane %v1354, 4
    %v1363 = vperm.slane %v1354, 5
    %v1364 = vperm.slane %v1354, 6
    %v1365 = vperm.slane %v1354, 7
    %v1366 = vperm.slane %v1355, 0
    %v1367 = vperm.slane %v1355, 1
    %v1368 = vperm.slane %v1355, 2
    %v1369 = vperm.slane %v1355, 3
    %v1370 = vperm.slane %v1355, 4
    %v1371 = vperm.slane %v1355, 5
    %v1372 = vperm.slane %v1355, 6
    %v1373 = vperm.slane %v1355, 7
    %v1390 = vmul.f32 %v1093, %v1358
    %v1391 = vmul.f32 %v1095, %v1358
    %v1392 = vmul.f32 %v1097, %v1359
    %v1393 = vmul.f32 %v1099, %v1359
    %v1394 = vmul.f32 %v1101, %v1360
    %v1395 = vmul.f32 %v1103, %v1360
    %v1396 = vmul.f32 %v1105, %v1361
    %v1397 = vmul.f32 %v1107, %v1361
    %v1398 = vmul.f32 %v1109, %v1362
    %v1399 = vmul.f32 %v1111, %v1362
    %v1400 = vmul.f32 %v1113, %v1363
    %v1401 = vmul.f32 %v1115, %v1363
    %v1402 = vmul.f32 %v1117, %v1364
    %v1403 = vmul.f32 %v1119, %v1364
    %v1404 = vmul.f32 %v1121, %v1365
    %v1405 = vmul.f32 %v1123, %v1365
    %v1406 = vmul.f32 %v1125, %v1366
    %v1407 = vmul.f32 %v1127, %v1366
    %v1408 = vmul.f32 %v1129, %v1367
    %v1409 = vmul.f32 %v1131, %v1367
    %v1410 = vmul.f32 %v1133, %v1368
    %v1411 = vmul.f32 %v1135, %v1368
    %v1412 = vmul.f32 %v1137, %v1369
    %v1413 = vmul.f32 %v1139, %v1369
    %v1414 = vmul.f32 %v1141, %v1370
    %v1415 = vmul.f32 %v1143, %v1370
    %v1416 = vmul.f32 %v1145, %v1371
    %v1417 = vmul.f32 %v1147, %v1371
    %v1418 = vmul.f32 %v1149, %v1372
    %v1419 = vmul.f32 %v1151, %v1372
    %v1420 = vmul.f32 %v1153, %v1373
    %v1421 = vmul.f32 %v1155, %v1373
    %v1422 = vperm.slane %v67, 2
    %1455 = vset.pattern.permute.xlu0 0
    %1456 = vperm.xlu0 %1455, %v1390
    %v1457 = vpop.permute.xlu0 %1456
    %1458 = vset.pattern.permute.xlu0 0
    %1459 = vperm.xlu0 %1458, %v1391
    %v1460 = vpop.permute.xlu0 %1459
    %1461 = vset.pattern.permute.xlu0 0
    %1462 = vperm.xlu0 %1461, %v1392
    %v1463 = vpop.permute.xlu0 %1462
    %1464 = vset.pattern.permute.xlu0 0
    %1465 = vperm.xlu0 %1464, %v1393
    %v1466 = vpop.permute.xlu0 %1465
    %1467 = vset.pattern.permute.xlu0 0
    %1468 = vperm.xlu0 %1467, %v1394
    %v1469 = vpop.permute.xlu0 %1468
    %1470 = vset.pattern.permute.xlu0 0
    %1471 = vperm.xlu0 %1470, %v1395
    %v1472 = vpop.permute.xlu0 %1471
    %1473 = vset.pattern.permute.xlu0 0
    %1474 = vperm.xlu0 %1473, %v1396
    %v1475 = vpop.permute.xlu0 %1474
    %1476 = vset.pattern.permute.xlu0 0
    %1477 = vperm.xlu0 %1476, %v1397
    %v1478 = vpop.permute.xlu0 %1477
    %1479 = vset.pattern.permute.xlu0 0
    %1480 = vperm.xlu0 %1479, %v1398
    %v1481 = vpop.permute.xlu0 %1480
    %1482 = vset.pattern.permute.xlu0 0
    %1483 = vperm.xlu0 %1482, %v1399
    %v1484 = vpop.permute.xlu0 %1483
    %1485 = vset.pattern.permute.xlu0 0
    %1486 = vperm.xlu0 %1485, %v1400
    %v1487 = vpop.permute.xlu0 %1486
    %1488 = vset.pattern.permute.xlu0 0
    %1489 = vperm.xlu0 %1488, %v1401
    %v1490 = vpop.permute.xlu0 %1489
    %1491 = vset.pattern.permute.xlu0 0
    %1492 = vperm.xlu0 %1491, %v1402
    %v1493 = vpop.permute.xlu0 %1492
    %1494 = vset.pattern.permute.xlu0 0
    %1495 = vperm.xlu0 %1494, %v1403
    %v1496 = vpop.permute.xlu0 %1495
    %1497 = vset.pattern.permute.xlu0 0
    %1498 = vperm.xlu0 %1497, %v1404
    %v1499 = vpop.permute.xlu0 %1498
    %1500 = vset.pattern.permute.xlu0 0
    %1501 = vperm.xlu0 %1500, %v1405
    %v1502 = vpop.permute.xlu0 %1501
    %1503 = vset.pattern.permute.xlu0 0
    %1504 = vperm.xlu0 %1503, %v1406
    %v1505 = vpop.permute.xlu0 %1504
    %1506 = vset.pattern.permute.xlu0 0
    %1507 = vperm.xlu0 %1506, %v1407
    %v1508 = vpop.permute.xlu0 %1507
    %1509 = vset.pattern.permute.xlu0 0
    %1510 = vperm.xlu0 %1509, %v1408
    %v1511 = vpop.permute.xlu0 %1510
    %1512 = vset.pattern.permute.xlu0 0
    %1513 = vperm.xlu0 %1512, %v1409
    %v1514 = vpop.permute.xlu0 %1513
    %1515 = vset.pattern.permute.xlu0 0
    %1516 = vperm.xlu0 %1515, %v1410
    %v1517 = vpop.permute.xlu0 %1516
    %1518 = vset.pattern.permute.xlu0 0
    %1519 = vperm.xlu0 %1518, %v1411
    %v1520 = vpop.permute.xlu0 %1519
    %1521 = vset.pattern.permute.xlu0 0
    %1522 = vperm.xlu0 %1521, %v1412
    %v1523 = vpop.permute.xlu0 %1522
    %1524 = vset.pattern.permute.xlu0 0
    %1525 = vperm.xlu0 %1524, %v1413
    %v1526 = vpop.permute.xlu0 %1525
    %1527 = vset.pattern.permute.xlu0 0
    %1528 = vperm.xlu0 %1527, %v1414
    %v1529 = vpop.permute.xlu0 %1528
    %1530 = vset.pattern.permute.xlu0 0
    %1531 = vperm.xlu0 %1530, %v1415
    %v1532 = vpop.permute.xlu0 %1531
    %1533 = vset.pattern.permute.xlu0 0
    %1534 = vperm.xlu0 %1533, %v1416
    %v1535 = vpop.permute.xlu0 %1534
    %1536 = vset.pattern.permute.xlu0 0
    %1537 = vperm.xlu0 %1536, %v1417
    %v1538 = vpop.permute.xlu0 %1537
    %1539 = vset.pattern.permute.xlu0 0
    %1540 = vperm.xlu0 %1539, %v1418
    %v1541 = vpop.permute.xlu0 %1540
    %1542 = vset.pattern.permute.xlu0 0
    %1543 = vperm.xlu0 %1542, %v1419
    %v1544 = vpop.permute.xlu0 %1543
    %1545 = vset.pattern.permute.xlu0 0
    %1546 = vperm.xlu0 %1545, %v1420
    %v1547 = vpop.permute.xlu0 %1546
    %1548 = vset.pattern.permute.xlu0 0
    %1549 = vperm.xlu0 %1548, %v1421
    %v1550 = vpop.permute.xlu0 %1549
    %v1551 = vperm.slane %v1457, %v946
    %v1552 = vperm.slane %v1460, %v948
    %v1553 = vsel %vm950, %v1552, %v1551
    %v1554 = vperm.slane %v1463, %v946
    %v1555 = vperm.slane %v1466, %v948
    %v1556 = vsel %vm950, %v1555, %v1554
    %v1557 = vperm.slane %v1469, %v946
    %v1558 = vperm.slane %v1472, %v948
    %v1559 = vsel %vm950, %v1558, %v1557
    %v1560 = vperm.slane %v1475, %v946
    %v1561 = vperm.slane %v1478, %v948
    %v1562 = vsel %vm950, %v1561, %v1560
    %v1563 = vperm.slane %v1481, %v946
    %v1564 = vperm.slane %v1484, %v948
    %v1565 = vsel %vm950, %v1564, %v1563
    %v1566 = vperm.slane %v1487, %v946
    %v1567 = vperm.slane %v1490, %v948
    %v1568 = vsel %vm950, %v1567, %v1566
    %v1569 = vperm.slane %v1493, %v946
    %v1570 = vperm.slane %v1496, %v948
    %v1571 = vsel %vm950, %v1570, %v1569
    %v1572 = vperm.slane %v1499, %v946
    %v1573 = vperm.slane %v1502, %v948
    %v1574 = vsel %vm950, %v1573, %v1572
    %v1575 = vperm.slane %v1505, %v946
    %v1576 = vperm.slane %v1508, %v948
    %v1577 = vsel %vm950, %v1576, %v1575
    %v1578 = vperm.slane %v1511, %v946
    %v1579 = vperm.slane %v1514, %v948
    %v1580 = vsel %vm950, %v1579, %v1578
    %v1581 = vperm.slane %v1517, %v946
    %v1582 = vperm.slane %v1520, %v948
    %v1583 = vsel %vm950, %v1582, %v1581
    %v1584 = vperm.slane %v1523, %v946
    %v1585 = vperm.slane %v1526, %v948
    %v1586 = vsel %vm950, %v1585, %v1584
    %v1587 = vperm.slane %v1529, %v946
    %v1588 = vperm.slane %v1532, %v948
    %v1589 = vsel %vm950, %v1588, %v1587
    %v1590 = vperm.slane %v1535, %v946
    %v1591 = vperm.slane %v1538, %v948
    %v1592 = vsel %vm950, %v1591, %v1590
    %v1593 = vperm.slane %v1541, %v946
    %v1594 = vperm.slane %v1544, %v948
    %v1595 = vsel %vm950, %v1594, %v1593
    %v1596 = vperm.slane %v1547, %v946
    %v1597 = vperm.slane %v1550, %v948
    %v1598 = vsel %vm950, %v1597, %v1596
    %v1599 = vsel %vm997, %v1556, %v1553
    %v1600 = vsel %vm999, %v1559, %v1599
    %v1601 = vsel %vm1001, %v1562, %v1600
    %v1602 = vsel %vm1003, %v1565, %v1601
    %v1603 = vsel %vm1005, %v1568, %v1602
    %v1604 = vsel %vm1007, %v1571, %v1603
    %v1605 = vsel %vm1009, %v1574, %v1604
    %v1606 = vsel %vm997, %v1580, %v1577
    %v1607 = vsel %vm999, %v1583, %v1606
    %v1608 = vsel %vm1001, %v1586, %v1607
    %v1609 = vsel %vm1003, %v1589, %v1608
    %v1610 = vsel %vm1005, %v1592, %v1609
    %v1611 = vsel %vm1007, %v1595, %v1610
    %v1612 = vsel %vm1009, %v1598, %v1611
    %v1613 = vsel %vm69, %v1605, 0
    %v1615 = vsel %vm69, %v1612, 0
    %1617 = vmatpush.msra.mxu0 0.0
    %1618 = vmatpush.msra.mxu0 0.0
    %1619 = vmatpush.msra.mxu0 0.0
    %1620 = vmatpush.msra.mxu0 0.0
    %1621 = vmatpush.msra.mxu0 0.0
    %1622 = vmatpush.msra.mxu0 0.0
    %1623 = vmatpush.msra.mxu0 0.0
    %1624 = vmatpush.msra.mxu0 0.0
    %1625 = vmatpush.msra.mxu0 0.0
    %1626 = vmatpush.msra.mxu0 0.0
    %1627 = vmatpush.msra.mxu0 0.0
    %1628 = vmatpush.msra.mxu0 0.0
    %1629 = vmatpush.msra.mxu0 0.0
    %1630 = vmatpush.msra.mxu0 0.0
    %1631 = vmatpush.msra.mxu0 %v97
    %1632 = vmatpush.msra.mxu0 %v94
    %1633 = vmatmul.f32.gmra.mxu0 %v1613
    %v1634 = vpop.f32.mrf.mxu0
    %v1635 = vadd.f32 %v1422, %v1634
    %1636 = vmatmul.f32.gmra.mxu0 %v1615
    %v1637 = vpop.f32.mrf.mxu0
    %v1638 = vadd.f32 %v1422, %v1637
    %1639 = vdwg.mxu0
    %v1640 = vmax.f32 %v1635, 0.0
    %v1641 = vmax.f32 %v1638, 0.0
    %1642 = vrot.lane.b32.xlu0 %v286, 32
    %v1643 = vpop.permute.xlu0 %1642
    %1644 = vrot.lane.b32.xlu0 %v287, 32
    %v1645 = vpop.permute.xlu0 %1644
    %1646 = vrot.lane.b32.xlu0 %v288, 32
    %v1647 = vpop.permute.xlu0 %1646
    %1648 = vrot.lane.b32.xlu0 %v289, 32
    %v1649 = vpop.permute.xlu0 %1648
    %1650 = vrot.lane.b32.xlu0 %v290, 32
    %v1651 = vpop.permute.xlu0 %1650
    %1652 = vrot.lane.b32.xlu0 %v291, 32
    %v1653 = vpop.permute.xlu0 %1652
    %1654 = vrot.lane.b32.xlu0 %v292, 32
    %v1655 = vpop.permute.xlu0 %1654
    %1656 = vrot.lane.b32.xlu0 %v293, 32
    %v1657 = vpop.permute.xlu0 %1656
    %1658 = vrot.lane.b32.xlu0 %v294, 32
    %v1659 = vpop.permute.xlu0 %1658
    %1660 = vrot.lane.b32.xlu0 %v295, 32
    %v1661 = vpop.permute.xlu0 %1660
    %1662 = vrot.lane.b32.xlu0 %v296, 32
    %v1663 = vpop.permute.xlu0 %1662
    %1664 = vrot.lane.b32.xlu0 %v297, 32
    %v1665 = vpop.permute.xlu0 %1664
    %1666 = vrot.lane.b32.xlu0 %v298, 32
    %v1667 = vpop.permute.xlu0 %1666
    %1668 = vrot.lane.b32.xlu0 %v299, 32
    %v1669 = vpop.permute.xlu0 %1668
    %1670 = vrot.lane.b32.xlu0 %v300, 32
    %v1671 = vpop.permute.xlu0 %1670
    %1672 = vrot.lane.b32.xlu0 %v301, 32
    %v1673 = vpop.permute.xlu0 %1672
    %1674 = vrot.lane.b32.xlu0 %v302, 32
    %v1675 = vpop.permute.xlu0 %1674
    %1676 = vrot.lane.b32.xlu0 %v303, 32
    %v1677 = vpop.permute.xlu0 %1676
    %1678 = vrot.lane.b32.xlu0 %v304, 32
    %v1679 = vpop.permute.xlu0 %1678
    %1680 = vrot.lane.b32.xlu0 %v305, 32
    %v1681 = vpop.permute.xlu0 %1680
    %1682 = vrot.lane.b32.xlu0 %v306, 32
    %v1683 = vpop.permute.xlu0 %1682
    %1684 = vrot.lane.b32.xlu0 %v307, 32
    %v1685 = vpop.permute.xlu0 %1684
    %1686 = vrot.lane.b32.xlu0 %v308, 32
    %v1687 = vpop.permute.xlu0 %1686
    %1688 = vrot.lane.b32.xlu0 %v309, 32
    %v1689 = vpop.permute.xlu0 %1688
    %1690 = vrot.lane.b32.xlu0 %v310, 32
    %v1691 = vpop.permute.xlu0 %1690
    %1692 = vrot.lane.b32.xlu0 %v311, 32
    %v1693 = vpop.permute.xlu0 %1692
    %1694 = vrot.lane.b32.xlu0 %v312, 32
    %v1695 = vpop.permute.xlu0 %1694
    %1696 = vrot.lane.b32.xlu0 %v313, 32
    %v1697 = vpop.permute.xlu0 %1696
    %1698 = vrot.lane.b32.xlu0 %v314, 32
    %v1699 = vpop.permute.xlu0 %1698
    %1700 = vrot.lane.b32.xlu0 %v315, 32
    %v1701 = vpop.permute.xlu0 %1700
    %1702 = vrot.lane.b32.xlu0 %v316, 32
    %v1703 = vpop.permute.xlu0 %1702
    %1704 = vrot.lane.b32.xlu0 %v317, 32
    %v1705 = vpop.permute.xlu0 %1704
    %v1738 = vsel %vm446, %v1643, 0.0
    %1739 = vadd.xlane.f32.xlu0 %v1738
    %v1740 = vpop.xlane.xlu0 %1739
    %v1741 = vsel %vm446, %v1645, 0.0
    %1742 = vadd.xlane.f32.xlu0 %v1741
    %v1743 = vpop.xlane.xlu0 %1742
    %v1744 = vsel %vm446, %v1647, 0.0
    %1745 = vadd.xlane.f32.xlu0 %v1744
    %v1746 = vpop.xlane.xlu0 %1745
    %v1747 = vsel %vm446, %v1649, 0.0
    %1748 = vadd.xlane.f32.xlu0 %v1747
    %v1749 = vpop.xlane.xlu0 %1748
    %v1750 = vsel %vm446, %v1651, 0.0
    %1751 = vadd.xlane.f32.xlu0 %v1750
    %v1752 = vpop.xlane.xlu0 %1751
    %v1753 = vsel %vm446, %v1653, 0.0
    %1754 = vadd.xlane.f32.xlu0 %v1753
    %v1755 = vpop.xlane.xlu0 %1754
    %v1756 = vsel %vm446, %v1655, 0.0
    %1757 = vadd.xlane.f32.xlu0 %v1756
    %v1758 = vpop.xlane.xlu0 %1757
    %v1759 = vsel %vm446, %v1657, 0.0
    %1760 = vadd.xlane.f32.xlu0 %v1759
    %v1761 = vpop.xlane.xlu0 %1760
    %v1762 = vsel %vm446, %v1659, 0.0
    %1763 = vadd.xlane.f32.xlu0 %v1762
    %v1764 = vpop.xlane.xlu0 %1763
    %v1765 = vsel %vm446, %v1661, 0.0
    %1766 = vadd.xlane.f32.xlu0 %v1765
    %v1767 = vpop.xlane.xlu0 %1766
    %v1768 = vsel %vm446, %v1663, 0.0
    %1769 = vadd.xlane.f32.xlu0 %v1768
    %v1770 = vpop.xlane.xlu0 %1769
    %v1771 = vsel %vm446, %v1665, 0.0
    %1772 = vadd.xlane.f32.xlu0 %v1771
    %v1773 = vpop.xlane.xlu0 %1772
    %v1774 = vsel %vm446, %v1667, 0.0
    %1775 = vadd.xlane.f32.xlu0 %v1774
    %v1776 = vpop.xlane.xlu0 %1775
    %v1777 = vsel %vm446, %v1669, 0.0
    %1778 = vadd.xlane.f32.xlu0 %v1777
    %v1779 = vpop.xlane.xlu0 %1778
    %v1780 = vsel %vm446, %v1671, 0.0
    %1781 = vadd.xlane.f32.xlu0 %v1780
    %v1782 = vpop.xlane.xlu0 %1781
    %v1783 = vsel %vm446, %v1673, 0.0
    %1784 = vadd.xlane.f32.xlu0 %v1783
    %v1785 = vpop.xlane.xlu0 %1784
    %v1786 = vsel %vm446, %v1675, 0.0
    %1787 = vadd.xlane.f32.xlu0 %v1786
    %v1788 = vpop.xlane.xlu0 %1787
    %v1789 = vsel %vm446, %v1677, 0.0
    %1790 = vadd.xlane.f32.xlu0 %v1789
    %v1791 = vpop.xlane.xlu0 %1790
    %v1792 = vsel %vm446, %v1679, 0.0
    %1793 = vadd.xlane.f32.xlu0 %v1792
    %v1794 = vpop.xlane.xlu0 %1793
    %v1795 = vsel %vm446, %v1681, 0.0
    %1796 = vadd.xlane.f32.xlu0 %v1795
    %v1797 = vpop.xlane.xlu0 %1796
    %v1798 = vsel %vm446, %v1683, 0.0
    %1799 = vadd.xlane.f32.xlu0 %v1798
    %v1800 = vpop.xlane.xlu0 %1799
    %v1801 = vsel %vm446, %v1685, 0.0
    %1802 = vadd.xlane.f32.xlu0 %v1801
    %v1803 = vpop.xlane.xlu0 %1802
    %v1804 = vsel %vm446, %v1687, 0.0
    %1805 = vadd.xlane.f32.xlu0 %v1804
    %v1806 = vpop.xlane.xlu0 %1805
    %v1807 = vsel %vm446, %v1689, 0.0
    %1808 = vadd.xlane.f32.xlu0 %v1807
    %v1809 = vpop.xlane.xlu0 %1808
    %v1810 = vsel %vm446, %v1691, 0.0
    %1811 = vadd.xlane.f32.xlu0 %v1810
    %v1812 = vpop.xlane.xlu0 %1811
    %v1813 = vsel %vm446, %v1693, 0.0
    %1814 = vadd.xlane.f32.xlu0 %v1813
    %v1815 = vpop.xlane.xlu0 %1814
    %v1816 = vsel %vm446, %v1695, 0.0
    %1817 = vadd.xlane.f32.xlu0 %v1816
    %v1818 = vpop.xlane.xlu0 %1817
    %v1819 = vsel %vm446, %v1697, 0.0
    %1820 = vadd.xlane.f32.xlu0 %v1819
    %v1821 = vpop.xlane.xlu0 %1820
    %v1822 = vsel %vm446, %v1699, 0.0
    %1823 = vadd.xlane.f32.xlu0 %v1822
    %v1824 = vpop.xlane.xlu0 %1823
    %v1825 = vsel %vm446, %v1701, 0.0
    %1826 = vadd.xlane.f32.xlu0 %v1825
    %v1827 = vpop.xlane.xlu0 %1826
    %v1828 = vsel %vm446, %v1703, 0.0
    %1829 = vadd.xlane.f32.xlu0 %v1828
    %v1830 = vpop.xlane.xlu0 %1829
    %v1831 = vsel %vm446, %v1705, 0.0
    %1832 = vadd.xlane.f32.xlu0 %v1831
    %v1833 = vpop.xlane.xlu0 %1832
    %v1834 = vadd.f32 %v1740, %v551
    %v1835 = vadd.f32 %v1743, %v557
    %v1836 = vadd.f32 %v1746, %v564
    %v1837 = vadd.f32 %v1749, %v570
    %v1838 = vadd.f32 %v1752, %v577
    %v1839 = vadd.f32 %v1755, %v583
    %v1840 = vadd.f32 %v1758, %v590
    %v1841 = vadd.f32 %v1761, %v596
    %v1842 = vadd.f32 %v1764, %v603
    %v1843 = vadd.f32 %v1767, %v609
    %v1844 = vadd.f32 %v1770, %v616
    %v1845 = vadd.f32 %v1773, %v622
    %v1846 = vadd.f32 %v1776, %v629
    %v1847 = vadd.f32 %v1779, %v635
    %v1848 = vadd.f32 %v1782, %v642
    %v1849 = vadd.f32 %v1785, %v648
    %v1850 = vadd.f32 %v1788, %v655
    %v1851 = vadd.f32 %v1791, %v661
    %v1852 = vadd.f32 %v1794, %v668
    %v1853 = vadd.f32 %v1797, %v674
    %v1854 = vadd.f32 %v1800, %v681
    %v1855 = vadd.f32 %v1803, %v687
    %v1856 = vadd.f32 %v1806, %v694
    %v1857 = vadd.f32 %v1809, %v700
    %v1858 = vadd.f32 %v1812, %v707
    %v1859 = vadd.f32 %v1815, %v713
    %v1860 = vadd.f32 %v1818, %v720
    %v1861 = vadd.f32 %v1821, %v726
    %v1862 = vadd.f32 %v1824, %v733
    %v1863 = vadd.f32 %v1827, %v739
    %v1864 = vadd.f32 %v1830, %v746
    %v1865 = vadd.f32 %v1833, %v752
    %1898 = vset.pattern.permute.xlu0 0
    %1899 = vperm.xlu0 %1898, %v1834
    %v1900 = vpop.permute.xlu0 %1899
    %1901 = vset.pattern.permute.xlu0 0
    %1902 = vperm.xlu0 %1901, %v1835
    %v1903 = vpop.permute.xlu0 %1902
    %1904 = vset.pattern.permute.xlu0 0
    %1905 = vperm.xlu0 %1904, %v1836
    %v1906 = vpop.permute.xlu0 %1905
    %1907 = vset.pattern.permute.xlu0 0
    %1908 = vperm.xlu0 %1907, %v1837
    %v1909 = vpop.permute.xlu0 %1908
    %1910 = vset.pattern.permute.xlu0 0
    %1911 = vperm.xlu0 %1910, %v1838
    %v1912 = vpop.permute.xlu0 %1911
    %1913 = vset.pattern.permute.xlu0 0
    %1914 = vperm.xlu0 %1913, %v1839
    %v1915 = vpop.permute.xlu0 %1914
    %1916 = vset.pattern.permute.xlu0 0
    %1917 = vperm.xlu0 %1916, %v1840
    %v1918 = vpop.permute.xlu0 %1917
    %1919 = vset.pattern.permute.xlu0 0
    %1920 = vperm.xlu0 %1919, %v1841
    %v1921 = vpop.permute.xlu0 %1920
    %1922 = vset.pattern.permute.xlu0 0
    %1923 = vperm.xlu0 %1922, %v1842
    %v1924 = vpop.permute.xlu0 %1923
    %1925 = vset.pattern.permute.xlu0 0
    %1926 = vperm.xlu0 %1925, %v1843
    %v1927 = vpop.permute.xlu0 %1926
    %1928 = vset.pattern.permute.xlu0 0
    %1929 = vperm.xlu0 %1928, %v1844
    %v1930 = vpop.permute.xlu0 %1929
    %1931 = vset.pattern.permute.xlu0 0
    %1932 = vperm.xlu0 %1931, %v1845
    %v1933 = vpop.permute.xlu0 %1932
    %1934 = vset.pattern.permute.xlu0 0
    %1935 = vperm.xlu0 %1934, %v1846
    %v1936 = vpop.permute.xlu0 %1935
    %1937 = vset.pattern.permute.xlu0 0
    %1938 = vperm.xlu0 %1937, %v1847
    %v1939 = vpop.permute.xlu0 %1938
    %1940 = vset.pattern.permute.xlu0 0
    %1941 = vperm.xlu0 %1940, %v1848
    %v1942 = vpop.permute.xlu0 %1941
    %1943 = vset.pattern.permute.xlu0 0
    %1944 = vperm.xlu0 %1943, %v1849
    %v1945 = vpop.permute.xlu0 %1944
    %1946 = vset.pattern.permute.xlu0 0
    %1947 = vperm.xlu0 %1946, %v1850
    %v1948 = vpop.permute.xlu0 %1947
    %1949 = vset.pattern.permute.xlu0 0
    %1950 = vperm.xlu0 %1949, %v1851
    %v1951 = vpop.permute.xlu0 %1950
    %1952 = vset.pattern.permute.xlu0 0
    %1953 = vperm.xlu0 %1952, %v1852
    %v1954 = vpop.permute.xlu0 %1953
    %1955 = vset.pattern.permute.xlu0 0
    %1956 = vperm.xlu0 %1955, %v1853
    %v1957 = vpop.permute.xlu0 %1956
    %1958 = vset.pattern.permute.xlu0 0
    %1959 = vperm.xlu0 %1958, %v1854
    %v1960 = vpop.permute.xlu0 %1959
    %1961 = vset.pattern.permute.xlu0 0
    %1962 = vperm.xlu0 %1961, %v1855
    %v1963 = vpop.permute.xlu0 %1962
    %1964 = vset.pattern.permute.xlu0 0
    %1965 = vperm.xlu0 %1964, %v1856
    %v1966 = vpop.permute.xlu0 %1965
    %1967 = vset.pattern.permute.xlu0 0
    %1968 = vperm.xlu0 %1967, %v1857
    %v1969 = vpop.permute.xlu0 %1968
    %1970 = vset.pattern.permute.xlu0 0
    %1971 = vperm.xlu0 %1970, %v1858
    %v1972 = vpop.permute.xlu0 %1971
    %1973 = vset.pattern.permute.xlu0 0
    %1974 = vperm.xlu0 %1973, %v1859
    %v1975 = vpop.permute.xlu0 %1974
    %1976 = vset.pattern.permute.xlu0 0
    %1977 = vperm.xlu0 %1976, %v1860
    %v1978 = vpop.permute.xlu0 %1977
    %1979 = vset.pattern.permute.xlu0 0
    %1980 = vperm.xlu0 %1979, %v1861
    %v1981 = vpop.permute.xlu0 %1980
    %1982 = vset.pattern.permute.xlu0 0
    %1983 = vperm.xlu0 %1982, %v1862
    %v1984 = vpop.permute.xlu0 %1983
    %1985 = vset.pattern.permute.xlu0 0
    %1986 = vperm.xlu0 %1985, %v1863
    %v1987 = vpop.permute.xlu0 %1986
    %1988 = vset.pattern.permute.xlu0 0
    %1989 = vperm.xlu0 %1988, %v1864
    %v1990 = vpop.permute.xlu0 %1989
    %1991 = vset.pattern.permute.xlu0 0
    %1992 = vperm.xlu0 %1991, %v1865
    %v1993 = vpop.permute.xlu0 %1992
    %v1994 = vperm.slane %v1900, %v946
    %v1995 = vperm.slane %v1903, %v948
    %v1996 = vsel %vm950, %v1995, %v1994
    %v1997 = vperm.slane %v1906, %v946
    %v1998 = vperm.slane %v1909, %v948
    %v1999 = vsel %vm950, %v1998, %v1997
    %v2000 = vperm.slane %v1912, %v946
    %v2001 = vperm.slane %v1915, %v948
    %v2002 = vsel %vm950, %v2001, %v2000
    %v2003 = vperm.slane %v1918, %v946
    %v2004 = vperm.slane %v1921, %v948
    %v2005 = vsel %vm950, %v2004, %v2003
    %v2006 = vperm.slane %v1924, %v946
    %v2007 = vperm.slane %v1927, %v948
    %v2008 = vsel %vm950, %v2007, %v2006
    %v2009 = vperm.slane %v1930, %v946
    %v2010 = vperm.slane %v1933, %v948
    %v2011 = vsel %vm950, %v2010, %v2009
    %v2012 = vperm.slane %v1936, %v946
    %v2013 = vperm.slane %v1939, %v948
    %v2014 = vsel %vm950, %v2013, %v2012
    %v2015 = vperm.slane %v1942, %v946
    %v2016 = vperm.slane %v1945, %v948
    %v2017 = vsel %vm950, %v2016, %v2015
    %v2018 = vperm.slane %v1948, %v946
    %v2019 = vperm.slane %v1951, %v948
    %v2020 = vsel %vm950, %v2019, %v2018
    %v2021 = vperm.slane %v1954, %v946
    %v2022 = vperm.slane %v1957, %v948
    %v2023 = vsel %vm950, %v2022, %v2021
    %v2024 = vperm.slane %v1960, %v946
    %v2025 = vperm.slane %v1963, %v948
    %v2026 = vsel %vm950, %v2025, %v2024
    %v2027 = vperm.slane %v1966, %v946
    %v2028 = vperm.slane %v1969, %v948
    %v2029 = vsel %vm950, %v2028, %v2027
    %v2030 = vperm.slane %v1972, %v946
    %v2031 = vperm.slane %v1975, %v948
    %v2032 = vsel %vm950, %v2031, %v2030
    %v2033 = vperm.slane %v1978, %v946
    %v2034 = vperm.slane %v1981, %v948
    %v2035 = vsel %vm950, %v2034, %v2033
    %v2036 = vperm.slane %v1984, %v946
    %v2037 = vperm.slane %v1987, %v948
    %v2038 = vsel %vm950, %v2037, %v2036
    %v2039 = vperm.slane %v1990, %v946
    %v2040 = vperm.slane %v1993, %v948
    %v2041 = vsel %vm950, %v2040, %v2039
    %v2042 = vsel %vm997, %v1999, %v1996
    %v2043 = vsel %vm999, %v2002, %v2042
    %v2044 = vsel %vm1001, %v2005, %v2043
    %v2045 = vsel %vm1003, %v2008, %v2044
    %v2046 = vsel %vm1005, %v2011, %v2045
    %v2047 = vsel %vm1007, %v2014, %v2046
    %v2048 = vsel %vm1009, %v2017, %v2047
    %v2049 = vsel %vm997, %v2023, %v2020
    %v2050 = vsel %vm999, %v2026, %v2049
    %v2051 = vsel %vm1001, %v2029, %v2050
    %v2052 = vsel %vm1003, %v2032, %v2051
    %v2053 = vsel %vm1005, %v2035, %v2052
    %v2054 = vsel %vm1007, %v2038, %v2053
    %v2055 = vsel %vm1009, %v2041, %v2054
    %v2058 = vsel %vm69, %v2048, -inf
    %2059 = vmax.xlane.f32.xlu0 %v2058
    %v2060 = vpop.xlane.xlu0 %2059
    %v2061 = vsel %vm69, %v2055, -inf
    %2062 = vmax.xlane.f32.xlu0 %v2061
    %v2063 = vpop.xlane.xlu0 %2062
    %v2066 = vperm.slane %v2060, 0
    %v2067 = vperm.slane %v2060, 1
    %v2068 = vperm.slane %v2060, 2
    %v2069 = vperm.slane %v2060, 3
    %v2070 = vperm.slane %v2060, 4
    %v2071 = vperm.slane %v2060, 5
    %v2072 = vperm.slane %v2060, 6
    %v2073 = vperm.slane %v2060, 7
    %v2074 = vperm.slane %v2063, 0
    %v2075 = vperm.slane %v2063, 1
    %v2076 = vperm.slane %v2063, 2
    %v2077 = vperm.slane %v2063, 3
    %v2078 = vperm.slane %v2063, 4
    %v2079 = vperm.slane %v2063, 5
    %v2080 = vperm.slane %v2063, 6
    %v2081 = vperm.slane %v2063, 7
    %v2098 = vsub.f32 %v1834, %v2066
    %v2099 = vsub.f32 %v1835, %v2066
    %v2100 = vsub.f32 %v1836, %v2067
    %v2101 = vsub.f32 %v1837, %v2067
    %v2102 = vsub.f32 %v1838, %v2068
    %v2103 = vsub.f32 %v1839, %v2068
    %v2104 = vsub.f32 %v1840, %v2069
    %v2105 = vsub.f32 %v1841, %v2069
    %v2106 = vsub.f32 %v1842, %v2070
    %v2107 = vsub.f32 %v1843, %v2070
    %v2108 = vsub.f32 %v1844, %v2071
    %v2109 = vsub.f32 %v1845, %v2071
    %v2110 = vsub.f32 %v1846, %v2072
    %v2111 = vsub.f32 %v1847, %v2072
    %v2112 = vsub.f32 %v1848, %v2073
    %v2113 = vsub.f32 %v1849, %v2073
    %v2114 = vsub.f32 %v1850, %v2074
    %v2115 = vsub.f32 %v1851, %v2074
    %v2116 = vsub.f32 %v1852, %v2075
    %v2117 = vsub.f32 %v1853, %v2075
    %v2118 = vsub.f32 %v1854, %v2076
    %v2119 = vsub.f32 %v1855, %v2076
    %v2120 = vsub.f32 %v1856, %v2077
    %v2121 = vsub.f32 %v1857, %v2077
    %v2122 = vsub.f32 %v1858, %v2078
    %v2123 = vsub.f32 %v1859, %v2078
    %v2124 = vsub.f32 %v1860, %v2079
    %v2125 = vsub.f32 %v1861, %v2079
    %v2126 = vsub.f32 %v1862, %v2080
    %v2127 = vsub.f32 %v1863, %v2080
    %v2128 = vsub.f32 %v1864, %v2081
    %v2129 = vsub.f32 %v1865, %v2081
    %v2130 = vmul.f32 %v2098, 1.442695
    %v2131 = vpow.pop %v2130
    %v2132 = vmul.f32 %v2099, 1.442695
    %v2133 = vpow.pop %v2132
    %v2134 = vmul.f32 %v2100, 1.442695
    %v2135 = vpow.pop %v2134
    %v2136 = vmul.f32 %v2101, 1.442695
    %v2137 = vpow.pop %v2136
    %v2138 = vmul.f32 %v2102, 1.442695
    %v2139 = vpow.pop %v2138
    %v2140 = vmul.f32 %v2103, 1.442695
    %v2141 = vpow.pop %v2140
    %v2142 = vmul.f32 %v2104, 1.442695
    %v2143 = vpow.pop %v2142
    %v2144 = vmul.f32 %v2105, 1.442695
    %v2145 = vpow.pop %v2144
    %v2146 = vmul.f32 %v2106, 1.442695
    %v2147 = vpow.pop %v2146
    %v2148 = vmul.f32 %v2107, 1.442695
    %v2149 = vpow.pop %v2148
    %v2150 = vmul.f32 %v2108, 1.442695
    %v2151 = vpow.pop %v2150
    %v2152 = vmul.f32 %v2109, 1.442695
    %v2153 = vpow.pop %v2152
    %v2154 = vmul.f32 %v2110, 1.442695
    %v2155 = vpow.pop %v2154
    %v2156 = vmul.f32 %v2111, 1.442695
    %v2157 = vpow.pop %v2156
    %v2158 = vmul.f32 %v2112, 1.442695
    %v2159 = vpow.pop %v2158
    %v2160 = vmul.f32 %v2113, 1.442695
    %v2161 = vpow.pop %v2160
    %v2162 = vmul.f32 %v2114, 1.442695
    %v2163 = vpow.pop %v2162
    %v2164 = vmul.f32 %v2115, 1.442695
    %v2165 = vpow.pop %v2164
    %v2166 = vmul.f32 %v2116, 1.442695
    %v2167 = vpow.pop %v2166
    %v2168 = vmul.f32 %v2117, 1.442695
    %v2169 = vpow.pop %v2168
    %v2170 = vmul.f32 %v2118, 1.442695
    %v2171 = vpow.pop %v2170
    %v2172 = vmul.f32 %v2119, 1.442695
    %v2173 = vpow.pop %v2172
    %v2174 = vmul.f32 %v2120, 1.442695
    %v2175 = vpow.pop %v2174
    %v2176 = vmul.f32 %v2121, 1.442695
    %v2177 = vpow.pop %v2176
    %v2178 = vmul.f32 %v2122, 1.442695
    %v2179 = vpow.pop %v2178
    %v2180 = vmul.f32 %v2123, 1.442695
    %v2181 = vpow.pop %v2180
    %v2182 = vmul.f32 %v2124, 1.442695
    %v2183 = vpow.pop %v2182
    %v2184 = vmul.f32 %v2125, 1.442695
    %v2185 = vpow.pop %v2184
    %v2186 = vmul.f32 %v2126, 1.442695
    %v2187 = vpow.pop %v2186
    %v2188 = vmul.f32 %v2127, 1.442695
    %v2189 = vpow.pop %v2188
    %v2190 = vmul.f32 %v2128, 1.442695
    %v2191 = vpow.pop %v2190
    %v2192 = vmul.f32 %v2129, 1.442695
    %v2193 = vpow.pop %v2192
    %2226 = vset.pattern.permute.xlu0 0
    %2227 = vperm.xlu0 %2226, %v2131
    %v2228 = vpop.permute.xlu0 %2227
    %2229 = vset.pattern.permute.xlu0 0
    %2230 = vperm.xlu0 %2229, %v2133
    %v2231 = vpop.permute.xlu0 %2230
    %2232 = vset.pattern.permute.xlu0 0
    %2233 = vperm.xlu0 %2232, %v2135
    %v2234 = vpop.permute.xlu0 %2233
    %2235 = vset.pattern.permute.xlu0 0
    %2236 = vperm.xlu0 %2235, %v2137
    %v2237 = vpop.permute.xlu0 %2236
    %2238 = vset.pattern.permute.xlu0 0
    %2239 = vperm.xlu0 %2238, %v2139
    %v2240 = vpop.permute.xlu0 %2239
    %2241 = vset.pattern.permute.xlu0 0
    %2242 = vperm.xlu0 %2241, %v2141
    %v2243 = vpop.permute.xlu0 %2242
    %2244 = vset.pattern.permute.xlu0 0
    %2245 = vperm.xlu0 %2244, %v2143
    %v2246 = vpop.permute.xlu0 %2245
    %2247 = vset.pattern.permute.xlu0 0
    %2248 = vperm.xlu0 %2247, %v2145
    %v2249 = vpop.permute.xlu0 %2248
    %2250 = vset.pattern.permute.xlu0 0
    %2251 = vperm.xlu0 %2250, %v2147
    %v2252 = vpop.permute.xlu0 %2251
    %2253 = vset.pattern.permute.xlu0 0
    %2254 = vperm.xlu0 %2253, %v2149
    %v2255 = vpop.permute.xlu0 %2254
    %2256 = vset.pattern.permute.xlu0 0
    %2257 = vperm.xlu0 %2256, %v2151
    %v2258 = vpop.permute.xlu0 %2257
    %2259 = vset.pattern.permute.xlu0 0
    %2260 = vperm.xlu0 %2259, %v2153
    %v2261 = vpop.permute.xlu0 %2260
    %2262 = vset.pattern.permute.xlu0 0
    %2263 = vperm.xlu0 %2262, %v2155
    %v2264 = vpop.permute.xlu0 %2263
    %2265 = vset.pattern.permute.xlu0 0
    %2266 = vperm.xlu0 %2265, %v2157
    %v2267 = vpop.permute.xlu0 %2266
    %2268 = vset.pattern.permute.xlu0 0
    %2269 = vperm.xlu0 %2268, %v2159
    %v2270 = vpop.permute.xlu0 %2269
    %2271 = vset.pattern.permute.xlu0 0
    %2272 = vperm.xlu0 %2271, %v2161
    %v2273 = vpop.permute.xlu0 %2272
    %2274 = vset.pattern.permute.xlu0 0
    %2275 = vperm.xlu0 %2274, %v2163
    %v2276 = vpop.permute.xlu0 %2275
    %2277 = vset.pattern.permute.xlu0 0
    %2278 = vperm.xlu0 %2277, %v2165
    %v2279 = vpop.permute.xlu0 %2278
    %2280 = vset.pattern.permute.xlu0 0
    %2281 = vperm.xlu0 %2280, %v2167
    %v2282 = vpop.permute.xlu0 %2281
    %2283 = vset.pattern.permute.xlu0 0
    %2284 = vperm.xlu0 %2283, %v2169
    %v2285 = vpop.permute.xlu0 %2284
    %2286 = vset.pattern.permute.xlu0 0
    %2287 = vperm.xlu0 %2286, %v2171
    %v2288 = vpop.permute.xlu0 %2287
    %2289 = vset.pattern.permute.xlu0 0
    %2290 = vperm.xlu0 %2289, %v2173
    %v2291 = vpop.permute.xlu0 %2290
    %2292 = vset.pattern.permute.xlu0 0
    %2293 = vperm.xlu0 %2292, %v2175
    %v2294 = vpop.permute.xlu0 %2293
    %2295 = vset.pattern.permute.xlu0 0
    %2296 = vperm.xlu0 %2295, %v2177
    %v2297 = vpop.permute.xlu0 %2296
    %2298 = vset.pattern.permute.xlu0 0
    %2299 = vperm.xlu0 %2298, %v2179
    %v2300 = vpop.permute.xlu0 %2299
    %2301 = vset.pattern.permute.xlu0 0
    %2302 = vperm.xlu0 %2301, %v2181
    %v2303 = vpop.permute.xlu0 %2302
    %2304 = vset.pattern.permute.xlu0 0
    %2305 = vperm.xlu0 %2304, %v2183
    %v2306 = vpop.permute.xlu0 %2305
    %2307 = vset.pattern.permute.xlu0 0
    %2308 = vperm.xlu0 %2307, %v2185
    %v2309 = vpop.permute.xlu0 %2308
    %2310 = vset.pattern.permute.xlu0 0
    %2311 = vperm.xlu0 %2310, %v2187
    %v2312 = vpop.permute.xlu0 %2311
    %2313 = vset.pattern.permute.xlu0 0
    %2314 = vperm.xlu0 %2313, %v2189
    %v2315 = vpop.permute.xlu0 %2314
    %2316 = vset.pattern.permute.xlu0 0
    %2317 = vperm.xlu0 %2316, %v2191
    %v2318 = vpop.permute.xlu0 %2317
    %2319 = vset.pattern.permute.xlu0 0
    %2320 = vperm.xlu0 %2319, %v2193
    %v2321 = vpop.permute.xlu0 %2320
    %v2322 = vperm.slane %v2228, %v946
    %v2323 = vperm.slane %v2231, %v948
    %v2324 = vsel %vm950, %v2323, %v2322
    %v2325 = vperm.slane %v2234, %v946
    %v2326 = vperm.slane %v2237, %v948
    %v2327 = vsel %vm950, %v2326, %v2325
    %v2328 = vperm.slane %v2240, %v946
    %v2329 = vperm.slane %v2243, %v948
    %v2330 = vsel %vm950, %v2329, %v2328
    %v2331 = vperm.slane %v2246, %v946
    %v2332 = vperm.slane %v2249, %v948
    %v2333 = vsel %vm950, %v2332, %v2331
    %v2334 = vperm.slane %v2252, %v946
    %v2335 = vperm.slane %v2255, %v948
    %v2336 = vsel %vm950, %v2335, %v2334
    %v2337 = vperm.slane %v2258, %v946
    %v2338 = vperm.slane %v2261, %v948
    %v2339 = vsel %vm950, %v2338, %v2337
    %v2340 = vperm.slane %v2264, %v946
    %v2341 = vperm.slane %v2267, %v948
    %v2342 = vsel %vm950, %v2341, %v2340
    %v2343 = vperm.slane %v2270, %v946
    %v2344 = vperm.slane %v2273, %v948
    %v2345 = vsel %vm950, %v2344, %v2343
    %v2346 = vperm.slane %v2276, %v946
    %v2347 = vperm.slane %v2279, %v948
    %v2348 = vsel %vm950, %v2347, %v2346
    %v2349 = vperm.slane %v2282, %v946
    %v2350 = vperm.slane %v2285, %v948
    %v2351 = vsel %vm950, %v2350, %v2349
    %v2352 = vperm.slane %v2288, %v946
    %v2353 = vperm.slane %v2291, %v948
    %v2354 = vsel %vm950, %v2353, %v2352
    %v2355 = vperm.slane %v2294, %v946
    %v2356 = vperm.slane %v2297, %v948
    %v2357 = vsel %vm950, %v2356, %v2355
    %v2358 = vperm.slane %v2300, %v946
    %v2359 = vperm.slane %v2303, %v948
    %v2360 = vsel %vm950, %v2359, %v2358
    %v2361 = vperm.slane %v2306, %v946
    %v2362 = vperm.slane %v2309, %v948
    %v2363 = vsel %vm950, %v2362, %v2361
    %v2364 = vperm.slane %v2312, %v946
    %v2365 = vperm.slane %v2315, %v948
    %v2366 = vsel %vm950, %v2365, %v2364
    %v2367 = vperm.slane %v2318, %v946
    %v2368 = vperm.slane %v2321, %v948
    %v2369 = vsel %vm950, %v2368, %v2367
    %v2370 = vsel %vm997, %v2327, %v2324
    %v2371 = vsel %vm999, %v2330, %v2370
    %v2372 = vsel %vm1001, %v2333, %v2371
    %v2373 = vsel %vm1003, %v2336, %v2372
    %v2374 = vsel %vm1005, %v2339, %v2373
    %v2375 = vsel %vm1007, %v2342, %v2374
    %v2376 = vsel %vm1009, %v2345, %v2375
    %v2377 = vsel %vm997, %v2351, %v2348
    %v2378 = vsel %vm999, %v2354, %v2377
    %v2379 = vsel %vm1001, %v2357, %v2378
    %v2380 = vsel %vm1003, %v2360, %v2379
    %v2381 = vsel %vm1005, %v2363, %v2380
    %v2382 = vsel %vm1007, %v2366, %v2381
    %v2383 = vsel %vm1009, %v2369, %v2382
    %v2386 = vsel %vm69, %v2376, 0.0
    %2387 = vadd.xlane.f32.xlu0 %v2386
    %v2388 = vpop.xlane.xlu0 %2387
    %v2389 = vsel %vm69, %v2383, 0.0
    %2390 = vadd.xlane.f32.xlu0 %v2389
    %v2391 = vpop.xlane.xlu0 %2390
    %v2392 = vrcp.pop %v2388
    %v2393 = vrcp.pop %v2391
    %v2396 = vperm.slane %v2392, 0
    %v2397 = vperm.slane %v2392, 1
    %v2398 = vperm.slane %v2392, 2
    %v2399 = vperm.slane %v2392, 3
    %v2400 = vperm.slane %v2392, 4
    %v2401 = vperm.slane %v2392, 5
    %v2402 = vperm.slane %v2392, 6
    %v2403 = vperm.slane %v2392, 7
    %v2404 = vperm.slane %v2393, 0
    %v2405 = vperm.slane %v2393, 1
    %v2406 = vperm.slane %v2393, 2
    %v2407 = vperm.slane %v2393, 3
    %v2408 = vperm.slane %v2393, 4
    %v2409 = vperm.slane %v2393, 5
    %v2410 = vperm.slane %v2393, 6
    %v2411 = vperm.slane %v2393, 7
    %v2428 = vmul.f32 %v2131, %v2396
    %v2429 = vmul.f32 %v2133, %v2396
    %v2430 = vmul.f32 %v2135, %v2397
    %v2431 = vmul.f32 %v2137, %v2397
    %v2432 = vmul.f32 %v2139, %v2398
    %v2433 = vmul.f32 %v2141, %v2398
    %v2434 = vmul.f32 %v2143, %v2399
    %v2435 = vmul.f32 %v2145, %v2399
    %v2436 = vmul.f32 %v2147, %v2400
    %v2437 = vmul.f32 %v2149, %v2400
    %v2438 = vmul.f32 %v2151, %v2401
    %v2439 = vmul.f32 %v2153, %v2401
    %v2440 = vmul.f32 %v2155, %v2402
    %v2441 = vmul.f32 %v2157, %v2402
    %v2442 = vmul.f32 %v2159, %v2403
    %v2443 = vmul.f32 %v2161, %v2403
    %v2444 = vmul.f32 %v2163, %v2404
    %v2445 = vmul.f32 %v2165, %v2404
    %v2446 = vmul.f32 %v2167, %v2405
    %v2447 = vmul.f32 %v2169, %v2405
    %v2448 = vmul.f32 %v2171, %v2406
    %v2449 = vmul.f32 %v2173, %v2406
    %v2450 = vmul.f32 %v2175, %v2407
    %v2451 = vmul.f32 %v2177, %v2407
    %v2452 = vmul.f32 %v2179, %v2408
    %v2453 = vmul.f32 %v2181, %v2408
    %v2454 = vmul.f32 %v2183, %v2409
    %v2455 = vmul.f32 %v2185, %v2409
    %v2456 = vmul.f32 %v2187, %v2410
    %v2457 = vmul.f32 %v2189, %v2410
    %v2458 = vmul.f32 %v2191, %v2411
    %v2459 = vmul.f32 %v2193, %v2411
    %2492 = vset.pattern.permute.xlu0 0
    %2493 = vperm.xlu0 %2492, %v2428
    %v2494 = vpop.permute.xlu0 %2493
    %2495 = vset.pattern.permute.xlu0 0
    %2496 = vperm.xlu0 %2495, %v2429
    %v2497 = vpop.permute.xlu0 %2496
    %2498 = vset.pattern.permute.xlu0 0
    %2499 = vperm.xlu0 %2498, %v2430
    %v2500 = vpop.permute.xlu0 %2499
    %2501 = vset.pattern.permute.xlu0 0
    %2502 = vperm.xlu0 %2501, %v2431
    %v2503 = vpop.permute.xlu0 %2502
    %2504 = vset.pattern.permute.xlu0 0
    %2505 = vperm.xlu0 %2504, %v2432
    %v2506 = vpop.permute.xlu0 %2505
    %2507 = vset.pattern.permute.xlu0 0
    %2508 = vperm.xlu0 %2507, %v2433
    %v2509 = vpop.permute.xlu0 %2508
    %2510 = vset.pattern.permute.xlu0 0
    %2511 = vperm.xlu0 %2510, %v2434
    %v2512 = vpop.permute.xlu0 %2511
    %2513 = vset.pattern.permute.xlu0 0
    %2514 = vperm.xlu0 %2513, %v2435
    %v2515 = vpop.permute.xlu0 %2514
    %2516 = vset.pattern.permute.xlu0 0
    %2517 = vperm.xlu0 %2516, %v2436
    %v2518 = vpop.permute.xlu0 %2517
    %2519 = vset.pattern.permute.xlu0 0
    %2520 = vperm.xlu0 %2519, %v2437
    %v2521 = vpop.permute.xlu0 %2520
    %2522 = vset.pattern.permute.xlu0 0
    %2523 = vperm.xlu0 %2522, %v2438
    %v2524 = vpop.permute.xlu0 %2523
    %2525 = vset.pattern.permute.xlu0 0
    %2526 = vperm.xlu0 %2525, %v2439
    %v2527 = vpop.permute.xlu0 %2526
    %2528 = vset.pattern.permute.xlu0 0
    %2529 = vperm.xlu0 %2528, %v2440
    %v2530 = vpop.permute.xlu0 %2529
    %2531 = vset.pattern.permute.xlu0 0
    %2532 = vperm.xlu0 %2531, %v2441
    %v2533 = vpop.permute.xlu0 %2532
    %2534 = vset.pattern.permute.xlu0 0
    %2535 = vperm.xlu0 %2534, %v2442
    %v2536 = vpop.permute.xlu0 %2535
    %2537 = vset.pattern.permute.xlu0 0
    %2538 = vperm.xlu0 %2537, %v2443
    %v2539 = vpop.permute.xlu0 %2538
    %2540 = vset.pattern.permute.xlu0 0
    %2541 = vperm.xlu0 %2540, %v2444
    %v2542 = vpop.permute.xlu0 %2541
    %2543 = vset.pattern.permute.xlu0 0
    %2544 = vperm.xlu0 %2543, %v2445
    %v2545 = vpop.permute.xlu0 %2544
    %2546 = vset.pattern.permute.xlu0 0
    %2547 = vperm.xlu0 %2546, %v2446
    %v2548 = vpop.permute.xlu0 %2547
    %2549 = vset.pattern.permute.xlu0 0
    %2550 = vperm.xlu0 %2549, %v2447
    %v2551 = vpop.permute.xlu0 %2550
    %2552 = vset.pattern.permute.xlu0 0
    %2553 = vperm.xlu0 %2552, %v2448
    %v2554 = vpop.permute.xlu0 %2553
    %2555 = vset.pattern.permute.xlu0 0
    %2556 = vperm.xlu0 %2555, %v2449
    %v2557 = vpop.permute.xlu0 %2556
    %2558 = vset.pattern.permute.xlu0 0
    %2559 = vperm.xlu0 %2558, %v2450
    %v2560 = vpop.permute.xlu0 %2559
    %2561 = vset.pattern.permute.xlu0 0
    %2562 = vperm.xlu0 %2561, %v2451
    %v2563 = vpop.permute.xlu0 %2562
    %2564 = vset.pattern.permute.xlu0 0
    %2565 = vperm.xlu0 %2564, %v2452
    %v2566 = vpop.permute.xlu0 %2565
    %2567 = vset.pattern.permute.xlu0 0
    %2568 = vperm.xlu0 %2567, %v2453
    %v2569 = vpop.permute.xlu0 %2568
    %2570 = vset.pattern.permute.xlu0 0
    %2571 = vperm.xlu0 %2570, %v2454
    %v2572 = vpop.permute.xlu0 %2571
    %2573 = vset.pattern.permute.xlu0 0
    %2574 = vperm.xlu0 %2573, %v2455
    %v2575 = vpop.permute.xlu0 %2574
    %2576 = vset.pattern.permute.xlu0 0
    %2577 = vperm.xlu0 %2576, %v2456
    %v2578 = vpop.permute.xlu0 %2577
    %2579 = vset.pattern.permute.xlu0 0
    %2580 = vperm.xlu0 %2579, %v2457
    %v2581 = vpop.permute.xlu0 %2580
    %2582 = vset.pattern.permute.xlu0 0
    %2583 = vperm.xlu0 %2582, %v2458
    %v2584 = vpop.permute.xlu0 %2583
    %2585 = vset.pattern.permute.xlu0 0
    %2586 = vperm.xlu0 %2585, %v2459
    %v2587 = vpop.permute.xlu0 %2586
    %v2588 = vperm.slane %v2494, %v946
    %v2589 = vperm.slane %v2497, %v948
    %v2590 = vsel %vm950, %v2589, %v2588
    %v2591 = vperm.slane %v2500, %v946
    %v2592 = vperm.slane %v2503, %v948
    %v2593 = vsel %vm950, %v2592, %v2591
    %v2594 = vperm.slane %v2506, %v946
    %v2595 = vperm.slane %v2509, %v948
    %v2596 = vsel %vm950, %v2595, %v2594
    %v2597 = vperm.slane %v2512, %v946
    %v2598 = vperm.slane %v2515, %v948
    %v2599 = vsel %vm950, %v2598, %v2597
    %v2600 = vperm.slane %v2518, %v946
    %v2601 = vperm.slane %v2521, %v948
    %v2602 = vsel %vm950, %v2601, %v2600
    %v2603 = vperm.slane %v2524, %v946
    %v2604 = vperm.slane %v2527, %v948
    %v2605 = vsel %vm950, %v2604, %v2603
    %v2606 = vperm.slane %v2530, %v946
    %v2607 = vperm.slane %v2533, %v948
    %v2608 = vsel %vm950, %v2607, %v2606
    %v2609 = vperm.slane %v2536, %v946
    %v2610 = vperm.slane %v2539, %v948
    %v2611 = vsel %vm950, %v2610, %v2609
    %v2612 = vperm.slane %v2542, %v946
    %v2613 = vperm.slane %v2545, %v948
    %v2614 = vsel %vm950, %v2613, %v2612
    %v2615 = vperm.slane %v2548, %v946
    %v2616 = vperm.slane %v2551, %v948
    %v2617 = vsel %vm950, %v2616, %v2615
    %v2618 = vperm.slane %v2554, %v946
    %v2619 = vperm.slane %v2557, %v948
    %v2620 = vsel %vm950, %v2619, %v2618
    %v2621 = vperm.slane %v2560, %v946
    %v2622 = vperm.slane %v2563, %v948
    %v2623 = vsel %vm950, %v2622, %v2621
    %v2624 = vperm.slane %v2566, %v946
    %v2625 = vperm.slane %v2569, %v948
    %v2626 = vsel %vm950, %v2625, %v2624
    %v2627 = vperm.slane %v2572, %v946
    %v2628 = vperm.slane %v2575, %v948
    %v2629 = vsel %vm950, %v2628, %v2627
    %v2630 = vperm.slane %v2578, %v946
    %v2631 = vperm.slane %v2581, %v948
    %v2632 = vsel %vm950, %v2631, %v2630
    %v2633 = vperm.slane %v2584, %v946
    %v2634 = vperm.slane %v2587, %v948
    %v2635 = vsel %vm950, %v2634, %v2633
    %v2636 = vsel %vm997, %v2593, %v2590
    %v2637 = vsel %vm999, %v2596, %v2636
    %v2638 = vsel %vm1001, %v2599, %v2637
    %v2639 = vsel %vm1003, %v2602, %v2638
    %v2640 = vsel %vm1005, %v2605, %v2639
    %v2641 = vsel %vm1007, %v2608, %v2640
    %v2642 = vsel %vm1009, %v2611, %v2641
    %v2643 = vsel %vm997, %v2617, %v2614
    %v2644 = vsel %vm999, %v2620, %v2643
    %v2645 = vsel %vm1001, %v2623, %v2644
    %v2646 = vsel %vm1003, %v2626, %v2645
    %v2647 = vsel %vm1005, %v2629, %v2646
    %v2648 = vsel %vm1007, %v2632, %v2647
    %v2649 = vsel %vm1009, %v2635, %v2648
    %2650 = vrot.lane.b32.xlu0 %v94, 96
    %v2651 = vpop.permute.xlu0 %2650
    %2652 = vrot.lane.b32.xlu0 %v97, 96
    %v2653 = vpop.permute.xlu0 %2652
    %2657 = vrot.lane.b32.xlu0 %v1422, 96
    %v2658 = vpop.permute.xlu0 %2657
    %v2660 = vsel %vm69, %v2642, 0
    %v2662 = vsel %vm69, %v2649, 0
    %2664 = vmatpush.msra.mxu0 0.0
    %2665 = vmatpush.msra.mxu0 0.0
    %2666 = vmatpush.msra.mxu0 0.0
    %2667 = vmatpush.msra.mxu0 0.0
    %2668 = vmatpush.msra.mxu0 0.0
    %2669 = vmatpush.msra.mxu0 0.0
    %2670 = vmatpush.msra.mxu0 0.0
    %2671 = vmatpush.msra.mxu0 0.0
    %2672 = vmatpush.msra.mxu0 0.0
    %2673 = vmatpush.msra.mxu0 0.0
    %2674 = vmatpush.msra.mxu0 0.0
    %2675 = vmatpush.msra.mxu0 0.0
    %2676 = vmatpush.msra.mxu0 0.0
    %2677 = vmatpush.msra.mxu0 0.0
    %2678 = vmatpush.msra.mxu0 %v2653
    %2679 = vmatpush.msra.mxu0 %v2651
    %2680 = vmatmul.f32.gmra.mxu0 %v2660
    %v2681 = vpop.f32.mrf.mxu0
    %v2682 = vadd.f32 %v2658, %v2681
    %2683 = vmatmul.f32.gmra.mxu0 %v2662
    %v2684 = vpop.f32.mrf.mxu0
    %v2685 = vadd.f32 %v2658, %v2684
    %2686 = vdwg.mxu0
    %v2687 = vmax.f32 %v2682, 0.0
    %v2688 = vmax.f32 %v2685, 0.0
    %2691 = vrot.lane.b32.xlu0 %v2687, 32
    %v2692 = vpop.permute.xlu0 %2691
    %2693 = vrot.lane.b32.xlu0 %v2688, 32
    %v2694 = vpop.permute.xlu0 %2693
    %v2697 = vsel %vm446, %v1640, %v2692
    %v2698 = vsel %vm446, %v1641, %v2694
    %v2699 = vld [vmem:[#allocation6 + $0x18] sm:$0xff]
    %v2700 = vld [vmem:[#allocation6 + $0x20] sm:$0xff]
    %v2701 = vld [vmem:[#allocation6 + $0x28] sm:$0xff]
    %v2702 = vld [vmem:[#allocation6 + $0x30] sm:$0xff]
    %v2703 = vld [vmem:[#allocation6 + $0x38] sm:$0xff]
    %v2704 = vld [vmem:[#allocation6 + $0x40] sm:$0xff]
    %v2705 = vld [vmem:[#allocation6 + $0x48] sm:$0xff]
    %v2706 = vld [vmem:[#allocation6 + $0x50] sm:$0xff]
    %v2707 = vld [vmem:[#allocation6 + $0x58] sm:$0xff]
    %v2708 = vperm.slane %v2707, 0
    %vm2709 = vcmask 523264
    %v2711 = vsel %vm2709, %v2697, 0
    %v2714 = vsel %vm2709, %v2698, 0
    %2716 = vmatpush.msra.mxu0 0.0
    %2717 = vmatpush.msra.mxu0 0.0
    %2718 = vmatpush.msra.mxu0 0.0
    %2719 = vmatpush.msra.mxu0 0.0
    %2720 = vmatpush.msra.mxu0 0.0
    %2721 = vmatpush.msra.mxu0 0.0
    %2722 = vmatpush.msra.mxu0 0.0
    %2723 = vmatpush.msra.mxu0 0.0
    %2724 = vmatpush.msra.mxu0 %v2706
    %2725 = vmatpush.msra.mxu0 %v2705
    %2726 = vmatpush.msra.mxu0 %v2704
    %2727 = vmatpush.msra.mxu0 %v2703
    %2728 = vmatpush.msra.mxu0 %v2702
    %2729 = vmatpush.msra.mxu0 %v2701
    %2730 = vmatpush.msra.mxu0 %v2700
    %2731 = vmatpush.msra.mxu0 %v2699
    %2732 = vmatmul.f32.gmra.mxu0 %v2711
    %v2733 = vpop.f32.mrf.mxu0
    %v2734 = vadd.f32 %v2708, %v2733
    %2735 = vmatmul.f32.gmra.mxu0 %v2714
    %v2736 = vpop.f32.mrf.mxu0
    %v2737 = vadd.f32 %v2708, %v2736
    %2738 = vdwg.mxu0
    %v2741 = vrot.slane %v2734, 1
    %v2742 = vrot.slane %v2734, 2
    %v2743 = vrot.slane %v2734, 3
    %v2744 = vrot.slane %v2734, 4
    %v2745 = vrot.slane %v2734, 5
    %v2746 = vrot.slane %v2734, 6
    %v2747 = vrot.slane %v2734, 7
    %v2748 = vrot.slane %v2737, 1
    %v2749 = vrot.slane %v2737, 2
    %v2750 = vrot.slane %v2737, 3
    %v2751 = vrot.slane %v2737, 4
    %v2752 = vrot.slane %v2737, 5
    %v2753 = vrot.slane %v2737, 6
    %v2754 = vrot.slane %v2737, 7
    %v2755 = vperm.slane %v2734, 0
    %v2756 = vperm.slane %v2741, 0
    %v2757 = vperm.slane %v2742, 0
    %v2758 = vperm.slane %v2743, 0
    %v2759 = vperm.slane %v2744, 0
    %v2760 = vperm.slane %v2745, 0
    %v2761 = vperm.slane %v2746, 0
    %v2762 = vperm.slane %v2747, 0
    %v2763 = vperm.slane %v2737, 0
    %v2764 = vperm.slane %v2748, 0
    %v2765 = vperm.slane %v2749, 0
    %v2766 = vperm.slane %v2750, 0
    %v2767 = vperm.slane %v2751, 0
    %v2768 = vperm.slane %v2752, 0
    %v2769 = vperm.slane %v2753, 0
    %v2770 = vperm.slane %v2754, 0
    %2787 = vrot.lane.b32.xlu0 %v2734, 32
    %v2788 = vpop.permute.xlu0 %2787
    %2789 = vrot.lane.b32.xlu0 %v2737, 32
    %v2790 = vpop.permute.xlu0 %2789
    %v2793 = vadd.f32 %v2755, %v2788
    %v2794 = vadd.f32 %v2755, %v2790
    %v2795 = vadd.f32 %v2756, %v2788
    %v2796 = vadd.f32 %v2756, %v2790
    %v2797 = vadd.f32 %v2757, %v2788
    %v2798 = vadd.f32 %v2757, %v2790
    %v2799 = vadd.f32 %v2758, %v2788
    %v2800 = vadd.f32 %v2758, %v2790
    %v2801 = vadd.f32 %v2759, %v2788
    %v2802 = vadd.f32 %v2759, %v2790
    %v2803 = vadd.f32 %v2760, %v2788
    %v2804 = vadd.f32 %v2760, %v2790
    %v2805 = vadd.f32 %v2761, %v2788
    %v2806 = vadd.f32 %v2761, %v2790
    %v2807 = vadd.f32 %v2762, %v2788
    %v2808 = vadd.f32 %v2762, %v2790
    %v2809 = vadd.f32 %v2763, %v2788
    %v2810 = vadd.f32 %v2763, %v2790
    %v2811 = vadd.f32 %v2764, %v2788
    %v2812 = vadd.f32 %v2764, %v2790
    %v2813 = vadd.f32 %v2765, %v2788
    %v2814 = vadd.f32 %v2765, %v2790
    %v2815 = vadd.f32 %v2766, %v2788
    %v2816 = vadd.f32 %v2766, %v2790
    %v2817 = vadd.f32 %v2767, %v2788
    %v2818 = vadd.f32 %v2767, %v2790
    %v2819 = vadd.f32 %v2768, %v2788
    %v2820 = vadd.f32 %v2768, %v2790
    %v2821 = vadd.f32 %v2769, %v2788
    %v2822 = vadd.f32 %v2769, %v2790
    %v2823 = vadd.f32 %v2770, %v2788
    %v2824 = vadd.f32 %v2770, %v2790
    %vm2825 = vcmp.gt.f32.partialorder %v2793, 0.0
    %vm2826 = vcmp.gt.f32.partialorder %v2794, 0.0
    %vm2827 = vcmp.gt.f32.partialorder %v2795, 0.0
    %vm2828 = vcmp.gt.f32.partialorder %v2796, 0.0
    %vm2829 = vcmp.gt.f32.partialorder %v2797, 0.0
    %vm2830 = vcmp.gt.f32.partialorder %v2798, 0.0
    %vm2831 = vcmp.gt.f32.partialorder %v2799, 0.0
    %vm2832 = vcmp.gt.f32.partialorder %v2800, 0.0
    %vm2833 = vcmp.gt.f32.partialorder %v2801, 0.0
    %vm2834 = vcmp.gt.f32.partialorder %v2802, 0.0
    %vm2835 = vcmp.gt.f32.partialorder %v2803, 0.0
    %vm2836 = vcmp.gt.f32.partialorder %v2804, 0.0
    %vm2837 = vcmp.gt.f32.partialorder %v2805, 0.0
    %vm2838 = vcmp.gt.f32.partialorder %v2806, 0.0
    %vm2839 = vcmp.gt.f32.partialorder %v2807, 0.0
    %vm2840 = vcmp.gt.f32.partialorder %v2808, 0.0
    %vm2841 = vcmp.gt.f32.partialorder %v2809, 0.0
    %vm2842 = vcmp.gt.f32.partialorder %v2810, 0.0
    %vm2843 = vcmp.gt.f32.partialorder %v2811, 0.0
    %vm2844 = vcmp.gt.f32.partialorder %v2812, 0.0
    %vm2845 = vcmp.gt.f32.partialorder %v2813, 0.0
    %vm2846 = vcmp.gt.f32.partialorder %v2814, 0.0
    %vm2847 = vcmp.gt.f32.partialorder %v2815, 0.0
    %vm2848 = vcmp.gt.f32.partialorder %v2816, 0.0
    %vm2849 = vcmp.gt.f32.partialorder %v2817, 0.0
    %vm2850 = vcmp.gt.f32.partialorder %v2818, 0.0
    %vm2851 = vcmp.gt.f32.partialorder %v2819, 0.0
    %vm2852 = vcmp.gt.f32.partialorder %v2820, 0.0
    %vm2853 = vcmp.gt.f32.partialorder %v2821, 0.0
    %vm2854 = vcmp.gt.f32.partialorder %v2822, 0.0
    %vm2855 = vcmp.gt.f32.partialorder %v2823, 0.0
    %vm2856 = vcmp.gt.f32.partialorder %v2824, 0.0
    %v2857 = vmul.f32 %v2793, 0.2
    %v2858 = vmul.f32 %v2794, 0.2
    %v2859 = vmul.f32 %v2795, 0.2
    %v2860 = vmul.f32 %v2796, 0.2
    %v2861 = vmul.f32 %v2797, 0.2
    %v2862 = vmul.f32 %v2798, 0.2
    %v2863 = vmul.f32 %v2799, 0.2
    %v2864 = vmul.f32 %v2800, 0.2
    %v2865 = vmul.f32 %v2801, 0.2
    %v2866 = vmul.f32 %v2802, 0.2
    %v2867 = vmul.f32 %v2803, 0.2
    %v2868 = vmul.f32 %v2804, 0.2
    %v2869 = vmul.f32 %v2805, 0.2
    %v2870 = vmul.f32 %v2806, 0.2
    %v2871 = vmul.f32 %v2807, 0.2
    %v2872 = vmul.f32 %v2808, 0.2
    %v2873 = vmul.f32 %v2809, 0.2
    %v2874 = vmul.f32 %v2810, 0.2
    %v2875 = vmul.f32 %v2811, 0.2
    %v2876 = vmul.f32 %v2812, 0.2
    %v2877 = vmul.f32 %v2813, 0.2
    %v2878 = vmul.f32 %v2814, 0.2
    %v2879 = vmul.f32 %v2815, 0.2
    %v2880 = vmul.f32 %v2816, 0.2
    %v2881 = vmul.f32 %v2817, 0.2
    %v2882 = vmul.f32 %v2818, 0.2
    %v2883 = vmul.f32 %v2819, 0.2
    %v2884 = vmul.f32 %v2820, 0.2
    %v2885 = vmul.f32 %v2821, 0.2
    %v2886 = vmul.f32 %v2822, 0.2
    %v2887 = vmul.f32 %v2823, 0.2
    %v2888 = vmul.f32 %v2824, 0.2
    %v2889 = vsel %vm2825, %v2793, %v2857
    %v2890 = vsel %vm2826, %v2794, %v2858
    %v2891 = vsel %vm2827, %v2795, %v2859
    %v2892 = vsel %vm2828, %v2796, %v2860
    %v2893 = vsel %vm2829, %v2797, %v2861
    %v2894 = vsel %vm2830, %v2798, %v2862
    %v2895 = vsel %vm2831, %v2799, %v2863
    %v2896 = vsel %vm2832, %v2800, %v2864
    %v2897 = vsel %vm2833, %v2801, %v2865
    %v2898 = vsel %vm2834, %v2802, %v2866
    %v2899 = vsel %vm2835, %v2803, %v2867
    %v2900 = vsel %vm2836, %v2804, %v2868
    %v2901 = vsel %vm2837, %v2805, %v2869
    %v2902 = vsel %vm2838, %v2806, %v2870
    %v2903 = vsel %vm2839, %v2807, %v2871
    %v2904 = vsel %vm2840, %v2808, %v2872
    %v2905 = vsel %vm2841, %v2809, %v2873
    %v2906 = vsel %vm2842, %v2810, %v2874
    %v2907 = vsel %vm2843, %v2811, %v2875
    %v2908 = vsel %vm2844, %v2812, %v2876
    %v2909 = vsel %vm2845, %v2813, %v2877
    %v2910 = vsel %vm2846, %v2814, %v2878
    %v2911 = vsel %vm2847, %v2815, %v2879
    %v2912 = vsel %vm2848, %v2816, %v2880
    %v2913 = vsel %vm2849, %v2817, %v2881
    %v2914 = vsel %vm2850, %v2818, %v2882
    %v2915 = vsel %vm2851, %v2819, %v2883
    %v2916 = vsel %vm2852, %v2820, %v2884
    %v2917 = vsel %vm2853, %v2821, %v2885
    %v2918 = vsel %vm2854, %v2822, %v2886
    %v2919 = vsel %vm2855, %v2823, %v2887
    %v2920 = vsel %vm2856, %v2824, %v2888
    %v2921 = vperm.slane %v2707, 1
    %2923 = vrot.lane.b32.xlu0 %v2921, 32
    %v2924 = vpop.permute.xlu0 %2923
    %v2926 = vmul.f32 %v2889, %v2924
    %v2927 = vmul.f32 %v2890, %v2924
    %v2928 = vmul.f32 %v2891, %v2924
    %v2929 = vmul.f32 %v2892, %v2924
    %v2930 = vmul.f32 %v2893, %v2924
    %v2931 = vmul.f32 %v2894, %v2924
    %v2932 = vmul.f32 %v2895, %v2924
    %v2933 = vmul.f32 %v2896, %v2924
    %v2934 = vmul.f32 %v2897, %v2924
    %v2935 = vmul.f32 %v2898, %v2924
    %v2936 = vmul.f32 %v2899, %v2924
    %v2937 = vmul.f32 %v2900, %v2924
    %v2938 = vmul.f32 %v2901, %v2924
    %v2939 = vmul.f32 %v2902, %v2924
    %v2940 = vmul.f32 %v2903, %v2924
    %v2941 = vmul.f32 %v2904, %v2924
    %v2942 = vmul.f32 %v2905, %v2924
    %v2943 = vmul.f32 %v2906, %v2924
    %v2944 = vmul.f32 %v2907, %v2924
    %v2945 = vmul.f32 %v2908, %v2924
    %v2946 = vmul.f32 %v2909, %v2924
    %v2947 = vmul.f32 %v2910, %v2924
    %v2948 = vmul.f32 %v2911, %v2924
    %v2949 = vmul.f32 %v2912, %v2924
    %v2950 = vmul.f32 %v2913, %v2924
    %v2951 = vmul.f32 %v2914, %v2924
    %v2952 = vmul.f32 %v2915, %v2924
    %v2953 = vmul.f32 %v2916, %v2924
    %v2954 = vmul.f32 %v2917, %v2924
    %v2955 = vmul.f32 %v2918, %v2924
    %v2956 = vmul.f32 %v2919, %v2924
    %v2957 = vmul.f32 %v2920, %v2924
    %2990 = vrot.lane.b32.xlu0 %v2926, 96
    %v2991 = vpop.permute.xlu0 %2990
    %2992 = vrot.lane.b32.xlu0 %v2927, 96
    %v2993 = vpop.permute.xlu0 %2992
    %2994 = vrot.lane.b32.xlu0 %v2928, 96
    %v2995 = vpop.permute.xlu0 %2994
    %2996 = vrot.lane.b32.xlu0 %v2929, 96
    %v2997 = vpop.permute.xlu0 %2996
    %2998 = vrot.lane.b32.xlu0 %v2930, 96
    %v2999 = vpop.permute.xlu0 %2998
    %3000 = vrot.lane.b32.xlu0 %v2931, 96
    %v3001 = vpop.permute.xlu0 %3000
    %3002 = vrot.lane.b32.xlu0 %v2932, 96
    %v3003 = vpop.permute.xlu0 %3002
    %3004 = vrot.lane.b32.xlu0 %v2933, 96
    %v3005 = vpop.permute.xlu0 %3004
    %3006 = vrot.lane.b32.xlu0 %v2934, 96
    %v3007 = vpop.permute.xlu0 %3006
    %3008 = vrot.lane.b32.xlu0 %v2935, 96
    %v3009 = vpop.permute.xlu0 %3008
    %3010 = vrot.lane.b32.xlu0 %v2936, 96
    %v3011 = vpop.permute.xlu0 %3010
    %3012 = vrot.lane.b32.xlu0 %v2937, 96
    %v3013 = vpop.permute.xlu0 %3012
    %3014 = vrot.lane.b32.xlu0 %v2938, 96
    %v3015 = vpop.permute.xlu0 %3014
    %3016 = vrot.lane.b32.xlu0 %v2939, 96
    %v3017 = vpop.permute.xlu0 %3016
    %3018 = vrot.lane.b32.xlu0 %v2940, 96
    %v3019 = vpop.permute.xlu0 %3018
    %3020 = vrot.lane.b32.xlu0 %v2941, 96
    %v3021 = vpop.permute.xlu0 %3020
    %3022 = vrot.lane.b32.xlu0 %v2942, 96
    %v3023 = vpop.permute.xlu0 %3022
    %3024 = vrot.lane.b32.xlu0 %v2943, 96
    %v3025 = vpop.permute.xlu0 %3024
    %3026 = vrot.lane.b32.xlu0 %v2944, 96
    %v3027 = vpop.permute.xlu0 %3026
    %3028 = vrot.lane.b32.xlu0 %v2945, 96
    %v3029 = vpop.permute.xlu0 %3028
    %3030 = vrot.lane.b32.xlu0 %v2946, 96
    %v3031 = vpop.permute.xlu0 %3030
    %3032 = vrot.lane.b32.xlu0 %v2947, 96
    %v3033 = vpop.permute.xlu0 %3032
    %3034 = vrot.lane.b32.xlu0 %v2948, 96
    %v3035 = vpop.permute.xlu0 %3034
    %3036 = vrot.lane.b32.xlu0 %v2949, 96
    %v3037 = vpop.permute.xlu0 %3036
    %3038 = vrot.lane.b32.xlu0 %v2950, 96
    %v3039 = vpop.permute.xlu0 %3038
    %3040 = vrot.lane.b32.xlu0 %v2951, 96
    %v3041 = vpop.permute.xlu0 %3040
    %3042 = vrot.lane.b32.xlu0 %v2952, 96
    %v3043 = vpop.permute.xlu0 %3042
    %3044 = vrot.lane.b32.xlu0 %v2953, 96
    %v3045 = vpop.permute.xlu0 %3044
    %3046 = vrot.lane.b32.xlu0 %v2954, 96
    %v3047 = vpop.permute.xlu0 %3046
    %3048 = vrot.lane.b32.xlu0 %v2955, 96
    %v3049 = vpop.permute.xlu0 %3048
    %3050 = vrot.lane.b32.xlu0 %v2956, 96
    %v3051 = vpop.permute.xlu0 %3050
    %3052 = vrot.lane.b32.xlu0 %v2957, 96
    %v3053 = vpop.permute.xlu0 %3052
    %v3086 = vsel %vm446, %v2991, 0.0
    %3087 = vadd.xlane.f32.xlu0 %v3086
    %v3088 = vpop.xlane.xlu0 %3087
    %v3089 = vsel %vm446, %v2993, 0.0
    %3090 = vadd.xlane.f32.xlu0 %v3089
    %v3091 = vpop.xlane.xlu0 %3090
    %v3092 = vsel %vm446, %v2995, 0.0
    %3093 = vadd.xlane.f32.xlu0 %v3092
    %v3094 = vpop.xlane.xlu0 %3093
    %v3095 = vsel %vm446, %v2997, 0.0
    %3096 = vadd.xlane.f32.xlu0 %v3095
    %v3097 = vpop.xlane.xlu0 %3096
    %v3098 = vsel %vm446, %v2999, 0.0
    %3099 = vadd.xlane.f32.xlu0 %v3098
    %v3100 = vpop.xlane.xlu0 %3099
    %v3101 = vsel %vm446, %v3001, 0.0
    %3102 = vadd.xlane.f32.xlu0 %v3101
    %v3103 = vpop.xlane.xlu0 %3102
    %v3104 = vsel %vm446, %v3003, 0.0
    %3105 = vadd.xlane.f32.xlu0 %v3104
    %v3106 = vpop.xlane.xlu0 %3105
    %v3107 = vsel %vm446, %v3005, 0.0
    %3108 = vadd.xlane.f32.xlu0 %v3107
    %v3109 = vpop.xlane.xlu0 %3108
    %v3110 = vsel %vm446, %v3007, 0.0
    %3111 = vadd.xlane.f32.xlu0 %v3110
    %v3112 = vpop.xlane.xlu0 %3111
    %v3113 = vsel %vm446, %v3009, 0.0
    %3114 = vadd.xlane.f32.xlu0 %v3113
    %v3115 = vpop.xlane.xlu0 %3114
    %v3116 = vsel %vm446, %v3011, 0.0
    %3117 = vadd.xlane.f32.xlu0 %v3116
    %v3118 = vpop.xlane.xlu0 %3117
    %v3119 = vsel %vm446, %v3013, 0.0
    %3120 = vadd.xlane.f32.xlu0 %v3119
    %v3121 = vpop.xlane.xlu0 %3120
    %v3122 = vsel %vm446, %v3015, 0.0
    %3123 = vadd.xlane.f32.xlu0 %v3122
    %v3124 = vpop.xlane.xlu0 %3123
    %v3125 = vsel %vm446, %v3017, 0.0
    %3126 = vadd.xlane.f32.xlu0 %v3125
    %v3127 = vpop.xlane.xlu0 %3126
    %v3128 = vsel %vm446, %v3019, 0.0
    %3129 = vadd.xlane.f32.xlu0 %v3128
    %v3130 = vpop.xlane.xlu0 %3129
    %v3131 = vsel %vm446, %v3021, 0.0
    %3132 = vadd.xlane.f32.xlu0 %v3131
    %v3133 = vpop.xlane.xlu0 %3132
    %v3134 = vsel %vm446, %v3023, 0.0
    %3135 = vadd.xlane.f32.xlu0 %v3134
    %v3136 = vpop.xlane.xlu0 %3135
    %v3137 = vsel %vm446, %v3025, 0.0
    %3138 = vadd.xlane.f32.xlu0 %v3137
    %v3139 = vpop.xlane.xlu0 %3138
    %v3140 = vsel %vm446, %v3027, 0.0
    %3141 = vadd.xlane.f32.xlu0 %v3140
    %v3142 = vpop.xlane.xlu0 %3141
    %v3143 = vsel %vm446, %v3029, 0.0
    %3144 = vadd.xlane.f32.xlu0 %v3143
    %v3145 = vpop.xlane.xlu0 %3144
    %v3146 = vsel %vm446, %v3031, 0.0
    %3147 = vadd.xlane.f32.xlu0 %v3146
    %v3148 = vpop.xlane.xlu0 %3147
    %v3149 = vsel %vm446, %v3033, 0.0
    %3150 = vadd.xlane.f32.xlu0 %v3149
    %v3151 = vpop.xlane.xlu0 %3150
    %v3152 = vsel %vm446, %v3035, 0.0
    %3153 = vadd.xlane.f32.xlu0 %v3152
    %v3154 = vpop.xlane.xlu0 %3153
    %v3155 = vsel %vm446, %v3037, 0.0
    %3156 = vadd.xlane.f32.xlu0 %v3155
    %v3157 = vpop.xlane.xlu0 %3156
    %v3158 = vsel %vm446, %v3039, 0.0
    %3159 = vadd.xlane.f32.xlu0 %v3158
    %v3160 = vpop.xlane.xlu0 %3159
    %v3161 = vsel %vm446, %v3041, 0.0
    %3162 = vadd.xlane.f32.xlu0 %v3161
    %v3163 = vpop.xlane.xlu0 %3162
    %v3164 = vsel %vm446, %v3043, 0.0
    %3165 = vadd.xlane.f32.xlu0 %v3164
    %v3166 = vpop.xlane.xlu0 %3165
    %v3167 = vsel %vm446, %v3045, 0.0
    %3168 = vadd.xlane.f32.xlu0 %v3167
    %v3169 = vpop.xlane.xlu0 %3168
    %v3170 = vsel %vm446, %v3047, 0.0
    %3171 = vadd.xlane.f32.xlu0 %v3170
    %v3172 = vpop.xlane.xlu0 %3171
    %v3173 = vsel %vm446, %v3049, 0.0
    %3174 = vadd.xlane.f32.xlu0 %v3173
    %v3175 = vpop.xlane.xlu0 %3174
    %v3176 = vsel %vm446, %v3051, 0.0
    %3177 = vadd.xlane.f32.xlu0 %v3176
    %v3178 = vpop.xlane.xlu0 %3177
    %v3179 = vsel %vm446, %v3053, 0.0
    %3180 = vadd.xlane.f32.xlu0 %v3179
    %v3181 = vpop.xlane.xlu0 %3180
    %v3182 = vadd.f32 %v3088, %v551
    %v3183 = vadd.f32 %v3091, %v557
    %v3184 = vadd.f32 %v3094, %v564
    %v3185 = vadd.f32 %v3097, %v570
    %v3186 = vadd.f32 %v3100, %v577
    %v3187 = vadd.f32 %v3103, %v583
    %v3188 = vadd.f32 %v3106, %v590
    %v3189 = vadd.f32 %v3109, %v596
    %v3190 = vadd.f32 %v3112, %v603
    %v3191 = vadd.f32 %v3115, %v609
    %v3192 = vadd.f32 %v3118, %v616
    %v3193 = vadd.f32 %v3121, %v622
    %v3194 = vadd.f32 %v3124, %v629
    %v3195 = vadd.f32 %v3127, %v635
    %v3196 = vadd.f32 %v3130, %v642
    %v3197 = vadd.f32 %v3133, %v648
    %v3198 = vadd.f32 %v3136, %v655
    %v3199 = vadd.f32 %v3139, %v661
    %v3200 = vadd.f32 %v3142, %v668
    %v3201 = vadd.f32 %v3145, %v674
    %v3202 = vadd.f32 %v3148, %v681
    %v3203 = vadd.f32 %v3151, %v687
    %v3204 = vadd.f32 %v3154, %v694
    %v3205 = vadd.f32 %v3157, %v700
    %v3206 = vadd.f32 %v3160, %v707
    %v3207 = vadd.f32 %v3163, %v713
    %v3208 = vadd.f32 %v3166, %v720
    %v3209 = vadd.f32 %v3169, %v726
    %v3210 = vadd.f32 %v3172, %v733
    %v3211 = vadd.f32 %v3175, %v739
    %v3212 = vadd.f32 %v3178, %v746
    %v3213 = vadd.f32 %v3181, %v752
    %3246 = vset.pattern.permute.xlu0 0
    %3247 = vperm.xlu0 %3246, %v3182
    %v3248 = vpop.permute.xlu0 %3247
    %3249 = vset.pattern.permute.xlu0 0
    %3250 = vperm.xlu0 %3249, %v3183
    %v3251 = vpop.permute.xlu0 %3250
    %3252 = vset.pattern.permute.xlu0 0
    %3253 = vperm.xlu0 %3252, %v3184
    %v3254 = vpop.permute.xlu0 %3253
    %3255 = vset.pattern.permute.xlu0 0
    %3256 = vperm.xlu0 %3255, %v3185
    %v3257 = vpop.permute.xlu0 %3256
    %3258 = vset.pattern.permute.xlu0 0
    %3259 = vperm.xlu0 %3258, %v3186
    %v3260 = vpop.permute.xlu0 %3259
    %3261 = vset.pattern.permute.xlu0 0
    %3262 = vperm.xlu0 %3261, %v3187
    %v3263 = vpop.permute.xlu0 %3262
    %3264 = vset.pattern.permute.xlu0 0
    %3265 = vperm.xlu0 %3264, %v3188
    %v3266 = vpop.permute.xlu0 %3265
    %3267 = vset.pattern.permute.xlu0 0
    %3268 = vperm.xlu0 %3267, %v3189
    %v3269 = vpop.permute.xlu0 %3268
    %3270 = vset.pattern.permute.xlu0 0
    %3271 = vperm.xlu0 %3270, %v3190
    %v3272 = vpop.permute.xlu0 %3271
    %3273 = vset.pattern.permute.xlu0 0
    %3274 = vperm.xlu0 %3273, %v3191
    %v3275 = vpop.permute.xlu0 %3274
    %3276 = vset.pattern.permute.xlu0 0
    %3277 = vperm.xlu0 %3276, %v3192
    %v3278 = vpop.permute.xlu0 %3277
    %3279 = vset.pattern.permute.xlu0 0
    %3280 = vperm.xlu0 %3279, %v3193
    %v3281 = vpop.permute.xlu0 %3280
    %3282 = vset.pattern.permute.xlu0 0
    %3283 = vperm.xlu0 %3282, %v3194
    %v3284 = vpop.permute.xlu0 %3283
    %3285 = vset.pattern.permute.xlu0 0
    %3286 = vperm.xlu0 %3285, %v3195
    %v3287 = vpop.permute.xlu0 %3286
    %3288 = vset.pattern.permute.xlu0 0
    %3289 = vperm.xlu0 %3288, %v3196
    %v3290 = vpop.permute.xlu0 %3289
    %3291 = vset.pattern.permute.xlu0 0
    %3292 = vperm.xlu0 %3291, %v3197
    %v3293 = vpop.permute.xlu0 %3292
    %3294 = vset.pattern.permute.xlu0 0
    %3295 = vperm.xlu0 %3294, %v3198
    %v3296 = vpop.permute.xlu0 %3295
    %3297 = vset.pattern.permute.xlu0 0
    %3298 = vperm.xlu0 %3297, %v3199
    %v3299 = vpop.permute.xlu0 %3298
    %3300 = vset.pattern.permute.xlu0 0
    %3301 = vperm.xlu0 %3300, %v3200
    %v3302 = vpop.permute.xlu0 %3301
    %3303 = vset.pattern.permute.xlu0 0
    %3304 = vperm.xlu0 %3303, %v3201
    %v3305 = vpop.permute.xlu0 %3304
    %3306 = vset.pattern.permute.xlu0 0
    %3307 = vperm.xlu0 %3306, %v3202
    %v3308 = vpop.permute.xlu0 %3307
    %3309 = vset.pattern.permute.xlu0 0
    %3310 = vperm.xlu0 %3309, %v3203
    %v3311 = vpop.permute.xlu0 %3310
    %3312 = vset.pattern.permute.xlu0 0
    %3313 = vperm.xlu0 %3312, %v3204
    %v3314 = vpop.permute.xlu0 %3313
    %3315 = vset.pattern.permute.xlu0 0
    %3316 = vperm.xlu0 %3315, %v3205
    %v3317 = vpop.permute.xlu0 %3316
    %3318 = vset.pattern.permute.xlu0 0
    %3319 = vperm.xlu0 %3318, %v3206
    %v3320 = vpop.permute.xlu0 %3319
    %3321 = vset.pattern.permute.xlu0 0
    %3322 = vperm.xlu0 %3321, %v3207
    %v3323 = vpop.permute.xlu0 %3322
    %3324 = vset.pattern.permute.xlu0 0
    %3325 = vperm.xlu0 %3324, %v3208
    %v3326 = vpop.permute.xlu0 %3325
    %3327 = vset.pattern.permute.xlu0 0
    %3328 = vperm.xlu0 %3327, %v3209
    %v3329 = vpop.permute.xlu0 %3328
    %3330 = vset.pattern.permute.xlu0 0
    %3331 = vperm.xlu0 %3330, %v3210
    %v3332 = vpop.permute.xlu0 %3331
    %3333 = vset.pattern.permute.xlu0 0
    %3334 = vperm.xlu0 %3333, %v3211
    %v3335 = vpop.permute.xlu0 %3334
    %3336 = vset.pattern.permute.xlu0 0
    %3337 = vperm.xlu0 %3336, %v3212
    %v3338 = vpop.permute.xlu0 %3337
    %3339 = vset.pattern.permute.xlu0 0
    %3340 = vperm.xlu0 %3339, %v3213
    %v3341 = vpop.permute.xlu0 %3340
    %v3342 = vperm.slane %v3248, %v946
    %v3343 = vperm.slane %v3251, %v948
    %v3344 = vsel %vm950, %v3343, %v3342
    %v3345 = vperm.slane %v3254, %v946
    %v3346 = vperm.slane %v3257, %v948
    %v3347 = vsel %vm950, %v3346, %v3345
    %v3348 = vperm.slane %v3260, %v946
    %v3349 = vperm.slane %v3263, %v948
    %v3350 = vsel %vm950, %v3349, %v3348
    %v3351 = vperm.slane %v3266, %v946
    %v3352 = vperm.slane %v3269, %v948
    %v3353 = vsel %vm950, %v3352, %v3351
    %v3354 = vperm.slane %v3272, %v946
    %v3355 = vperm.slane %v3275, %v948
    %v3356 = vsel %vm950, %v3355, %v3354
    %v3357 = vperm.slane %v3278, %v946
    %v3358 = vperm.slane %v3281, %v948
    %v3359 = vsel %vm950, %v3358, %v3357
    %v3360 = vperm.slane %v3284, %v946
    %v3361 = vperm.slane %v3287, %v948
    %v3362 = vsel %vm950, %v3361, %v3360
    %v3363 = vperm.slane %v3290, %v946
    %v3364 = vperm.slane %v3293, %v948
    %v3365 = vsel %vm950, %v3364, %v3363
    %v3366 = vperm.slane %v3296, %v946
    %v3367 = vperm.slane %v3299, %v948
    %v3368 = vsel %vm950, %v3367, %v3366
    %v3369 = vperm.slane %v3302, %v946
    %v3370 = vperm.slane %v3305, %v948
    %v3371 = vsel %vm950, %v3370, %v3369
    %v3372 = vperm.slane %v3308, %v946
    %v3373 = vperm.slane %v3311, %v948
    %v3374 = vsel %vm950, %v3373, %v3372
    %v3375 = vperm.slane %v3314, %v946
    %v3376 = vperm.slane %v3317, %v948
    %v3377 = vsel %vm950, %v3376, %v3375
    %v3378 = vperm.slane %v3320, %v946
    %v3379 = vperm.slane %v3323, %v948
    %v3380 = vsel %vm950, %v3379, %v3378
    %v3381 = vperm.slane %v3326, %v946
    %v3382 = vperm.slane %v3329, %v948
    %v3383 = vsel %vm950, %v3382, %v3381
    %v3384 = vperm.slane %v3332, %v946
    %v3385 = vperm.slane %v3335, %v948
    %v3386 = vsel %vm950, %v3385, %v3384
    %v3387 = vperm.slane %v3338, %v946
    %v3388 = vperm.slane %v3341, %v948
    %v3389 = vsel %vm950, %v3388, %v3387
    %v3390 = vsel %vm997, %v3347, %v3344
    %v3391 = vsel %vm999, %v3350, %v3390
    %v3392 = vsel %vm1001, %v3353, %v3391
    %v3393 = vsel %vm1003, %v3356, %v3392
    %v3394 = vsel %vm1005, %v3359, %v3393
    %v3395 = vsel %vm1007, %v3362, %v3394
    %v3396 = vsel %vm1009, %v3365, %v3395
    %v3397 = vsel %vm997, %v3371, %v3368
    %v3398 = vsel %vm999, %v3374, %v3397
    %v3399 = vsel %vm1001, %v3377, %v3398
    %v3400 = vsel %vm1003, %v3380, %v3399
    %v3401 = vsel %vm1005, %v3383, %v3400
    %v3402 = vsel %vm1007, %v3386, %v3401
    %v3403 = vsel %vm1009, %v3389, %v3402
    %v3406 = vsel %vm69, %v3396, -inf
    %3407 = vmax.xlane.f32.xlu0 %v3406
    %v3408 = vpop.xlane.xlu0 %3407
    %v3409 = vsel %vm69, %v3403, -inf
    %3410 = vmax.xlane.f32.xlu0 %v3409
    %v3411 = vpop.xlane.xlu0 %3410
    %v3414 = vperm.slane %v3408, 0
    %v3415 = vperm.slane %v3408, 1
    %v3416 = vperm.slane %v3408, 2
    %v3417 = vperm.slane %v3408, 3
    %v3418 = vperm.slane %v3408, 4
    %v3419 = vperm.slane %v3408, 5
    %v3420 = vperm.slane %v3408, 6
    %v3421 = vperm.slane %v3408, 7
    %v3422 = vperm.slane %v3411, 0
    %v3423 = vperm.slane %v3411, 1
    %v3424 = vperm.slane %v3411, 2
    %v3425 = vperm.slane %v3411, 3
    %v3426 = vperm.slane %v3411, 4
    %v3427 = vperm.slane %v3411, 5
    %v3428 = vperm.slane %v3411, 6
    %v3429 = vperm.slane %v3411, 7
    %v3446 = vsub.f32 %v3182, %v3414
    %v3447 = vsub.f32 %v3183, %v3414
    %v3448 = vsub.f32 %v3184, %v3415
    %v3449 = vsub.f32 %v3185, %v3415
    %v3450 = vsub.f32 %v3186, %v3416
    %v3451 = vsub.f32 %v3187, %v3416
    %v3452 = vsub.f32 %v3188, %v3417
    %v3453 = vsub.f32 %v3189, %v3417
    %v3454 = vsub.f32 %v3190, %v3418
    %v3455 = vsub.f32 %v3191, %v3418
    %v3456 = vsub.f32 %v3192, %v3419
    %v3457 = vsub.f32 %v3193, %v3419
    %v3458 = vsub.f32 %v3194, %v3420
    %v3459 = vsub.f32 %v3195, %v3420
    %v3460 = vsub.f32 %v3196, %v3421
    %v3461 = vsub.f32 %v3197, %v3421
    %v3462 = vsub.f32 %v3198, %v3422
    %v3463 = vsub.f32 %v3199, %v3422
    %v3464 = vsub.f32 %v3200, %v3423
    %v3465 = vsub.f32 %v3201, %v3423
    %v3466 = vsub.f32 %v3202, %v3424
    %v3467 = vsub.f32 %v3203, %v3424
    %v3468 = vsub.f32 %v3204, %v3425
    %v3469 = vsub.f32 %v3205, %v3425
    %v3470 = vsub.f32 %v3206, %v3426
    %v3471 = vsub.f32 %v3207, %v3426
    %v3472 = vsub.f32 %v3208, %v3427
    %v3473 = vsub.f32 %v3209, %v3427
    %v3474 = vsub.f32 %v3210, %v3428
    %v3475 = vsub.f32 %v3211, %v3428
    %v3476 = vsub.f32 %v3212, %v3429
    %v3477 = vsub.f32 %v3213, %v3429
    %v3478 = vmul.f32 %v3446, 1.442695
    %v3479 = vpow.pop %v3478
    %v3480 = vmul.f32 %v3447, 1.442695
    %v3481 = vpow.pop %v3480
    %v3482 = vmul.f32 %v3448, 1.442695
    %v3483 = vpow.pop %v3482
    %v3484 = vmul.f32 %v3449, 1.442695
    %v3485 = vpow.pop %v3484
    %v3486 = vmul.f32 %v3450, 1.442695
    %v3487 = vpow.pop %v3486
    %v3488 = vmul.f32 %v3451, 1.442695
    %v3489 = vpow.pop %v3488
    %v3490 = vmul.f32 %v3452, 1.442695
    %v3491 = vpow.pop %v3490
    %v3492 = vmul.f32 %v3453, 1.442695
    %v3493 = vpow.pop %v3492
    %v3494 = vmul.f32 %v3454, 1.442695
    %v3495 = vpow.pop %v3494
    %v3496 = vmul.f32 %v3455, 1.442695
    %v3497 = vpow.pop %v3496
    %v3498 = vmul.f32 %v3456, 1.442695
    %v3499 = vpow.pop %v3498
    %v3500 = vmul.f32 %v3457, 1.442695
    %v3501 = vpow.pop %v3500
    %v3502 = vmul.f32 %v3458, 1.442695
    %v3503 = vpow.pop %v3502
    %v3504 = vmul.f32 %v3459, 1.442695
    %v3505 = vpow.pop %v3504
    %v3506 = vmul.f32 %v3460, 1.442695
    %v3507 = vpow.pop %v3506
    %v3508 = vmul.f32 %v3461, 1.442695
    %v3509 = vpow.pop %v3508
    %v3510 = vmul.f32 %v3462, 1.442695
    %v3511 = vpow.pop %v3510
    %v3512 = vmul.f32 %v3463, 1.442695
    %v3513 = vpow.pop %v3512
    %v3514 = vmul.f32 %v3464, 1.442695
    %v3515 = vpow.pop %v3514
    %v3516 = vmul.f32 %v3465, 1.442695
    %v3517 = vpow.pop %v3516
    %v3518 = vmul.f32 %v3466, 1.442695
    %v3519 = vpow.pop %v3518
    %v3520 = vmul.f32 %v3467, 1.442695
    %v3521 = vpow.pop %v3520
    %v3522 = vmul.f32 %v3468, 1.442695
    %v3523 = vpow.pop %v3522
    %v3524 = vmul.f32 %v3469, 1.442695
    %v3525 = vpow.pop %v3524
    %v3526 = vmul.f32 %v3470, 1.442695
    %v3527 = vpow.pop %v3526
    %v3528 = vmul.f32 %v3471, 1.442695
    %v3529 = vpow.pop %v3528
    %v3530 = vmul.f32 %v3472, 1.442695
    %v3531 = vpow.pop %v3530
    %v3532 = vmul.f32 %v3473, 1.442695
    %v3533 = vpow.pop %v3532
    %v3534 = vmul.f32 %v3474, 1.442695
    %v3535 = vpow.pop %v3534
    %v3536 = vmul.f32 %v3475, 1.442695
    %v3537 = vpow.pop %v3536
    %v3538 = vmul.f32 %v3476, 1.442695
    %v3539 = vpow.pop %v3538
    %v3540 = vmul.f32 %v3477, 1.442695
    %v3541 = vpow.pop %v3540
    %3574 = vset.pattern.permute.xlu0 0
    %3575 = vperm.xlu0 %3574, %v3479
    %v3576 = vpop.permute.xlu0 %3575
    %3577 = vset.pattern.permute.xlu0 0
    %3578 = vperm.xlu0 %3577, %v3481
    %v3579 = vpop.permute.xlu0 %3578
    %3580 = vset.pattern.permute.xlu0 0
    %3581 = vperm.xlu0 %3580, %v3483
    %v3582 = vpop.permute.xlu0 %3581
    %3583 = vset.pattern.permute.xlu0 0
    %3584 = vperm.xlu0 %3583, %v3485
    %v3585 = vpop.permute.xlu0 %3584
    %3586 = vset.pattern.permute.xlu0 0
    %3587 = vperm.xlu0 %3586, %v3487
    %v3588 = vpop.permute.xlu0 %3587
    %3589 = vset.pattern.permute.xlu0 0
    %3590 = vperm.xlu0 %3589, %v3489
    %v3591 = vpop.permute.xlu0 %3590
    %3592 = vset.pattern.permute.xlu0 0
    %3593 = vperm.xlu0 %3592, %v3491
    %v3594 = vpop.permute.xlu0 %3593
    %3595 = vset.pattern.permute.xlu0 0
    %3596 = vperm.xlu0 %3595, %v3493
    %v3597 = vpop.permute.xlu0 %3596
    %3598 = vset.pattern.permute.xlu0 0
    %3599 = vperm.xlu0 %3598, %v3495
    %v3600 = vpop.permute.xlu0 %3599
    %3601 = vset.pattern.permute.xlu0 0
    %3602 = vperm.xlu0 %3601, %v3497
    %v3603 = vpop.permute.xlu0 %3602
    %3604 = vset.pattern.permute.xlu0 0
    %3605 = vperm.xlu0 %3604, %v3499
    %v3606 = vpop.permute.xlu0 %3605
    %3607 = vset.pattern.permute.xlu0 0
    %3608 = vperm.xlu0 %3607, %v3501
    %v3609 = vpop.permute.xlu0 %3608
    %3610 = vset.pattern.permute.xlu0 0
    %3611 = vperm.xlu0 %3610, %v3503
    %v3612 = vpop.permute.xlu0 %3611
    %3613 = vset.pattern.permute.xlu0 0
    %3614 = vperm.xlu0 %3613, %v3505
    %v3615 = vpop.permute.xlu0 %3614
    %3616 = vset.pattern.permute.xlu0 0
    %3617 = vperm.xlu0 %3616, %v3507
    %v3618 = vpop.permute.xlu0 %3617
    %3619 = vset.pattern.permute.xlu0 0
    %3620 = vperm.xlu0 %3619, %v3509
    %v3621 = vpop.permute.xlu0 %3620
    %3622 = vset.pattern.permute.xlu0 0
    %3623 = vperm.xlu0 %3622, %v3511
    %v3624 = vpop.permute.xlu0 %3623
    %3625 = vset.pattern.permute.xlu0 0
    %3626 = vperm.xlu0 %3625, %v3513
    %v3627 = vpop.permute.xlu0 %3626
    %3628 = vset.pattern.permute.xlu0 0
    %3629 = vperm.xlu0 %3628, %v3515
    %v3630 = vpop.permute.xlu0 %3629
    %3631 = vset.pattern.permute.xlu0 0
    %3632 = vperm.xlu0 %3631, %v3517
    %v3633 = vpop.permute.xlu0 %3632
    %3634 = vset.pattern.permute.xlu0 0
    %3635 = vperm.xlu0 %3634, %v3519
    %v3636 = vpop.permute.xlu0 %3635
    %3637 = vset.pattern.permute.xlu0 0
    %3638 = vperm.xlu0 %3637, %v3521
    %v3639 = vpop.permute.xlu0 %3638
    %3640 = vset.pattern.permute.xlu0 0
    %3641 = vperm.xlu0 %3640, %v3523
    %v3642 = vpop.permute.xlu0 %3641
    %3643 = vset.pattern.permute.xlu0 0
    %3644 = vperm.xlu0 %3643, %v3525
    %v3645 = vpop.permute.xlu0 %3644
    %3646 = vset.pattern.permute.xlu0 0
    %3647 = vperm.xlu0 %3646, %v3527
    %v3648 = vpop.permute.xlu0 %3647
    %3649 = vset.pattern.permute.xlu0 0
    %3650 = vperm.xlu0 %3649, %v3529
    %v3651 = vpop.permute.xlu0 %3650
    %3652 = vset.pattern.permute.xlu0 0
    %3653 = vperm.xlu0 %3652, %v3531
    %v3654 = vpop.permute.xlu0 %3653
    %3655 = vset.pattern.permute.xlu0 0
    %3656 = vperm.xlu0 %3655, %v3533
    %v3657 = vpop.permute.xlu0 %3656
    %3658 = vset.pattern.permute.xlu0 0
    %3659 = vperm.xlu0 %3658, %v3535
    %v3660 = vpop.permute.xlu0 %3659
    %3661 = vset.pattern.permute.xlu0 0
    %3662 = vperm.xlu0 %3661, %v3537
    %v3663 = vpop.permute.xlu0 %3662
    %3664 = vset.pattern.permute.xlu0 0
    %3665 = vperm.xlu0 %3664, %v3539
    %v3666 = vpop.permute.xlu0 %3665
    %3667 = vset.pattern.permute.xlu0 0
    %3668 = vperm.xlu0 %3667, %v3541
    %v3669 = vpop.permute.xlu0 %3668
    %v3670 = vperm.slane %v3576, %v946
    %v3671 = vperm.slane %v3579, %v948
    %v3672 = vsel %vm950, %v3671, %v3670
    %v3673 = vperm.slane %v3582, %v946
    %v3674 = vperm.slane %v3585, %v948
    %v3675 = vsel %vm950, %v3674, %v3673
    %v3676 = vperm.slane %v3588, %v946
    %v3677 = vperm.slane %v3591, %v948
    %v3678 = vsel %vm950, %v3677, %v3676
    %v3679 = vperm.slane %v3594, %v946
    %v3680 = vperm.slane %v3597, %v948
    %v3681 = vsel %vm950, %v3680, %v3679
    %v3682 = vperm.slane %v3600, %v946
    %v3683 = vperm.slane %v3603, %v948
    %v3684 = vsel %vm950, %v3683, %v3682
    %v3685 = vperm.slane %v3606, %v946
    %v3686 = vperm.slane %v3609, %v948
    %v3687 = vsel %vm950, %v3686, %v3685
    %v3688 = vperm.slane %v3612, %v946
    %v3689 = vperm.slane %v3615, %v948
    %v3690 = vsel %vm950, %v3689, %v3688
    %v3691 = vperm.slane %v3618, %v946
    %v3692 = vperm.slane %v3621, %v948
    %v3693 = vsel %vm950, %v3692, %v3691
    %v3694 = vperm.slane %v3624, %v946
    %v3695 = vperm.slane %v3627, %v948
    %v3696 = vsel %vm950, %v3695, %v3694
    %v3697 = vperm.slane %v3630, %v946
    %v3698 = vperm.slane %v3633, %v948
    %v3699 = vsel %vm950, %v3698, %v3697
    %v3700 = vperm.slane %v3636, %v946
    %v3701 = vperm.slane %v3639, %v948
    %v3702 = vsel %vm950, %v3701, %v3700
    %v3703 = vperm.slane %v3642, %v946
    %v3704 = vperm.slane %v3645, %v948
    %v3705 = vsel %vm950, %v3704, %v3703
    %v3706 = vperm.slane %v3648, %v946
    %v3707 = vperm.slane %v3651, %v948
    %v3708 = vsel %vm950, %v3707, %v3706
    %v3709 = vperm.slane %v3654, %v946
    %v3710 = vperm.slane %v3657, %v948
    %v3711 = vsel %vm950, %v3710, %v3709
    %v3712 = vperm.slane %v3660, %v946
    %v3713 = vperm.slane %v3663, %v948
    %v3714 = vsel %vm950, %v3713, %v3712
    %v3715 = vperm.slane %v3666, %v946
    %v3716 = vperm.slane %v3669, %v948
    %v3717 = vsel %vm950, %v3716, %v3715
    %v3718 = vsel %vm997, %v3675, %v3672
    %v3719 = vsel %vm999, %v3678, %v3718
    %v3720 = vsel %vm1001, %v3681, %v3719
    %v3721 = vsel %vm1003, %v3684, %v3720
    %v3722 = vsel %vm1005, %v3687, %v3721
    %v3723 = vsel %vm1007, %v3690, %v3722
    %v3724 = vsel %vm1009, %v3693, %v3723
    %v3725 = vsel %vm997, %v3699, %v3696
    %v3726 = vsel %vm999, %v3702, %v3725
    %v3727 = vsel %vm1001, %v3705, %v3726
    %v3728 = vsel %vm1003, %v3708, %v3727
    %v3729 = vsel %vm1005, %v3711, %v3728
    %v3730 = vsel %vm1007, %v3714, %v3729
    %v3731 = vsel %vm1009, %v3717, %v3730
    %v3734 = vsel %vm69, %v3724, 0.0
    %3735 = vadd.xlane.f32.xlu0 %v3734
    %v3736 = vpop.xlane.xlu0 %3735
    %v3737 = vsel %vm69, %v3731, 0.0
    %3738 = vadd.xlane.f32.xlu0 %v3737
    %v3739 = vpop.xlane.xlu0 %3738
    %v3740 = vrcp.pop %v3736
    %v3741 = vrcp.pop %v3739
    %v3744 = vperm.slane %v3740, 0
    %v3745 = vperm.slane %v3740, 1
    %v3746 = vperm.slane %v3740, 2
    %v3747 = vperm.slane %v3740, 3
    %v3748 = vperm.slane %v3740, 4
    %v3749 = vperm.slane %v3740, 5
    %v3750 = vperm.slane %v3740, 6
    %v3751 = vperm.slane %v3740, 7
    %v3752 = vperm.slane %v3741, 0
    %v3753 = vperm.slane %v3741, 1
    %v3754 = vperm.slane %v3741, 2
    %v3755 = vperm.slane %v3741, 3
    %v3756 = vperm.slane %v3741, 4
    %v3757 = vperm.slane %v3741, 5
    %v3758 = vperm.slane %v3741, 6
    %v3759 = vperm.slane %v3741, 7
    %v3776 = vmul.f32 %v3479, %v3744
    %v3777 = vmul.f32 %v3481, %v3744
    %v3778 = vmul.f32 %v3483, %v3745
    %v3779 = vmul.f32 %v3485, %v3745
    %v3780 = vmul.f32 %v3487, %v3746
    %v3781 = vmul.f32 %v3489, %v3746
    %v3782 = vmul.f32 %v3491, %v3747
    %v3783 = vmul.f32 %v3493, %v3747
    %v3784 = vmul.f32 %v3495, %v3748
    %v3785 = vmul.f32 %v3497, %v3748
    %v3786 = vmul.f32 %v3499, %v3749
    %v3787 = vmul.f32 %v3501, %v3749
    %v3788 = vmul.f32 %v3503, %v3750
    %v3789 = vmul.f32 %v3505, %v3750
    %v3790 = vmul.f32 %v3507, %v3751
    %v3791 = vmul.f32 %v3509, %v3751
    %v3792 = vmul.f32 %v3511, %v3752
    %v3793 = vmul.f32 %v3513, %v3752
    %v3794 = vmul.f32 %v3515, %v3753
    %v3795 = vmul.f32 %v3517, %v3753
    %v3796 = vmul.f32 %v3519, %v3754
    %v3797 = vmul.f32 %v3521, %v3754
    %v3798 = vmul.f32 %v3523, %v3755
    %v3799 = vmul.f32 %v3525, %v3755
    %v3800 = vmul.f32 %v3527, %v3756
    %v3801 = vmul.f32 %v3529, %v3756
    %v3802 = vmul.f32 %v3531, %v3757
    %v3803 = vmul.f32 %v3533, %v3757
    %v3804 = vmul.f32 %v3535, %v3758
    %v3805 = vmul.f32 %v3537, %v3758
    %v3806 = vmul.f32 %v3539, %v3759
    %v3807 = vmul.f32 %v3541, %v3759
    %v3808 = vperm.slane %v2707, 2
    %3841 = vset.pattern.permute.xlu0 0
    %3842 = vperm.xlu0 %3841, %v3776
    %v3843 = vpop.permute.xlu0 %3842
    %3844 = vset.pattern.permute.xlu0 0
    %3845 = vperm.xlu0 %3844, %v3777
    %v3846 = vpop.permute.xlu0 %3845
    %3847 = vset.pattern.permute.xlu0 0
    %3848 = vperm.xlu0 %3847, %v3778
    %v3849 = vpop.permute.xlu0 %3848
    %3850 = vset.pattern.permute.xlu0 0
    %3851 = vperm.xlu0 %3850, %v3779
    %v3852 = vpop.permute.xlu0 %3851
    %3853 = vset.pattern.permute.xlu0 0
    %3854 = vperm.xlu0 %3853, %v3780
    %v3855 = vpop.permute.xlu0 %3854
    %3856 = vset.pattern.permute.xlu0 0
    %3857 = vperm.xlu0 %3856, %v3781
    %v3858 = vpop.permute.xlu0 %3857
    %3859 = vset.pattern.permute.xlu0 0
    %3860 = vperm.xlu0 %3859, %v3782
    %v3861 = vpop.permute.xlu0 %3860
    %3862 = vset.pattern.permute.xlu0 0
    %3863 = vperm.xlu0 %3862, %v3783
    %v3864 = vpop.permute.xlu0 %3863
    %3865 = vset.pattern.permute.xlu0 0
    %3866 = vperm.xlu0 %3865, %v3784
    %v3867 = vpop.permute.xlu0 %3866
    %3868 = vset.pattern.permute.xlu0 0
    %3869 = vperm.xlu0 %3868, %v3785
    %v3870 = vpop.permute.xlu0 %3869
    %3871 = vset.pattern.permute.xlu0 0
    %3872 = vperm.xlu0 %3871, %v3786
    %v3873 = vpop.permute.xlu0 %3872
    %3874 = vset.pattern.permute.xlu0 0
    %3875 = vperm.xlu0 %3874, %v3787
    %v3876 = vpop.permute.xlu0 %3875
    %3877 = vset.pattern.permute.xlu0 0
    %3878 = vperm.xlu0 %3877, %v3788
    %v3879 = vpop.permute.xlu0 %3878
    %3880 = vset.pattern.permute.xlu0 0
    %3881 = vperm.xlu0 %3880, %v3789
    %v3882 = vpop.permute.xlu0 %3881
    %3883 = vset.pattern.permute.xlu0 0
    %3884 = vperm.xlu0 %3883, %v3790
    %v3885 = vpop.permute.xlu0 %3884
    %3886 = vset.pattern.permute.xlu0 0
    %3887 = vperm.xlu0 %3886, %v3791
    %v3888 = vpop.permute.xlu0 %3887
    %3889 = vset.pattern.permute.xlu0 0
    %3890 = vperm.xlu0 %3889, %v3792
    %v3891 = vpop.permute.xlu0 %3890
    %3892 = vset.pattern.permute.xlu0 0
    %3893 = vperm.xlu0 %3892, %v3793
    %v3894 = vpop.permute.xlu0 %3893
    %3895 = vset.pattern.permute.xlu0 0
    %3896 = vperm.xlu0 %3895, %v3794
    %v3897 = vpop.permute.xlu0 %3896
    %3898 = vset.pattern.permute.xlu0 0
    %3899 = vperm.xlu0 %3898, %v3795
    %v3900 = vpop.permute.xlu0 %3899
    %3901 = vset.pattern.permute.xlu0 0
    %3902 = vperm.xlu0 %3901, %v3796
    %v3903 = vpop.permute.xlu0 %3902
    %3904 = vset.pattern.permute.xlu0 0
    %3905 = vperm.xlu0 %3904, %v3797
    %v3906 = vpop.permute.xlu0 %3905
    %3907 = vset.pattern.permute.xlu0 0
    %3908 = vperm.xlu0 %3907, %v3798
    %v3909 = vpop.permute.xlu0 %3908
    %3910 = vset.pattern.permute.xlu0 0
    %3911 = vperm.xlu0 %3910, %v3799
    %v3912 = vpop.permute.xlu0 %3911
    %3913 = vset.pattern.permute.xlu0 0
    %3914 = vperm.xlu0 %3913, %v3800
    %v3915 = vpop.permute.xlu0 %3914
    %3916 = vset.pattern.permute.xlu0 0
    %3917 = vperm.xlu0 %3916, %v3801
    %v3918 = vpop.permute.xlu0 %3917
    %3919 = vset.pattern.permute.xlu0 0
    %3920 = vperm.xlu0 %3919, %v3802
    %v3921 = vpop.permute.xlu0 %3920
    %3922 = vset.pattern.permute.xlu0 0
    %3923 = vperm.xlu0 %3922, %v3803
    %v3924 = vpop.permute.xlu0 %3923
    %3925 = vset.pattern.permute.xlu0 0
    %3926 = vperm.xlu0 %3925, %v3804
    %v3927 = vpop.permute.xlu0 %3926
    %3928 = vset.pattern.permute.xlu0 0
    %3929 = vperm.xlu0 %3928, %v3805
    %v3930 = vpop.permute.xlu0 %3929
    %3931 = vset.pattern.permute.xlu0 0
    %3932 = vperm.xlu0 %3931, %v3806
    %v3933 = vpop.permute.xlu0 %3932
    %3934 = vset.pattern.permute.xlu0 0
    %3935 = vperm.xlu0 %3934, %v3807
    %v3936 = vpop.permute.xlu0 %3935
    %v3937 = vperm.slane %v3843, %v946
    %v3938 = vperm.slane %v3846, %v948
    %v3939 = vsel %vm950, %v3938, %v3937
    %v3940 = vperm.slane %v3849, %v946
    %v3941 = vperm.slane %v3852, %v948
    %v3942 = vsel %vm950, %v3941, %v3940
    %v3943 = vperm.slane %v3855, %v946
    %v3944 = vperm.slane %v3858, %v948
    %v3945 = vsel %vm950, %v3944, %v3943
    %v3946 = vperm.slane %v3861, %v946
    %v3947 = vperm.slane %v3864, %v948
    %v3948 = vsel %vm950, %v3947, %v3946
    %v3949 = vperm.slane %v3867, %v946
    %v3950 = vperm.slane %v3870, %v948
    %v3951 = vsel %vm950, %v3950, %v3949
    %v3952 = vperm.slane %v3873, %v946
    %v3953 = vperm.slane %v3876, %v948
    %v3954 = vsel %vm950, %v3953, %v3952
    %v3955 = vperm.slane %v3879, %v946
    %v3956 = vperm.slane %v3882, %v948
    %v3957 = vsel %vm950, %v3956, %v3955
    %v3958 = vperm.slane %v3885, %v946
    %v3959 = vperm.slane %v3888, %v948
    %v3960 = vsel %vm950, %v3959, %v3958
    %v3961 = vperm.slane %v3891, %v946
    %v3962 = vperm.slane %v3894, %v948
    %v3963 = vsel %vm950, %v3962, %v3961
    %v3964 = vperm.slane %v3897, %v946
    %v3965 = vperm.slane %v3900, %v948
    %v3966 = vsel %vm950, %v3965, %v3964
    %v3967 = vperm.slane %v3903, %v946
    %v3968 = vperm.slane %v3906, %v948
    %v3969 = vsel %vm950, %v3968, %v3967
    %v3970 = vperm.slane %v3909, %v946
    %v3971 = vperm.slane %v3912, %v948
    %v3972 = vsel %vm950, %v3971, %v3970
    %v3973 = vperm.slane %v3915, %v946
    %v3974 = vperm.slane %v3918, %v948
    %v3975 = vsel %vm950, %v3974, %v3973
    %v3976 = vperm.slane %v3921, %v946
    %v3977 = vperm.slane %v3924, %v948
    %v3978 = vsel %vm950, %v3977, %v3976
    %v3979 = vperm.slane %v3927, %v946
    %v3980 = vperm.slane %v3930, %v948
    %v3981 = vsel %vm950, %v3980, %v3979
    %v3982 = vperm.slane %v3933, %v946
    %v3983 = vperm.slane %v3936, %v948
    %v3984 = vsel %vm950, %v3983, %v3982
    %v3985 = vsel %vm997, %v3942, %v3939
    %v3986 = vsel %vm999, %v3945, %v3985
    %v3987 = vsel %vm1001, %v3948, %v3986
    %v3988 = vsel %vm1003, %v3951, %v3987
    %v3989 = vsel %vm1005, %v3954, %v3988
    %v3990 = vsel %vm1007, %v3957, %v3989
    %v3991 = vsel %vm1009, %v3960, %v3990
    %v3992 = vsel %vm997, %v3966, %v3963
    %v3993 = vsel %vm999, %v3969, %v3992
    %v3994 = vsel %vm1001, %v3972, %v3993
    %v3995 = vsel %vm1003, %v3975, %v3994
    %v3996 = vsel %vm1005, %v3978, %v3995
    %v3997 = vsel %vm1007, %v3981, %v3996
    %v3998 = vsel %vm1009, %v3984, %v3997
    %v3999 = vsel %vm69, %v3991, 0
    %v4001 = vsel %vm69, %v3998, 0
    %4003 = vmatpush.msra.mxu0 0.0
    %4004 = vmatpush.msra.mxu0 0.0
    %4005 = vmatpush.msra.mxu0 0.0
    %4006 = vmatpush.msra.mxu0 0.0
    %4007 = vmatpush.msra.mxu0 0.0
    %4008 = vmatpush.msra.mxu0 0.0
    %4009 = vmatpush.msra.mxu0 0.0
    %4010 = vmatpush.msra.mxu0 0.0
    %4011 = vmatpush.msra.mxu0 0.0
    %4012 = vmatpush.msra.mxu0 0.0
    %4013 = vmatpush.msra.mxu0 0.0
    %4014 = vmatpush.msra.mxu0 0.0
    %4015 = vmatpush.msra.mxu0 0.0
    %4016 = vmatpush.msra.mxu0 0.0
    %4017 = vmatpush.msra.mxu0 %v2737
    %4018 = vmatpush.msra.mxu0 %v2734
    %4019 = vmatmul.f32.gmra.mxu0 %v3999
    %v4020 = vpop.f32.mrf.mxu0
    %v4021 = vadd.f32 %v3808, %v4020
    %4022 = vmatmul.f32.gmra.mxu0 %v4001
    %v4023 = vpop.f32.mrf.mxu0
    %v4024 = vadd.f32 %v3808, %v4023
    %4025 = vdwg.mxu0
    %v4026 = vmax.f32 %v4021, 0.0
    %v4027 = vmax.f32 %v4024, 0.0
    %v4028 = vld [vmem:[#allocation6 + $0x60] sm:$0xff]
    %v4029 = vld [vmem:[#allocation6 + $0x68] sm:$0xff]
    %v4030 = vld [vmem:[#allocation6 + $0x70] sm:$0xff]
    %v4031 = vld [vmem:[#allocation6 + $0x78] sm:$0xff]
    %v4032 = vld [vmem:[#allocation6 + $0x80] sm:$0xff]
    %v4033 = vperm.slane %v4032, 0
    %v4035 = vsel %vm446, %v4026, 0
    %v4038 = vsel %vm446, %v4027, 0
    %4040 = vmatpush.msra.mxu0 0.0
    %4041 = vmatpush.msra.mxu0 0.0
    %4042 = vmatpush.msra.mxu0 0.0
    %4043 = vmatpush.msra.mxu0 0.0
    %4044 = vmatpush.msra.mxu0 0.0
    %4045 = vmatpush.msra.mxu0 0.0
    %4046 = vmatpush.msra.mxu0 0.0
    %4047 = vmatpush.msra.mxu0 0.0
    %4048 = vmatpush.msra.mxu0 0.0
    %4049 = vmatpush.msra.mxu0 0.0
    %4050 = vmatpush.msra.mxu0 0.0
    %4051 = vmatpush.msra.mxu0 0.0
    %4052 = vmatpush.msra.mxu0 %v4031
    %4053 = vmatpush.msra.mxu0 %v4030
    %4054 = vmatpush.msra.mxu0 %v4029
    %4055 = vmatpush.msra.mxu0 %v4028
    %4056 = vmatmul.f32.gmra.mxu0 %v4035
    %v4057 = vpop.f32.mrf.mxu0
    %v4058 = vadd.f32 %v4033, %v4057
    %4059 = vmatmul.f32.gmra.mxu0 %v4038
    %v4060 = vpop.f32.mrf.mxu0
    %v4061 = vadd.f32 %v4033, %v4060
    %4062 = vdwg.mxu0
    %v4065 = vrot.slane %v4058, 1
    %v4066 = vrot.slane %v4058, 2
    %v4067 = vrot.slane %v4058, 3
    %v4068 = vrot.slane %v4058, 4
    %v4069 = vrot.slane %v4058, 5
    %v4070 = vrot.slane %v4058, 6
    %v4071 = vrot.slane %v4058, 7
    %v4072 = vrot.slane %v4061, 1
    %v4073 = vrot.slane %v4061, 2
    %v4074 = vrot.slane %v4061, 3
    %v4075 = vrot.slane %v4061, 4
    %v4076 = vrot.slane %v4061, 5
    %v4077 = vrot.slane %v4061, 6
    %v4078 = vrot.slane %v4061, 7
    %v4079 = vperm.slane %v4058, 0
    %v4080 = vperm.slane %v4065, 0
    %v4081 = vperm.slane %v4066, 0
    %v4082 = vperm.slane %v4067, 0
    %v4083 = vperm.slane %v4068, 0
    %v4084 = vperm.slane %v4069, 0
    %v4085 = vperm.slane %v4070, 0
    %v4086 = vperm.slane %v4071, 0
    %v4087 = vperm.slane %v4061, 0
    %v4088 = vperm.slane %v4072, 0
    %v4089 = vperm.slane %v4073, 0
    %v4090 = vperm.slane %v4074, 0
    %v4091 = vperm.slane %v4075, 0
    %v4092 = vperm.slane %v4076, 0
    %v4093 = vperm.slane %v4077, 0
    %v4094 = vperm.slane %v4078, 0
    %4111 = vrot.lane.b32.xlu0 %v4058, 64
    %v4112 = vpop.permute.xlu0 %4111
    %4113 = vrot.lane.b32.xlu0 %v4061, 64
    %v4114 = vpop.permute.xlu0 %4113
    %v4117 = vadd.f32 %v4079, %v4112
    %v4118 = vadd.f32 %v4079, %v4114
    %v4119 = vadd.f32 %v4080, %v4112
    %v4120 = vadd.f32 %v4080, %v4114
    %v4121 = vadd.f32 %v4081, %v4112
    %v4122 = vadd.f32 %v4081, %v4114
    %v4123 = vadd.f32 %v4082, %v4112
    %v4124 = vadd.f32 %v4082, %v4114
    %v4125 = vadd.f32 %v4083, %v4112
    %v4126 = vadd.f32 %v4083, %v4114
    %v4127 = vadd.f32 %v4084, %v4112
    %v4128 = vadd.f32 %v4084, %v4114
    %v4129 = vadd.f32 %v4085, %v4112
    %v4130 = vadd.f32 %v4085, %v4114
    %v4131 = vadd.f32 %v4086, %v4112
    %v4132 = vadd.f32 %v4086, %v4114
    %v4133 = vadd.f32 %v4087, %v4112
    %v4134 = vadd.f32 %v4087, %v4114
    %v4135 = vadd.f32 %v4088, %v4112
    %v4136 = vadd.f32 %v4088, %v4114
    %v4137 = vadd.f32 %v4089, %v4112
    %v4138 = vadd.f32 %v4089, %v4114
    %v4139 = vadd.f32 %v4090, %v4112
    %v4140 = vadd.f32 %v4090, %v4114
    %v4141 = vadd.f32 %v4091, %v4112
    %v4142 = vadd.f32 %v4091, %v4114
    %v4143 = vadd.f32 %v4092, %v4112
    %v4144 = vadd.f32 %v4092, %v4114
    %v4145 = vadd.f32 %v4093, %v4112
    %v4146 = vadd.f32 %v4093, %v4114
    %v4147 = vadd.f32 %v4094, %v4112
    %v4148 = vadd.f32 %v4094, %v4114
    %vm4149 = vcmp.gt.f32.partialorder %v4117, 0.0
    %vm4150 = vcmp.gt.f32.partialorder %v4118, 0.0
    %vm4151 = vcmp.gt.f32.partialorder %v4119, 0.0
    %vm4152 = vcmp.gt.f32.partialorder %v4120, 0.0
    %vm4153 = vcmp.gt.f32.partialorder %v4121, 0.0
    %vm4154 = vcmp.gt.f32.partialorder %v4122, 0.0
    %vm4155 = vcmp.gt.f32.partialorder %v4123, 0.0
    %vm4156 = vcmp.gt.f32.partialorder %v4124, 0.0
    %vm4157 = vcmp.gt.f32.partialorder %v4125, 0.0
    %vm4158 = vcmp.gt.f32.partialorder %v4126, 0.0
    %vm4159 = vcmp.gt.f32.partialorder %v4127, 0.0
    %vm4160 = vcmp.gt.f32.partialorder %v4128, 0.0
    %vm4161 = vcmp.gt.f32.partialorder %v4129, 0.0
    %vm4162 = vcmp.gt.f32.partialorder %v4130, 0.0
    %vm4163 = vcmp.gt.f32.partialorder %v4131, 0.0
    %vm4164 = vcmp.gt.f32.partialorder %v4132, 0.0
    %vm4165 = vcmp.gt.f32.partialorder %v4133, 0.0
    %vm4166 = vcmp.gt.f32.partialorder %v4134, 0.0
    %vm4167 = vcmp.gt.f32.partialorder %v4135, 0.0
    %vm4168 = vcmp.gt.f32.partialorder %v4136, 0.0
    %vm4169 = vcmp.gt.f32.partialorder %v4137, 0.0
    %vm4170 = vcmp.gt.f32.partialorder %v4138, 0.0
    %vm4171 = vcmp.gt.f32.partialorder %v4139, 0.0
    %vm4172 = vcmp.gt.f32.partialorder %v4140, 0.0
    %vm4173 = vcmp.gt.f32.partialorder %v4141, 0.0
    %vm4174 = vcmp.gt.f32.partialorder %v4142, 0.0
    %vm4175 = vcmp.gt.f32.partialorder %v4143, 0.0
    %vm4176 = vcmp.gt.f32.partialorder %v4144, 0.0
    %vm4177 = vcmp.gt.f32.partialorder %v4145, 0.0
    %vm4178 = vcmp.gt.f32.partialorder %v4146, 0.0
    %vm4179 = vcmp.gt.f32.partialorder %v4147, 0.0
    %vm4180 = vcmp.gt.f32.partialorder %v4148, 0.0
    %v4181 = vmul.f32 %v4117, 0.2
    %v4182 = vmul.f32 %v4118, 0.2
    %v4183 = vmul.f32 %v4119, 0.2
    %v4184 = vmul.f32 %v4120, 0.2
    %v4185 = vmul.f32 %v4121, 0.2
    %v4186 = vmul.f32 %v4122, 0.2
    %v4187 = vmul.f32 %v4123, 0.2
    %v4188 = vmul.f32 %v4124, 0.2
    %v4189 = vmul.f32 %v4125, 0.2
    %v4190 = vmul.f32 %v4126, 0.2
    %v4191 = vmul.f32 %v4127, 0.2
    %v4192 = vmul.f32 %v4128, 0.2
    %v4193 = vmul.f32 %v4129, 0.2
    %v4194 = vmul.f32 %v4130, 0.2
    %v4195 = vmul.f32 %v4131, 0.2
    %v4196 = vmul.f32 %v4132, 0.2
    %v4197 = vmul.f32 %v4133, 0.2
    %v4198 = vmul.f32 %v4134, 0.2
    %v4199 = vmul.f32 %v4135, 0.2
    %v4200 = vmul.f32 %v4136, 0.2
    %v4201 = vmul.f32 %v4137, 0.2
    %v4202 = vmul.f32 %v4138, 0.2
    %v4203 = vmul.f32 %v4139, 0.2
    %v4204 = vmul.f32 %v4140, 0.2
    %v4205 = vmul.f32 %v4141, 0.2
    %v4206 = vmul.f32 %v4142, 0.2
    %v4207 = vmul.f32 %v4143, 0.2
    %v4208 = vmul.f32 %v4144, 0.2
    %v4209 = vmul.f32 %v4145, 0.2
    %v4210 = vmul.f32 %v4146, 0.2
    %v4211 = vmul.f32 %v4147, 0.2
    %v4212 = vmul.f32 %v4148, 0.2
    %v4213 = vsel %vm4149, %v4117, %v4181
    %v4214 = vsel %vm4150, %v4118, %v4182
    %v4215 = vsel %vm4151, %v4119, %v4183
    %v4216 = vsel %vm4152, %v4120, %v4184
    %v4217 = vsel %vm4153, %v4121, %v4185
    %v4218 = vsel %vm4154, %v4122, %v4186
    %v4219 = vsel %vm4155, %v4123, %v4187
    %v4220 = vsel %vm4156, %v4124, %v4188
    %v4221 = vsel %vm4157, %v4125, %v4189
    %v4222 = vsel %vm4158, %v4126, %v4190
    %v4223 = vsel %vm4159, %v4127, %v4191
    %v4224 = vsel %vm4160, %v4128, %v4192
    %v4225 = vsel %vm4161, %v4129, %v4193
    %v4226 = vsel %vm4162, %v4130, %v4194
    %v4227 = vsel %vm4163, %v4131, %v4195
    %v4228 = vsel %vm4164, %v4132, %v4196
    %v4229 = vsel %vm4165, %v4133, %v4197
    %v4230 = vsel %vm4166, %v4134, %v4198
    %v4231 = vsel %vm4167, %v4135, %v4199
    %v4232 = vsel %vm4168, %v4136, %v4200
    %v4233 = vsel %vm4169, %v4137, %v4201
    %v4234 = vsel %vm4170, %v4138, %v4202
    %v4235 = vsel %vm4171, %v4139, %v4203
    %v4236 = vsel %vm4172, %v4140, %v4204
    %v4237 = vsel %vm4173, %v4141, %v4205
    %v4238 = vsel %vm4174, %v4142, %v4206
    %v4239 = vsel %vm4175, %v4143, %v4207
    %v4240 = vsel %vm4176, %v4144, %v4208
    %v4241 = vsel %vm4177, %v4145, %v4209
    %v4242 = vsel %vm4178, %v4146, %v4210
    %v4243 = vsel %vm4179, %v4147, %v4211
    %v4244 = vsel %vm4180, %v4148, %v4212
    %v4245 = vperm.slane %v4032, 1
    %4247 = vrot.lane.b32.xlu0 %v4245, 64
    %v4248 = vpop.permute.xlu0 %4247
    %v4250 = vmul.f32 %v4213, %v4248
    %v4251 = vmul.f32 %v4214, %v4248
    %v4252 = vmul.f32 %v4215, %v4248
    %v4253 = vmul.f32 %v4216, %v4248
    %v4254 = vmul.f32 %v4217, %v4248
    %v4255 = vmul.f32 %v4218, %v4248
    %v4256 = vmul.f32 %v4219, %v4248
    %v4257 = vmul.f32 %v4220, %v4248
    %v4258 = vmul.f32 %v4221, %v4248
    %v4259 = vmul.f32 %v4222, %v4248
    %v4260 = vmul.f32 %v4223, %v4248
    %v4261 = vmul.f32 %v4224, %v4248
    %v4262 = vmul.f32 %v4225, %v4248
    %v4263 = vmul.f32 %v4226, %v4248
    %v4264 = vmul.f32 %v4227, %v4248
    %v4265 = vmul.f32 %v4228, %v4248
    %v4266 = vmul.f32 %v4229, %v4248
    %v4267 = vmul.f32 %v4230, %v4248
    %v4268 = vmul.f32 %v4231, %v4248
    %v4269 = vmul.f32 %v4232, %v4248
    %v4270 = vmul.f32 %v4233, %v4248
    %v4271 = vmul.f32 %v4234, %v4248
    %v4272 = vmul.f32 %v4235, %v4248
    %v4273 = vmul.f32 %v4236, %v4248
    %v4274 = vmul.f32 %v4237, %v4248
    %v4275 = vmul.f32 %v4238, %v4248
    %v4276 = vmul.f32 %v4239, %v4248
    %v4277 = vmul.f32 %v4240, %v4248
    %v4278 = vmul.f32 %v4241, %v4248
    %v4279 = vmul.f32 %v4242, %v4248
    %v4280 = vmul.f32 %v4243, %v4248
    %v4281 = vmul.f32 %v4244, %v4248
    %4314 = vrot.lane.b32.xlu0 %v4250, 64
    %v4315 = vpop.permute.xlu0 %4314
    %4316 = vrot.lane.b32.xlu0 %v4251, 64
    %v4317 = vpop.permute.xlu0 %4316
    %4318 = vrot.lane.b32.xlu0 %v4252, 64
    %v4319 = vpop.permute.xlu0 %4318
    %4320 = vrot.lane.b32.xlu0 %v4253, 64
    %v4321 = vpop.permute.xlu0 %4320
    %4322 = vrot.lane.b32.xlu0 %v4254, 64
    %v4323 = vpop.permute.xlu0 %4322
    %4324 = vrot.lane.b32.xlu0 %v4255, 64
    %v4325 = vpop.permute.xlu0 %4324
    %4326 = vrot.lane.b32.xlu0 %v4256, 64
    %v4327 = vpop.permute.xlu0 %4326
    %4328 = vrot.lane.b32.xlu0 %v4257, 64
    %v4329 = vpop.permute.xlu0 %4328
    %4330 = vrot.lane.b32.xlu0 %v4258, 64
    %v4331 = vpop.permute.xlu0 %4330
    %4332 = vrot.lane.b32.xlu0 %v4259, 64
    %v4333 = vpop.permute.xlu0 %4332
    %4334 = vrot.lane.b32.xlu0 %v4260, 64
    %v4335 = vpop.permute.xlu0 %4334
    %4336 = vrot.lane.b32.xlu0 %v4261, 64
    %v4337 = vpop.permute.xlu0 %4336
    %4338 = vrot.lane.b32.xlu0 %v4262, 64
    %v4339 = vpop.permute.xlu0 %4338
    %4340 = vrot.lane.b32.xlu0 %v4263, 64
    %v4341 = vpop.permute.xlu0 %4340
    %4342 = vrot.lane.b32.xlu0 %v4264, 64
    %v4343 = vpop.permute.xlu0 %4342
    %4344 = vrot.lane.b32.xlu0 %v4265, 64
    %v4345 = vpop.permute.xlu0 %4344
    %4346 = vrot.lane.b32.xlu0 %v4266, 64
    %v4347 = vpop.permute.xlu0 %4346
    %4348 = vrot.lane.b32.xlu0 %v4267, 64
    %v4349 = vpop.permute.xlu0 %4348
    %4350 = vrot.lane.b32.xlu0 %v4268, 64
    %v4351 = vpop.permute.xlu0 %4350
    %4352 = vrot.lane.b32.xlu0 %v4269, 64
    %v4353 = vpop.permute.xlu0 %4352
    %4354 = vrot.lane.b32.xlu0 %v4270, 64
    %v4355 = vpop.permute.xlu0 %4354
    %4356 = vrot.lane.b32.xlu0 %v4271, 64
    %v4357 = vpop.permute.xlu0 %4356
    %4358 = vrot.lane.b32.xlu0 %v4272, 64
    %v4359 = vpop.permute.xlu0 %4358
    %4360 = vrot.lane.b32.xlu0 %v4273, 64
    %v4361 = vpop.permute.xlu0 %4360
    %4362 = vrot.lane.b32.xlu0 %v4274, 64
    %v4363 = vpop.permute.xlu0 %4362
    %4364 = vrot.lane.b32.xlu0 %v4275, 64
    %v4365 = vpop.permute.xlu0 %4364
    %4366 = vrot.lane.b32.xlu0 %v4276, 64
    %v4367 = vpop.permute.xlu0 %4366
    %4368 = vrot.lane.b32.xlu0 %v4277, 64
    %v4369 = vpop.permute.xlu0 %4368
    %4370 = vrot.lane.b32.xlu0 %v4278, 64
    %v4371 = vpop.permute.xlu0 %4370
    %4372 = vrot.lane.b32.xlu0 %v4279, 64
    %v4373 = vpop.permute.xlu0 %4372
    %4374 = vrot.lane.b32.xlu0 %v4280, 64
    %v4375 = vpop.permute.xlu0 %4374
    %4376 = vrot.lane.b32.xlu0 %v4281, 64
    %v4377 = vpop.permute.xlu0 %4376
    %v4410 = vsel %vm446, %v4315, 0.0
    %4411 = vadd.xlane.f32.xlu0 %v4410
    %v4412 = vpop.xlane.xlu0 %4411
    %v4413 = vsel %vm446, %v4317, 0.0
    %4414 = vadd.xlane.f32.xlu0 %v4413
    %v4415 = vpop.xlane.xlu0 %4414
    %v4416 = vsel %vm446, %v4319, 0.0
    %4417 = vadd.xlane.f32.xlu0 %v4416
    %v4418 = vpop.xlane.xlu0 %4417
    %v4419 = vsel %vm446, %v4321, 0.0
    %4420 = vadd.xlane.f32.xlu0 %v4419
    %v4421 = vpop.xlane.xlu0 %4420
    %v4422 = vsel %vm446, %v4323, 0.0
    %4423 = vadd.xlane.f32.xlu0 %v4422
    %v4424 = vpop.xlane.xlu0 %4423
    %v4425 = vsel %vm446, %v4325, 0.0
    %4426 = vadd.xlane.f32.xlu0 %v4425
    %v4427 = vpop.xlane.xlu0 %4426
    %v4428 = vsel %vm446, %v4327, 0.0
    %4429 = vadd.xlane.f32.xlu0 %v4428
    %v4430 = vpop.xlane.xlu0 %4429
    %v4431 = vsel %vm446, %v4329, 0.0
    %4432 = vadd.xlane.f32.xlu0 %v4431
    %v4433 = vpop.xlane.xlu0 %4432
    %v4434 = vsel %vm446, %v4331, 0.0
    %4435 = vadd.xlane.f32.xlu0 %v4434
    %v4436 = vpop.xlane.xlu0 %4435
    %v4437 = vsel %vm446, %v4333, 0.0
    %4438 = vadd.xlane.f32.xlu0 %v4437
    %v4439 = vpop.xlane.xlu0 %4438
    %v4440 = vsel %vm446, %v4335, 0.0
    %4441 = vadd.xlane.f32.xlu0 %v4440
    %v4442 = vpop.xlane.xlu0 %4441
    %v4443 = vsel %vm446, %v4337, 0.0
    %4444 = vadd.xlane.f32.xlu0 %v4443
    %v4445 = vpop.xlane.xlu0 %4444
    %v4446 = vsel %vm446, %v4339, 0.0
    %4447 = vadd.xlane.f32.xlu0 %v4446
    %v4448 = vpop.xlane.xlu0 %4447
    %v4449 = vsel %vm446, %v4341, 0.0
    %4450 = vadd.xlane.f32.xlu0 %v4449
    %v4451 = vpop.xlane.xlu0 %4450
    %v4452 = vsel %vm446, %v4343, 0.0
    %4453 = vadd.xlane.f32.xlu0 %v4452
    %v4454 = vpop.xlane.xlu0 %4453
    %v4455 = vsel %vm446, %v4345, 0.0
    %4456 = vadd.xlane.f32.xlu0 %v4455
    %v4457 = vpop.xlane.xlu0 %4456
    %v4458 = vsel %vm446, %v4347, 0.0
    %4459 = vadd.xlane.f32.xlu0 %v4458
    %v4460 = vpop.xlane.xlu0 %4459
    %v4461 = vsel %vm446, %v4349, 0.0
    %4462 = vadd.xlane.f32.xlu0 %v4461
    %v4463 = vpop.xlane.xlu0 %4462
    %v4464 = vsel %vm446, %v4351, 0.0
    %4465 = vadd.xlane.f32.xlu0 %v4464
    %v4466 = vpop.xlane.xlu0 %4465
    %v4467 = vsel %vm446, %v4353, 0.0
    %4468 = vadd.xlane.f32.xlu0 %v4467
    %v4469 = vpop.xlane.xlu0 %4468
    %v4470 = vsel %vm446, %v4355, 0.0
    %4471 = vadd.xlane.f32.xlu0 %v4470
    %v4472 = vpop.xlane.xlu0 %4471
    %v4473 = vsel %vm446, %v4357, 0.0
    %4474 = vadd.xlane.f32.xlu0 %v4473
    %v4475 = vpop.xlane.xlu0 %4474
    %v4476 = vsel %vm446, %v4359, 0.0
    %4477 = vadd.xlane.f32.xlu0 %v4476
    %v4478 = vpop.xlane.xlu0 %4477
    %v4479 = vsel %vm446, %v4361, 0.0
    %4480 = vadd.xlane.f32.xlu0 %v4479
    %v4481 = vpop.xlane.xlu0 %4480
    %v4482 = vsel %vm446, %v4363, 0.0
    %4483 = vadd.xlane.f32.xlu0 %v4482
    %v4484 = vpop.xlane.xlu0 %4483
    %v4485 = vsel %vm446, %v4365, 0.0
    %4486 = vadd.xlane.f32.xlu0 %v4485
    %v4487 = vpop.xlane.xlu0 %4486
    %v4488 = vsel %vm446, %v4367, 0.0
    %4489 = vadd.xlane.f32.xlu0 %v4488
    %v4490 = vpop.xlane.xlu0 %4489
    %v4491 = vsel %vm446, %v4369, 0.0
    %4492 = vadd.xlane.f32.xlu0 %v4491
    %v4493 = vpop.xlane.xlu0 %4492
    %v4494 = vsel %vm446, %v4371, 0.0
    %4495 = vadd.xlane.f32.xlu0 %v4494
    %v4496 = vpop.xlane.xlu0 %4495
    %v4497 = vsel %vm446, %v4373, 0.0
    %4498 = vadd.xlane.f32.xlu0 %v4497
    %v4499 = vpop.xlane.xlu0 %4498
    %v4500 = vsel %vm446, %v4375, 0.0
    %4501 = vadd.xlane.f32.xlu0 %v4500
    %v4502 = vpop.xlane.xlu0 %4501
    %v4503 = vsel %vm446, %v4377, 0.0
    %4504 = vadd.xlane.f32.xlu0 %v4503
    %v4505 = vpop.xlane.xlu0 %4504
    %v4506 = vadd.f32 %v4412, %v551
    %v4507 = vadd.f32 %v4415, %v557
    %v4508 = vadd.f32 %v4418, %v564
    %v4509 = vadd.f32 %v4421, %v570
    %v4510 = vadd.f32 %v4424, %v577
    %v4511 = vadd.f32 %v4427, %v583
    %v4512 = vadd.f32 %v4430, %v590
    %v4513 = vadd.f32 %v4433, %v596
    %v4514 = vadd.f32 %v4436, %v603
    %v4515 = vadd.f32 %v4439, %v609
    %v4516 = vadd.f32 %v4442, %v616
    %v4517 = vadd.f32 %v4445, %v622
    %v4518 = vadd.f32 %v4448, %v629
    %v4519 = vadd.f32 %v4451, %v635
    %v4520 = vadd.f32 %v4454, %v642
    %v4521 = vadd.f32 %v4457, %v648
    %v4522 = vadd.f32 %v4460, %v655
    %v4523 = vadd.f32 %v4463, %v661
    %v4524 = vadd.f32 %v4466, %v668
    %v4525 = vadd.f32 %v4469, %v674
    %v4526 = vadd.f32 %v4472, %v681
    %v4527 = vadd.f32 %v4475, %v687
    %v4528 = vadd.f32 %v4478, %v694
    %v4529 = vadd.f32 %v4481, %v700
    %v4530 = vadd.f32 %v4484, %v707
    %v4531 = vadd.f32 %v4487, %v713
    %v4532 = vadd.f32 %v4490, %v720
    %v4533 = vadd.f32 %v4493, %v726
    %v4534 = vadd.f32 %v4496, %v733
    %v4535 = vadd.f32 %v4499, %v739
    %v4536 = vadd.f32 %v4502, %v746
    %v4537 = vadd.f32 %v4505, %v752
    %4570 = vset.pattern.permute.xlu0 0
    %4571 = vperm.xlu0 %4570, %v4506
    %v4572 = vpop.permute.xlu0 %4571
    %4573 = vset.pattern.permute.xlu0 0
    %4574 = vperm.xlu0 %4573, %v4507
    %v4575 = vpop.permute.xlu0 %4574
    %4576 = vset.pattern.permute.xlu0 0
    %4577 = vperm.xlu0 %4576, %v4508
    %v4578 = vpop.permute.xlu0 %4577
    %4579 = vset.pattern.permute.xlu0 0
    %4580 = vperm.xlu0 %4579, %v4509
    %v4581 = vpop.permute.xlu0 %4580
    %4582 = vset.pattern.permute.xlu0 0
    %4583 = vperm.xlu0 %4582, %v4510
    %v4584 = vpop.permute.xlu0 %4583
    %4585 = vset.pattern.permute.xlu0 0
    %4586 = vperm.xlu0 %4585, %v4511
    %v4587 = vpop.permute.xlu0 %4586
    %4588 = vset.pattern.permute.xlu0 0
    %4589 = vperm.xlu0 %4588, %v4512
    %v4590 = vpop.permute.xlu0 %4589
    %4591 = vset.pattern.permute.xlu0 0
    %4592 = vperm.xlu0 %4591, %v4513
    %v4593 = vpop.permute.xlu0 %4592
    %4594 = vset.pattern.permute.xlu0 0
    %4595 = vperm.xlu0 %4594, %v4514
    %v4596 = vpop.permute.xlu0 %4595
    %4597 = vset.pattern.permute.xlu0 0
    %4598 = vperm.xlu0 %4597, %v4515
    %v4599 = vpop.permute.xlu0 %4598
    %4600 = vset.pattern.permute.xlu0 0
    %4601 = vperm.xlu0 %4600, %v4516
    %v4602 = vpop.permute.xlu0 %4601
    %4603 = vset.pattern.permute.xlu0 0
    %4604 = vperm.xlu0 %4603, %v4517
    %v4605 = vpop.permute.xlu0 %4604
    %4606 = vset.pattern.permute.xlu0 0
    %4607 = vperm.xlu0 %4606, %v4518
    %v4608 = vpop.permute.xlu0 %4607
    %4609 = vset.pattern.permute.xlu0 0
    %4610 = vperm.xlu0 %4609, %v4519
    %v4611 = vpop.permute.xlu0 %4610
    %4612 = vset.pattern.permute.xlu0 0
    %4613 = vperm.xlu0 %4612, %v4520
    %v4614 = vpop.permute.xlu0 %4613
    %4615 = vset.pattern.permute.xlu0 0
    %4616 = vperm.xlu0 %4615, %v4521
    %v4617 = vpop.permute.xlu0 %4616
    %4618 = vset.pattern.permute.xlu0 0
    %4619 = vperm.xlu0 %4618, %v4522
    %v4620 = vpop.permute.xlu0 %4619
    %4621 = vset.pattern.permute.xlu0 0
    %4622 = vperm.xlu0 %4621, %v4523
    %v4623 = vpop.permute.xlu0 %4622
    %4624 = vset.pattern.permute.xlu0 0
    %4625 = vperm.xlu0 %4624, %v4524
    %v4626 = vpop.permute.xlu0 %4625
    %4627 = vset.pattern.permute.xlu0 0
    %4628 = vperm.xlu0 %4627, %v4525
    %v4629 = vpop.permute.xlu0 %4628
    %4630 = vset.pattern.permute.xlu0 0
    %4631 = vperm.xlu0 %4630, %v4526
    %v4632 = vpop.permute.xlu0 %4631
    %4633 = vset.pattern.permute.xlu0 0
    %4634 = vperm.xlu0 %4633, %v4527
    %v4635 = vpop.permute.xlu0 %4634
    %4636 = vset.pattern.permute.xlu0 0
    %4637 = vperm.xlu0 %4636, %v4528
    %v4638 = vpop.permute.xlu0 %4637
    %4639 = vset.pattern.permute.xlu0 0
    %4640 = vperm.xlu0 %4639, %v4529
    %v4641 = vpop.permute.xlu0 %4640
    %4642 = vset.pattern.permute.xlu0 0
    %4643 = vperm.xlu0 %4642, %v4530
    %v4644 = vpop.permute.xlu0 %4643
    %4645 = vset.pattern.permute.xlu0 0
    %4646 = vperm.xlu0 %4645, %v4531
    %v4647 = vpop.permute.xlu0 %4646
    %4648 = vset.pattern.permute.xlu0 0
    %4649 = vperm.xlu0 %4648, %v4532
    %v4650 = vpop.permute.xlu0 %4649
    %4651 = vset.pattern.permute.xlu0 0
    %4652 = vperm.xlu0 %4651, %v4533
    %v4653 = vpop.permute.xlu0 %4652
    %4654 = vset.pattern.permute.xlu0 0
    %4655 = vperm.xlu0 %4654, %v4534
    %v4656 = vpop.permute.xlu0 %4655
    %4657 = vset.pattern.permute.xlu0 0
    %4658 = vperm.xlu0 %4657, %v4535
    %v4659 = vpop.permute.xlu0 %4658
    %4660 = vset.pattern.permute.xlu0 0
    %4661 = vperm.xlu0 %4660, %v4536
    %v4662 = vpop.permute.xlu0 %4661
    %4663 = vset.pattern.permute.xlu0 0
    %4664 = vperm.xlu0 %4663, %v4537
    %v4665 = vpop.permute.xlu0 %4664
    %v4666 = vperm.slane %v4572, %v946
    %v4667 = vperm.slane %v4575, %v948
    %v4668 = vsel %vm950, %v4667, %v4666
    %v4669 = vperm.slane %v4578, %v946
    %v4670 = vperm.slane %v4581, %v948
    %v4671 = vsel %vm950, %v4670, %v4669
    %v4672 = vperm.slane %v4584, %v946
    %v4673 = vperm.slane %v4587, %v948
    %v4674 = vsel %vm950, %v4673, %v4672
    %v4675 = vperm.slane %v4590, %v946
    %v4676 = vperm.slane %v4593, %v948
    %v4677 = vsel %vm950, %v4676, %v4675
    %v4678 = vperm.slane %v4596, %v946
    %v4679 = vperm.slane %v4599, %v948
    %v4680 = vsel %vm950, %v4679, %v4678
    %v4681 = vperm.slane %v4602, %v946
    %v4682 = vperm.slane %v4605, %v948
    %v4683 = vsel %vm950, %v4682, %v4681
    %v4684 = vperm.slane %v4608, %v946
    %v4685 = vperm.slane %v4611, %v948
    %v4686 = vsel %vm950, %v4685, %v4684
    %v4687 = vperm.slane %v4614, %v946
    %v4688 = vperm.slane %v4617, %v948
    %v4689 = vsel %vm950, %v4688, %v4687
    %v4690 = vperm.slane %v4620, %v946
    %v4691 = vperm.slane %v4623, %v948
    %v4692 = vsel %vm950, %v4691, %v4690
    %v4693 = vperm.slane %v4626, %v946
    %v4694 = vperm.slane %v4629, %v948
    %v4695 = vsel %vm950, %v4694, %v4693
    %v4696 = vperm.slane %v4632, %v946
    %v4697 = vperm.slane %v4635, %v948
    %v4698 = vsel %vm950, %v4697, %v4696
    %v4699 = vperm.slane %v4638, %v946
    %v4700 = vperm.slane %v4641, %v948
    %v4701 = vsel %vm950, %v4700, %v4699
    %v4702 = vperm.slane %v4644, %v946
    %v4703 = vperm.slane %v4647, %v948
    %v4704 = vsel %vm950, %v4703, %v4702
    %v4705 = vperm.slane %v4650, %v946
    %v4706 = vperm.slane %v4653, %v948
    %v4707 = vsel %vm950, %v4706, %v4705
    %v4708 = vperm.slane %v4656, %v946
    %v4709 = vperm.slane %v4659, %v948
    %v4710 = vsel %vm950, %v4709, %v4708
    %v4711 = vperm.slane %v4662, %v946
    %v4712 = vperm.slane %v4665, %v948
    %v4713 = vsel %vm950, %v4712, %v4711
    %v4714 = vsel %vm997, %v4671, %v4668
    %v4715 = vsel %vm999, %v4674, %v4714
    %v4716 = vsel %vm1001, %v4677, %v4715
    %v4717 = vsel %vm1003, %v4680, %v4716
    %v4718 = vsel %vm1005, %v4683, %v4717
    %v4719 = vsel %vm1007, %v4686, %v4718
    %v4720 = vsel %vm1009, %v4689, %v4719
    %v4721 = vsel %vm997, %v4695, %v4692
    %v4722 = vsel %vm999, %v4698, %v4721
    %v4723 = vsel %vm1001, %v4701, %v4722
    %v4724 = vsel %vm1003, %v4704, %v4723
    %v4725 = vsel %vm1005, %v4707, %v4724
    %v4726 = vsel %vm1007, %v4710, %v4725
    %v4727 = vsel %vm1009, %v4713, %v4726
    %v4730 = vsel %vm69, %v4720, -inf
    %4731 = vmax.xlane.f32.xlu0 %v4730
    %v4732 = vpop.xlane.xlu0 %4731
    %v4733 = vsel %vm69, %v4727, -inf
    %4734 = vmax.xlane.f32.xlu0 %v4733
    %v4735 = vpop.xlane.xlu0 %4734
    %v4738 = vperm.slane %v4732, 0
    %v4739 = vperm.slane %v4732, 1
    %v4740 = vperm.slane %v4732, 2
    %v4741 = vperm.slane %v4732, 3
    %v4742 = vperm.slane %v4732, 4
    %v4743 = vperm.slane %v4732, 5
    %v4744 = vperm.slane %v4732, 6
    %v4745 = vperm.slane %v4732, 7
    %v4746 = vperm.slane %v4735, 0
    %v4747 = vperm.slane %v4735, 1
    %v4748 = vperm.slane %v4735, 2
    %v4749 = vperm.slane %v4735, 3
    %v4750 = vperm.slane %v4735, 4
    %v4751 = vperm.slane %v4735, 5
    %v4752 = vperm.slane %v4735, 6
    %v4753 = vperm.slane %v4735, 7
    %v4770 = vsub.f32 %v4506, %v4738
    %v4771 = vsub.f32 %v4507, %v4738
    %v4772 = vsub.f32 %v4508, %v4739
    %v4773 = vsub.f32 %v4509, %v4739
    %v4774 = vsub.f32 %v4510, %v4740
    %v4775 = vsub.f32 %v4511, %v4740
    %v4776 = vsub.f32 %v4512, %v4741
    %v4777 = vsub.f32 %v4513, %v4741
    %v4778 = vsub.f32 %v4514, %v4742
    %v4779 = vsub.f32 %v4515, %v4742
    %v4780 = vsub.f32 %v4516, %v4743
    %v4781 = vsub.f32 %v4517, %v4743
    %v4782 = vsub.f32 %v4518, %v4744
    %v4783 = vsub.f32 %v4519, %v4744
    %v4784 = vsub.f32 %v4520, %v4745
    %v4785 = vsub.f32 %v4521, %v4745
    %v4786 = vsub.f32 %v4522, %v4746
    %v4787 = vsub.f32 %v4523, %v4746
    %v4788 = vsub.f32 %v4524, %v4747
    %v4789 = vsub.f32 %v4525, %v4747
    %v4790 = vsub.f32 %v4526, %v4748
    %v4791 = vsub.f32 %v4527, %v4748
    %v4792 = vsub.f32 %v4528, %v4749
    %v4793 = vsub.f32 %v4529, %v4749
    %v4794 = vsub.f32 %v4530, %v4750
    %v4795 = vsub.f32 %v4531, %v4750
    %v4796 = vsub.f32 %v4532, %v4751
    %v4797 = vsub.f32 %v4533, %v4751
    %v4798 = vsub.f32 %v4534, %v4752
    %v4799 = vsub.f32 %v4535, %v4752
    %v4800 = vsub.f32 %v4536, %v4753
    %v4801 = vsub.f32 %v4537, %v4753
    %v4802 = vmul.f32 %v4770, 1.442695
    %v4803 = vpow.pop %v4802
    %v4804 = vmul.f32 %v4771, 1.442695
    %v4805 = vpow.pop %v4804
    %v4806 = vmul.f32 %v4772, 1.442695
    %v4807 = vpow.pop %v4806
    %v4808 = vmul.f32 %v4773, 1.442695
    %v4809 = vpow.pop %v4808
    %v4810 = vmul.f32 %v4774, 1.442695
    %v4811 = vpow.pop %v4810
    %v4812 = vmul.f32 %v4775, 1.442695
    %v4813 = vpow.pop %v4812
    %v4814 = vmul.f32 %v4776, 1.442695
    %v4815 = vpow.pop %v4814
    %v4816 = vmul.f32 %v4777, 1.442695
    %v4817 = vpow.pop %v4816
    %v4818 = vmul.f32 %v4778, 1.442695
    %v4819 = vpow.pop %v4818
    %v4820 = vmul.f32 %v4779, 1.442695
    %v4821 = vpow.pop %v4820
    %v4822 = vmul.f32 %v4780, 1.442695
    %v4823 = vpow.pop %v4822
    %v4824 = vmul.f32 %v4781, 1.442695
    %v4825 = vpow.pop %v4824
    %v4826 = vmul.f32 %v4782, 1.442695
    %v4827 = vpow.pop %v4826
    %v4828 = vmul.f32 %v4783, 1.442695
    %v4829 = vpow.pop %v4828
    %v4830 = vmul.f32 %v4784, 1.442695
    %v4831 = vpow.pop %v4830
    %v4832 = vmul.f32 %v4785, 1.442695
    %v4833 = vpow.pop %v4832
    %v4834 = vmul.f32 %v4786, 1.442695
    %v4835 = vpow.pop %v4834
    %v4836 = vmul.f32 %v4787, 1.442695
    %v4837 = vpow.pop %v4836
    %v4838 = vmul.f32 %v4788, 1.442695
    %v4839 = vpow.pop %v4838
    %v4840 = vmul.f32 %v4789, 1.442695
    %v4841 = vpow.pop %v4840
    %v4842 = vmul.f32 %v4790, 1.442695
    %v4843 = vpow.pop %v4842
    %v4844 = vmul.f32 %v4791, 1.442695
    %v4845 = vpow.pop %v4844
    %v4846 = vmul.f32 %v4792, 1.442695
    %v4847 = vpow.pop %v4846
    %v4848 = vmul.f32 %v4793, 1.442695
    %v4849 = vpow.pop %v4848
    %v4850 = vmul.f32 %v4794, 1.442695
    %v4851 = vpow.pop %v4850
    %v4852 = vmul.f32 %v4795, 1.442695
    %v4853 = vpow.pop %v4852
    %v4854 = vmul.f32 %v4796, 1.442695
    %v4855 = vpow.pop %v4854
    %v4856 = vmul.f32 %v4797, 1.442695
    %v4857 = vpow.pop %v4856
    %v4858 = vmul.f32 %v4798, 1.442695
    %v4859 = vpow.pop %v4858
    %v4860 = vmul.f32 %v4799, 1.442695
    %v4861 = vpow.pop %v4860
    %v4862 = vmul.f32 %v4800, 1.442695
    %v4863 = vpow.pop %v4862
    %v4864 = vmul.f32 %v4801, 1.442695
    %v4865 = vpow.pop %v4864
    %4898 = vset.pattern.permute.xlu0 0
    %4899 = vperm.xlu0 %4898, %v4803
    %v4900 = vpop.permute.xlu0 %4899
    %4901 = vset.pattern.permute.xlu0 0
    %4902 = vperm.xlu0 %4901, %v4805
    %v4903 = vpop.permute.xlu0 %4902
    %4904 = vset.pattern.permute.xlu0 0
    %4905 = vperm.xlu0 %4904, %v4807
    %v4906 = vpop.permute.xlu0 %4905
    %4907 = vset.pattern.permute.xlu0 0
    %4908 = vperm.xlu0 %4907, %v4809
    %v4909 = vpop.permute.xlu0 %4908
    %4910 = vset.pattern.permute.xlu0 0
    %4911 = vperm.xlu0 %4910, %v4811
    %v4912 = vpop.permute.xlu0 %4911
    %4913 = vset.pattern.permute.xlu0 0
    %4914 = vperm.xlu0 %4913, %v4813
    %v4915 = vpop.permute.xlu0 %4914
    %4916 = vset.pattern.permute.xlu0 0
    %4917 = vperm.xlu0 %4916, %v4815
    %v4918 = vpop.permute.xlu0 %4917
    %4919 = vset.pattern.permute.xlu0 0
    %4920 = vperm.xlu0 %4919, %v4817
    %v4921 = vpop.permute.xlu0 %4920
    %4922 = vset.pattern.permute.xlu0 0
    %4923 = vperm.xlu0 %4922, %v4819
    %v4924 = vpop.permute.xlu0 %4923
    %4925 = vset.pattern.permute.xlu0 0
    %4926 = vperm.xlu0 %4925, %v4821
    %v4927 = vpop.permute.xlu0 %4926
    %4928 = vset.pattern.permute.xlu0 0
    %4929 = vperm.xlu0 %4928, %v4823
    %v4930 = vpop.permute.xlu0 %4929
    %4931 = vset.pattern.permute.xlu0 0
    %4932 = vperm.xlu0 %4931, %v4825
    %v4933 = vpop.permute.xlu0 %4932
    %4934 = vset.pattern.permute.xlu0 0
    %4935 = vperm.xlu0 %4934, %v4827
    %v4936 = vpop.permute.xlu0 %4935
    %4937 = vset.pattern.permute.xlu0 0
    %4938 = vperm.xlu0 %4937, %v4829
    %v4939 = vpop.permute.xlu0 %4938
    %4940 = vset.pattern.permute.xlu0 0
    %4941 = vperm.xlu0 %4940, %v4831
    %v4942 = vpop.permute.xlu0 %4941
    %4943 = vset.pattern.permute.xlu0 0
    %4944 = vperm.xlu0 %4943, %v4833
    %v4945 = vpop.permute.xlu0 %4944
    %4946 = vset.pattern.permute.xlu0 0
    %4947 = vperm.xlu0 %4946, %v4835
    %v4948 = vpop.permute.xlu0 %4947
    %4949 = vset.pattern.permute.xlu0 0
    %4950 = vperm.xlu0 %4949, %v4837
    %v4951 = vpop.permute.xlu0 %4950
    %4952 = vset.pattern.permute.xlu0 0
    %4953 = vperm.xlu0 %4952, %v4839
    %v4954 = vpop.permute.xlu0 %4953
    %4955 = vset.pattern.permute.xlu0 0
    %4956 = vperm.xlu0 %4955, %v4841
    %v4957 = vpop.permute.xlu0 %4956
    %4958 = vset.pattern.permute.xlu0 0
    %4959 = vperm.xlu0 %4958, %v4843
    %v4960 = vpop.permute.xlu0 %4959
    %4961 = vset.pattern.permute.xlu0 0
    %4962 = vperm.xlu0 %4961, %v4845
    %v4963 = vpop.permute.xlu0 %4962
    %4964 = vset.pattern.permute.xlu0 0
    %4965 = vperm.xlu0 %4964, %v4847
    %v4966 = vpop.permute.xlu0 %4965
    %4967 = vset.pattern.permute.xlu0 0
    %4968 = vperm.xlu0 %4967, %v4849
    %v4969 = vpop.permute.xlu0 %4968
    %4970 = vset.pattern.permute.xlu0 0
    %4971 = vperm.xlu0 %4970, %v4851
    %v4972 = vpop.permute.xlu0 %4971
    %4973 = vset.pattern.permute.xlu0 0
    %4974 = vperm.xlu0 %4973, %v4853
    %v4975 = vpop.permute.xlu0 %4974
    %4976 = vset.pattern.permute.xlu0 0
    %4977 = vperm.xlu0 %4976, %v4855
    %v4978 = vpop.permute.xlu0 %4977
    %4979 = vset.pattern.permute.xlu0 0
    %4980 = vperm.xlu0 %4979, %v4857
    %v4981 = vpop.permute.xlu0 %4980
    %4982 = vset.pattern.permute.xlu0 0
    %4983 = vperm.xlu0 %4982, %v4859
    %v4984 = vpop.permute.xlu0 %4983
    %4985 = vset.pattern.permute.xlu0 0
    %4986 = vperm.xlu0 %4985, %v4861
    %v4987 = vpop.permute.xlu0 %4986
    %4988 = vset.pattern.permute.xlu0 0
    %4989 = vperm.xlu0 %4988, %v4863
    %v4990 = vpop.permute.xlu0 %4989
    %4991 = vset.pattern.permute.xlu0 0
    %4992 = vperm.xlu0 %4991, %v4865
    %v4993 = vpop.permute.xlu0 %4992
    %v4994 = vperm.slane %v4900, %v946
    %v4995 = vperm.slane %v4903, %v948
    %v4996 = vsel %vm950, %v4995, %v4994
    %v4997 = vperm.slane %v4906, %v946
    %v4998 = vperm.slane %v4909, %v948
    %v4999 = vsel %vm950, %v4998, %v4997
    %v5000 = vperm.slane %v4912, %v946
    %v5001 = vperm.slane %v4915, %v948
    %v5002 = vsel %vm950, %v5001, %v5000
    %v5003 = vperm.slane %v4918, %v946
    %v5004 = vperm.slane %v4921, %v948
    %v5005 = vsel %vm950, %v5004, %v5003
    %v5006 = vperm.slane %v4924, %v946
    %v5007 = vperm.slane %v4927, %v948
    %v5008 = vsel %vm950, %v5007, %v5006
    %v5009 = vperm.slane %v4930, %v946
    %v5010 = vperm.slane %v4933, %v948
    %v5011 = vsel %vm950, %v5010, %v5009
    %v5012 = vperm.slane %v4936, %v946
    %v5013 = vperm.slane %v4939, %v948
    %v5014 = vsel %vm950, %v5013, %v5012
    %v5015 = vperm.slane %v4942, %v946
    %v5016 = vperm.slane %v4945, %v948
    %v5017 = vsel %vm950, %v5016, %v5015
    %v5018 = vperm.slane %v4948, %v946
    %v5019 = vperm.slane %v4951, %v948
    %v5020 = vsel %vm950, %v5019, %v5018
    %v5021 = vperm.slane %v4954, %v946
    %v5022 = vperm.slane %v4957, %v948
    %v5023 = vsel %vm950, %v5022, %v5021
    %v5024 = vperm.slane %v4960, %v946
    %v5025 = vperm.slane %v4963, %v948
    %v5026 = vsel %vm950, %v5025, %v5024
    %v5027 = vperm.slane %v4966, %v946
    %v5028 = vperm.slane %v4969, %v948
    %v5029 = vsel %vm950, %v5028, %v5027
    %v5030 = vperm.slane %v4972, %v946
    %v5031 = vperm.slane %v4975, %v948
    %v5032 = vsel %vm950, %v5031, %v5030
    %v5033 = vperm.slane %v4978, %v946
    %v5034 = vperm.slane %v4981, %v948
    %v5035 = vsel %vm950, %v5034, %v5033
    %v5036 = vperm.slane %v4984, %v946
    %v5037 = vperm.slane %v4987, %v948
    %v5038 = vsel %vm950, %v5037, %v5036
    %v5039 = vperm.slane %v4990, %v946
    %v5040 = vperm.slane %v4993, %v948
    %v5041 = vsel %vm950, %v5040, %v5039
    %v5042 = vsel %vm997, %v4999, %v4996
    %v5043 = vsel %vm999, %v5002, %v5042
    %v5044 = vsel %vm1001, %v5005, %v5043
    %v5045 = vsel %vm1003, %v5008, %v5044
    %v5046 = vsel %vm1005, %v5011, %v5045
    %v5047 = vsel %vm1007, %v5014, %v5046
    %v5048 = vsel %vm1009, %v5017, %v5047
    %v5049 = vsel %vm997, %v5023, %v5020
    %v5050 = vsel %vm999, %v5026, %v5049
    %v5051 = vsel %vm1001, %v5029, %v5050
    %v5052 = vsel %vm1003, %v5032, %v5051
    %v5053 = vsel %vm1005, %v5035, %v5052
    %v5054 = vsel %vm1007, %v5038, %v5053
    %v5055 = vsel %vm1009, %v5041, %v5054
    %v5058 = vsel %vm69, %v5048, 0.0
    %5059 = vadd.xlane.f32.xlu0 %v5058
    %v5060 = vpop.xlane.xlu0 %5059
    %v5061 = vsel %vm69, %v5055, 0.0
    %5062 = vadd.xlane.f32.xlu0 %v5061
    %v5063 = vpop.xlane.xlu0 %5062
    %v5064 = vrcp.pop %v5060
    %v5065 = vrcp.pop %v5063
    %v5068 = vperm.slane %v5064, 0
    %v5069 = vperm.slane %v5064, 1
    %v5070 = vperm.slane %v5064, 2
    %v5071 = vperm.slane %v5064, 3
    %v5072 = vperm.slane %v5064, 4
    %v5073 = vperm.slane %v5064, 5
    %v5074 = vperm.slane %v5064, 6
    %v5075 = vperm.slane %v5064, 7
    %v5076 = vperm.slane %v5065, 0
    %v5077 = vperm.slane %v5065, 1
    %v5078 = vperm.slane %v5065, 2
    %v5079 = vperm.slane %v5065, 3
    %v5080 = vperm.slane %v5065, 4
    %v5081 = vperm.slane %v5065, 5
    %v5082 = vperm.slane %v5065, 6
    %v5083 = vperm.slane %v5065, 7
    %v5100 = vmul.f32 %v4803, %v5068
    %v5101 = vmul.f32 %v4805, %v5068
    %v5102 = vmul.f32 %v4807, %v5069
    %v5103 = vmul.f32 %v4809, %v5069
    %v5104 = vmul.f32 %v4811, %v5070
    %v5105 = vmul.f32 %v4813, %v5070
    %v5106 = vmul.f32 %v4815, %v5071
    %v5107 = vmul.f32 %v4817, %v5071
    %v5108 = vmul.f32 %v4819, %v5072
    %v5109 = vmul.f32 %v4821, %v5072
    %v5110 = vmul.f32 %v4823, %v5073
    %v5111 = vmul.f32 %v4825, %v5073
    %v5112 = vmul.f32 %v4827, %v5074
    %v5113 = vmul.f32 %v4829, %v5074
    %v5114 = vmul.f32 %v4831, %v5075
    %v5115 = vmul.f32 %v4833, %v5075
    %v5116 = vmul.f32 %v4835, %v5076
    %v5117 = vmul.f32 %v4837, %v5076
    %v5118 = vmul.f32 %v4839, %v5077
    %v5119 = vmul.f32 %v4841, %v5077
    %v5120 = vmul.f32 %v4843, %v5078
    %v5121 = vmul.f32 %v4845, %v5078
    %v5122 = vmul.f32 %v4847, %v5079
    %v5123 = vmul.f32 %v4849, %v5079
    %v5124 = vmul.f32 %v4851, %v5080
    %v5125 = vmul.f32 %v4853, %v5080
    %v5126 = vmul.f32 %v4855, %v5081
    %v5127 = vmul.f32 %v4857, %v5081
    %v5128 = vmul.f32 %v4859, %v5082
    %v5129 = vmul.f32 %v4861, %v5082
    %v5130 = vmul.f32 %v4863, %v5083
    %v5131 = vmul.f32 %v4865, %v5083
    %v5132 = vperm.slane %v4032, 2
    %5165 = vset.pattern.permute.xlu0 0
    %5166 = vperm.xlu0 %5165, %v5100
    %v5167 = vpop.permute.xlu0 %5166
    %5168 = vset.pattern.permute.xlu0 0
    %5169 = vperm.xlu0 %5168, %v5101
    %v5170 = vpop.permute.xlu0 %5169
    %5171 = vset.pattern.permute.xlu0 0
    %5172 = vperm.xlu0 %5171, %v5102
    %v5173 = vpop.permute.xlu0 %5172
    %5174 = vset.pattern.permute.xlu0 0
    %5175 = vperm.xlu0 %5174, %v5103
    %v5176 = vpop.permute.xlu0 %5175
    %5177 = vset.pattern.permute.xlu0 0
    %5178 = vperm.xlu0 %5177, %v5104
    %v5179 = vpop.permute.xlu0 %5178
    %5180 = vset.pattern.permute.xlu0 0
    %5181 = vperm.xlu0 %5180, %v5105
    %v5182 = vpop.permute.xlu0 %5181
    %5183 = vset.pattern.permute.xlu0 0
    %5184 = vperm.xlu0 %5183, %v5106
    %v5185 = vpop.permute.xlu0 %5184
    %5186 = vset.pattern.permute.xlu0 0
    %5187 = vperm.xlu0 %5186, %v5107
    %v5188 = vpop.permute.xlu0 %5187
    %5189 = vset.pattern.permute.xlu0 0
    %5190 = vperm.xlu0 %5189, %v5108
    %v5191 = vpop.permute.xlu0 %5190
    %5192 = vset.pattern.permute.xlu0 0
    %5193 = vperm.xlu0 %5192, %v5109
    %v5194 = vpop.permute.xlu0 %5193
    %5195 = vset.pattern.permute.xlu0 0
    %5196 = vperm.xlu0 %5195, %v5110
    %v5197 = vpop.permute.xlu0 %5196
    %5198 = vset.pattern.permute.xlu0 0
    %5199 = vperm.xlu0 %5198, %v5111
    %v5200 = vpop.permute.xlu0 %5199
    %5201 = vset.pattern.permute.xlu0 0
    %5202 = vperm.xlu0 %5201, %v5112
    %v5203 = vpop.permute.xlu0 %5202
    %5204 = vset.pattern.permute.xlu0 0
    %5205 = vperm.xlu0 %5204, %v5113
    %v5206 = vpop.permute.xlu0 %5205
    %5207 = vset.pattern.permute.xlu0 0
    %5208 = vperm.xlu0 %5207, %v5114
    %v5209 = vpop.permute.xlu0 %5208
    %5210 = vset.pattern.permute.xlu0 0
    %5211 = vperm.xlu0 %5210, %v5115
    %v5212 = vpop.permute.xlu0 %5211
    %5213 = vset.pattern.permute.xlu0 0
    %5214 = vperm.xlu0 %5213, %v5116
    %v5215 = vpop.permute.xlu0 %5214
    %5216 = vset.pattern.permute.xlu0 0
    %5217 = vperm.xlu0 %5216, %v5117
    %v5218 = vpop.permute.xlu0 %5217
    %5219 = vset.pattern.permute.xlu0 0
    %5220 = vperm.xlu0 %5219, %v5118
    %v5221 = vpop.permute.xlu0 %5220
    %5222 = vset.pattern.permute.xlu0 0
    %5223 = vperm.xlu0 %5222, %v5119
    %v5224 = vpop.permute.xlu0 %5223
    %5225 = vset.pattern.permute.xlu0 0
    %5226 = vperm.xlu0 %5225, %v5120
    %v5227 = vpop.permute.xlu0 %5226
    %5228 = vset.pattern.permute.xlu0 0
    %5229 = vperm.xlu0 %5228, %v5121
    %v5230 = vpop.permute.xlu0 %5229
    %5231 = vset.pattern.permute.xlu0 0
    %5232 = vperm.xlu0 %5231, %v5122
    %v5233 = vpop.permute.xlu0 %5232
    %5234 = vset.pattern.permute.xlu0 0
    %5235 = vperm.xlu0 %5234, %v5123
    %v5236 = vpop.permute.xlu0 %5235
    %5237 = vset.pattern.permute.xlu0 0
    %5238 = vperm.xlu0 %5237, %v5124
    %v5239 = vpop.permute.xlu0 %5238
    %5240 = vset.pattern.permute.xlu0 0
    %5241 = vperm.xlu0 %5240, %v5125
    %v5242 = vpop.permute.xlu0 %5241
    %5243 = vset.pattern.permute.xlu0 0
    %5244 = vperm.xlu0 %5243, %v5126
    %v5245 = vpop.permute.xlu0 %5244
    %5246 = vset.pattern.permute.xlu0 0
    %5247 = vperm.xlu0 %5246, %v5127
    %v5248 = vpop.permute.xlu0 %5247
    %5249 = vset.pattern.permute.xlu0 0
    %5250 = vperm.xlu0 %5249, %v5128
    %v5251 = vpop.permute.xlu0 %5250
    %5252 = vset.pattern.permute.xlu0 0
    %5253 = vperm.xlu0 %5252, %v5129
    %v5254 = vpop.permute.xlu0 %5253
    %5255 = vset.pattern.permute.xlu0 0
    %5256 = vperm.xlu0 %5255, %v5130
    %v5257 = vpop.permute.xlu0 %5256
    %5258 = vset.pattern.permute.xlu0 0
    %5259 = vperm.xlu0 %5258, %v5131
    %v5260 = vpop.permute.xlu0 %5259
    %v5261 = vperm.slane %v5167, %v946
    %v5262 = vperm.slane %v5170, %v948
    %v5263 = vsel %vm950, %v5262, %v5261
    %v5264 = vperm.slane %v5173, %v946
    %v5265 = vperm.slane %v5176, %v948
    %v5266 = vsel %vm950, %v5265, %v5264
    %v5267 = vperm.slane %v5179, %v946
    %v5268 = vperm.slane %v5182, %v948
    %v5269 = vsel %vm950, %v5268, %v5267
    %v5270 = vperm.slane %v5185, %v946
    %v5271 = vperm.slane %v5188, %v948
    %v5272 = vsel %vm950, %v5271, %v5270
    %v5273 = vperm.slane %v5191, %v946
    %v5274 = vperm.slane %v5194, %v948
    %v5275 = vsel %vm950, %v5274, %v5273
    %v5276 = vperm.slane %v5197, %v946
    %v5277 = vperm.slane %v5200, %v948
    %v5278 = vsel %vm950, %v5277, %v5276
    %v5279 = vperm.slane %v5203, %v946
    %v5280 = vperm.slane %v5206, %v948
    %v5281 = vsel %vm950, %v5280, %v5279
    %v5282 = vperm.slane %v5209, %v946
    %v5283 = vperm.slane %v5212, %v948
    %v5284 = vsel %vm950, %v5283, %v5282
    %v5285 = vperm.slane %v5215, %v946
    %v5286 = vperm.slane %v5218, %v948
    %v5287 = vsel %vm950, %v5286, %v5285
    %v5288 = vperm.slane %v5221, %v946
    %v5289 = vperm.slane %v5224, %v948
    %v5290 = vsel %vm950, %v5289, %v5288
    %v5291 = vperm.slane %v5227, %v946
    %v5292 = vperm.slane %v5230, %v948
    %v5293 = vsel %vm950, %v5292, %v5291
    %v5294 = vperm.slane %v5233, %v946
    %v5295 = vperm.slane %v5236, %v948
    %v5296 = vsel %vm950, %v5295, %v5294
    %v5297 = vperm.slane %v5239, %v946
    %v5298 = vperm.slane %v5242, %v948
    %v5299 = vsel %vm950, %v5298, %v5297
    %v5300 = vperm.slane %v5245, %v946
    %v5301 = vperm.slane %v5248, %v948
    %v5302 = vsel %vm950, %v5301, %v5300
    %v5303 = vperm.slane %v5251, %v946
    %v5304 = vperm.slane %v5254, %v948
    %v5305 = vsel %vm950, %v5304, %v5303
    %v5306 = vperm.slane %v5257, %v946
    %v5307 = vperm.slane %v5260, %v948
    %v5308 = vsel %vm950, %v5307, %v5306
    %v5309 = vsel %vm997, %v5266, %v5263
    %v5310 = vsel %vm999, %v5269, %v5309
    %v5311 = vsel %vm1001, %v5272, %v5310
    %v5312 = vsel %vm1003, %v5275, %v5311
    %v5313 = vsel %vm1005, %v5278, %v5312
    %v5314 = vsel %vm1007, %v5281, %v5313
    %v5315 = vsel %vm1009, %v5284, %v5314
    %v5316 = vsel %vm997, %v5290, %v5287
    %v5317 = vsel %vm999, %v5293, %v5316
    %v5318 = vsel %vm1001, %v5296, %v5317
    %v5319 = vsel %vm1003, %v5299, %v5318
    %v5320 = vsel %vm1005, %v5302, %v5319
    %v5321 = vsel %vm1007, %v5305, %v5320
    %v5322 = vsel %vm1009, %v5308, %v5321
    %v5323 = vsel %vm69, %v5315, 0
    %v5325 = vsel %vm69, %v5322, 0
    %5327 = vmatpush.msra.mxu0 0.0
    %5328 = vmatpush.msra.mxu0 0.0
    %5329 = vmatpush.msra.mxu0 0.0
    %5330 = vmatpush.msra.mxu0 0.0
    %5331 = vmatpush.msra.mxu0 0.0
    %5332 = vmatpush.msra.mxu0 0.0
    %5333 = vmatpush.msra.mxu0 0.0
    %5334 = vmatpush.msra.mxu0 0.0
    %5335 = vmatpush.msra.mxu0 0.0
    %5336 = vmatpush.msra.mxu0 0.0
    %5337 = vmatpush.msra.mxu0 0.0
    %5338 = vmatpush.msra.mxu0 0.0
    %5339 = vmatpush.msra.mxu0 0.0
    %5340 = vmatpush.msra.mxu0 0.0
    %5341 = vmatpush.msra.mxu0 %v4061
    %5342 = vmatpush.msra.mxu0 %v4058
    %5343 = vmatmul.f32.gmra.mxu0 %v5323
    %v5344 = vpop.f32.mrf.mxu0
    %v5345 = vadd.f32 %v5132, %v5344
    %5346 = vmatmul.f32.gmra.mxu0 %v5325
    %v5347 = vpop.f32.mrf.mxu0
    %v5348 = vadd.f32 %v5132, %v5347
    %5349 = vdwg.mxu0
    %5350 = vrot.lane.b32.xlu0 %v4250, 32
    %v5351 = vpop.permute.xlu0 %5350
    %5352 = vrot.lane.b32.xlu0 %v4251, 32
    %v5353 = vpop.permute.xlu0 %5352
    %5354 = vrot.lane.b32.xlu0 %v4252, 32
    %v5355 = vpop.permute.xlu0 %5354
    %5356 = vrot.lane.b32.xlu0 %v4253, 32
    %v5357 = vpop.permute.xlu0 %5356
    %5358 = vrot.lane.b32.xlu0 %v4254, 32
    %v5359 = vpop.permute.xlu0 %5358
    %5360 = vrot.lane.b32.xlu0 %v4255, 32
    %v5361 = vpop.permute.xlu0 %5360
    %5362 = vrot.lane.b32.xlu0 %v4256, 32
    %v5363 = vpop.permute.xlu0 %5362
    %5364 = vrot.lane.b32.xlu0 %v4257, 32
    %v5365 = vpop.permute.xlu0 %5364
    %5366 = vrot.lane.b32.xlu0 %v4258, 32
    %v5367 = vpop.permute.xlu0 %5366
    %5368 = vrot.lane.b32.xlu0 %v4259, 32
    %v5369 = vpop.permute.xlu0 %5368
    %5370 = vrot.lane.b32.xlu0 %v4260, 32
    %v5371 = vpop.permute.xlu0 %5370
    %5372 = vrot.lane.b32.xlu0 %v4261, 32
    %v5373 = vpop.permute.xlu0 %5372
    %5374 = vrot.lane.b32.xlu0 %v4262, 32
    %v5375 = vpop.permute.xlu0 %5374
    %5376 = vrot.lane.b32.xlu0 %v4263, 32
    %v5377 = vpop.permute.xlu0 %5376
    %5378 = vrot.lane.b32.xlu0 %v4264, 32
    %v5379 = vpop.permute.xlu0 %5378
    %5380 = vrot.lane.b32.xlu0 %v4265, 32
    %v5381 = vpop.permute.xlu0 %5380
    %5382 = vrot.lane.b32.xlu0 %v4266, 32
    %v5383 = vpop.permute.xlu0 %5382
    %5384 = vrot.lane.b32.xlu0 %v4267, 32
    %v5385 = vpop.permute.xlu0 %5384
    %5386 = vrot.lane.b32.xlu0 %v4268, 32
    %v5387 = vpop.permute.xlu0 %5386
    %5388 = vrot.lane.b32.xlu0 %v4269, 32
    %v5389 = vpop.permute.xlu0 %5388
    %5390 = vrot.lane.b32.xlu0 %v4270, 32
    %v5391 = vpop.permute.xlu0 %5390
    %5392 = vrot.lane.b32.xlu0 %v4271, 32
    %v5393 = vpop.permute.xlu0 %5392
    %5394 = vrot.lane.b32.xlu0 %v4272, 32
    %v5395 = vpop.permute.xlu0 %5394
    %5396 = vrot.lane.b32.xlu0 %v4273, 32
    %v5397 = vpop.permute.xlu0 %5396
    %5398 = vrot.lane.b32.xlu0 %v4274, 32
    %v5399 = vpop.permute.xlu0 %5398
    %5400 = vrot.lane.b32.xlu0 %v4275, 32
    %v5401 = vpop.permute.xlu0 %5400
    %5402 = vrot.lane.b32.xlu0 %v4276, 32
    %v5403 = vpop.permute.xlu0 %5402
    %5404 = vrot.lane.b32.xlu0 %v4277, 32
    %v5405 = vpop.permute.xlu0 %5404
    %5406 = vrot.lane.b32.xlu0 %v4278, 32
    %v5407 = vpop.permute.xlu0 %5406
    %5408 = vrot.lane.b32.xlu0 %v4279, 32
    %v5409 = vpop.permute.xlu0 %5408
    %5410 = vrot.lane.b32.xlu0 %v4280, 32
    %v5411 = vpop.permute.xlu0 %5410
    %5412 = vrot.lane.b32.xlu0 %v4281, 32
    %v5413 = vpop.permute.xlu0 %5412
    %v5446 = vsel %vm446, %v5351, 0.0
    %5447 = vadd.xlane.f32.xlu0 %v5446
    %v5448 = vpop.xlane.xlu0 %5447
    %v5449 = vsel %vm446, %v5353, 0.0
    %5450 = vadd.xlane.f32.xlu0 %v5449
    %v5451 = vpop.xlane.xlu0 %5450
    %v5452 = vsel %vm446, %v5355, 0.0
    %5453 = vadd.xlane.f32.xlu0 %v5452
    %v5454 = vpop.xlane.xlu0 %5453
    %v5455 = vsel %vm446, %v5357, 0.0
    %5456 = vadd.xlane.f32.xlu0 %v5455
    %v5457 = vpop.xlane.xlu0 %5456
    %v5458 = vsel %vm446, %v5359, 0.0
    %5459 = vadd.xlane.f32.xlu0 %v5458
    %v5460 = vpop.xlane.xlu0 %5459
    %v5461 = vsel %vm446, %v5361, 0.0
    %5462 = vadd.xlane.f32.xlu0 %v5461
    %v5463 = vpop.xlane.xlu0 %5462
    %v5464 = vsel %vm446, %v5363, 0.0
    %5465 = vadd.xlane.f32.xlu0 %v5464
    %v5466 = vpop.xlane.xlu0 %5465
    %v5467 = vsel %vm446, %v5365, 0.0
    %5468 = vadd.xlane.f32.xlu0 %v5467
    %v5469 = vpop.xlane.xlu0 %5468
    %v5470 = vsel %vm446, %v5367, 0.0
    %5471 = vadd.xlane.f32.xlu0 %v5470
    %v5472 = vpop.xlane.xlu0 %5471
    %v5473 = vsel %vm446, %v5369, 0.0
    %5474 = vadd.xlane.f32.xlu0 %v5473
    %v5475 = vpop.xlane.xlu0 %5474
    %v5476 = vsel %vm446, %v5371, 0.0
    %5477 = vadd.xlane.f32.xlu0 %v5476
    %v5478 = vpop.xlane.xlu0 %5477
    %v5479 = vsel %vm446, %v5373, 0.0
    %5480 = vadd.xlane.f32.xlu0 %v5479
    %v5481 = vpop.xlane.xlu0 %5480
    %v5482 = vsel %vm446, %v5375, 0.0
    %5483 = vadd.xlane.f32.xlu0 %v5482
    %v5484 = vpop.xlane.xlu0 %5483
    %v5485 = vsel %vm446, %v5377, 0.0
    %5486 = vadd.xlane.f32.xlu0 %v5485
    %v5487 = vpop.xlane.xlu0 %5486
    %v5488 = vsel %vm446, %v5379, 0.0
    %5489 = vadd.xlane.f32.xlu0 %v5488
    %v5490 = vpop.xlane.xlu0 %5489
    %v5491 = vsel %vm446, %v5381, 0.0
    %5492 = vadd.xlane.f32.xlu0 %v5491
    %v5493 = vpop.xlane.xlu0 %5492
    %v5494 = vsel %vm446, %v5383, 0.0
    %5495 = vadd.xlane.f32.xlu0 %v5494
    %v5496 = vpop.xlane.xlu0 %5495
    %v5497 = vsel %vm446, %v5385, 0.0
    %5498 = vadd.xlane.f32.xlu0 %v5497
    %v5499 = vpop.xlane.xlu0 %5498
    %v5500 = vsel %vm446, %v5387, 0.0
    %5501 = vadd.xlane.f32.xlu0 %v5500
    %v5502 = vpop.xlane.xlu0 %5501
    %v5503 = vsel %vm446, %v5389, 0.0
    %5504 = vadd.xlane.f32.xlu0 %v5503
    %v5505 = vpop.xlane.xlu0 %5504
    %v5506 = vsel %vm446, %v5391, 0.0
    %5507 = vadd.xlane.f32.xlu0 %v5506
    %v5508 = vpop.xlane.xlu0 %5507
    %v5509 = vsel %vm446, %v5393, 0.0
    %5510 = vadd.xlane.f32.xlu0 %v5509
    %v5511 = vpop.xlane.xlu0 %5510
    %v5512 = vsel %vm446, %v5395, 0.0
    %5513 = vadd.xlane.f32.xlu0 %v5512
    %v5514 = vpop.xlane.xlu0 %5513
    %v5515 = vsel %vm446, %v5397, 0.0
    %5516 = vadd.xlane.f32.xlu0 %v5515
    %v5517 = vpop.xlane.xlu0 %5516
    %v5518 = vsel %vm446, %v5399, 0.0
    %5519 = vadd.xlane.f32.xlu0 %v5518
    %v5520 = vpop.xlane.xlu0 %5519
    %v5521 = vsel %vm446, %v5401, 0.0
    %5522 = vadd.xlane.f32.xlu0 %v5521
    %v5523 = vpop.xlane.xlu0 %5522
    %v5524 = vsel %vm446, %v5403, 0.0
    %5525 = vadd.xlane.f32.xlu0 %v5524
    %v5526 = vpop.xlane.xlu0 %5525
    %v5527 = vsel %vm446, %v5405, 0.0
    %5528 = vadd.xlane.f32.xlu0 %v5527
    %v5529 = vpop.xlane.xlu0 %5528
    %v5530 = vsel %vm446, %v5407, 0.0
    %5531 = vadd.xlane.f32.xlu0 %v5530
    %v5532 = vpop.xlane.xlu0 %5531
    %v5533 = vsel %vm446, %v5409, 0.0
    %5534 = vadd.xlane.f32.xlu0 %v5533
    %v5535 = vpop.xlane.xlu0 %5534
    %v5536 = vsel %vm446, %v5411, 0.0
    %5537 = vadd.xlane.f32.xlu0 %v5536
    %v5538 = vpop.xlane.xlu0 %5537
    %v5539 = vsel %vm446, %v5413, 0.0
    %5540 = vadd.xlane.f32.xlu0 %v5539
    %v5541 = vpop.xlane.xlu0 %5540
    %v5542 = vadd.f32 %v5448, %v551
    %v5543 = vadd.f32 %v5451, %v557
    %v5544 = vadd.f32 %v5454, %v564
    %v5545 = vadd.f32 %v5457, %v570
    %v5546 = vadd.f32 %v5460, %v577
    %v5547 = vadd.f32 %v5463, %v583
    %v5548 = vadd.f32 %v5466, %v590
    %v5549 = vadd.f32 %v5469, %v596
    %v5550 = vadd.f32 %v5472, %v603
    %v5551 = vadd.f32 %v5475, %v609
    %v5552 = vadd.f32 %v5478, %v616
    %v5553 = vadd.f32 %v5481, %v622
    %v5554 = vadd.f32 %v5484, %v629
    %v5555 = vadd.f32 %v5487, %v635
    %v5556 = vadd.f32 %v5490, %v642
    %v5557 = vadd.f32 %v5493, %v648
    %v5558 = vadd.f32 %v5496, %v655
    %v5559 = vadd.f32 %v5499, %v661
    %v5560 = vadd.f32 %v5502, %v668
    %v5561 = vadd.f32 %v5505, %v674
    %v5562 = vadd.f32 %v5508, %v681
    %v5563 = vadd.f32 %v5511, %v687
    %v5564 = vadd.f32 %v5514, %v694
    %v5565 = vadd.f32 %v5517, %v700
    %v5566 = vadd.f32 %v5520, %v707
    %v5567 = vadd.f32 %v5523, %v713
    %v5568 = vadd.f32 %v5526, %v720
    %v5569 = vadd.f32 %v5529, %v726
    %v5570 = vadd.f32 %v5532, %v733
    %v5571 = vadd.f32 %v5535, %v739
    %v5572 = vadd.f32 %v5538, %v746
    %v5573 = vadd.f32 %v5541, %v752
    %5606 = vset.pattern.permute.xlu0 0
    %5607 = vperm.xlu0 %5606, %v5542
    %v5608 = vpop.permute.xlu0 %5607
    %5609 = vset.pattern.permute.xlu0 0
    %5610 = vperm.xlu0 %5609, %v5543
    %v5611 = vpop.permute.xlu0 %5610
    %5612 = vset.pattern.permute.xlu0 0
    %5613 = vperm.xlu0 %5612, %v5544
    %v5614 = vpop.permute.xlu0 %5613
    %5615 = vset.pattern.permute.xlu0 0
    %5616 = vperm.xlu0 %5615, %v5545
    %v5617 = vpop.permute.xlu0 %5616
    %5618 = vset.pattern.permute.xlu0 0
    %5619 = vperm.xlu0 %5618, %v5546
    %v5620 = vpop.permute.xlu0 %5619
    %5621 = vset.pattern.permute.xlu0 0
    %5622 = vperm.xlu0 %5621, %v5547
    %v5623 = vpop.permute.xlu0 %5622
    %5624 = vset.pattern.permute.xlu0 0
    %5625 = vperm.xlu0 %5624, %v5548
    %v5626 = vpop.permute.xlu0 %5625
    %5627 = vset.pattern.permute.xlu0 0
    %5628 = vperm.xlu0 %5627, %v5549
    %v5629 = vpop.permute.xlu0 %5628
    %5630 = vset.pattern.permute.xlu0 0
    %5631 = vperm.xlu0 %5630, %v5550
    %v5632 = vpop.permute.xlu0 %5631
    %5633 = vset.pattern.permute.xlu0 0
    %5634 = vperm.xlu0 %5633, %v5551
    %v5635 = vpop.permute.xlu0 %5634
    %5636 = vset.pattern.permute.xlu0 0
    %5637 = vperm.xlu0 %5636, %v5552
    %v5638 = vpop.permute.xlu0 %5637
    %5639 = vset.pattern.permute.xlu0 0
    %5640 = vperm.xlu0 %5639, %v5553
    %v5641 = vpop.permute.xlu0 %5640
    %5642 = vset.pattern.permute.xlu0 0
    %5643 = vperm.xlu0 %5642, %v5554
    %v5644 = vpop.permute.xlu0 %5643
    %5645 = vset.pattern.permute.xlu0 0
    %5646 = vperm.xlu0 %5645, %v5555
    %v5647 = vpop.permute.xlu0 %5646
    %5648 = vset.pattern.permute.xlu0 0
    %5649 = vperm.xlu0 %5648, %v5556
    %v5650 = vpop.permute.xlu0 %5649
    %5651 = vset.pattern.permute.xlu0 0
    %5652 = vperm.xlu0 %5651, %v5557
    %v5653 = vpop.permute.xlu0 %5652
    %5654 = vset.pattern.permute.xlu0 0
    %5655 = vperm.xlu0 %5654, %v5558
    %v5656 = vpop.permute.xlu0 %5655
    %5657 = vset.pattern.permute.xlu0 0
    %5658 = vperm.xlu0 %5657, %v5559
    %v5659 = vpop.permute.xlu0 %5658
    %5660 = vset.pattern.permute.xlu0 0
    %5661 = vperm.xlu0 %5660, %v5560
    %v5662 = vpop.permute.xlu0 %5661
    %5663 = vset.pattern.permute.xlu0 0
    %5664 = vperm.xlu0 %5663, %v5561
    %v5665 = vpop.permute.xlu0 %5664
    %5666 = vset.pattern.permute.xlu0 0
    %5667 = vperm.xlu0 %5666, %v5562
    %v5668 = vpop.permute.xlu0 %5667
    %5669 = vset.pattern.permute.xlu0 0
    %5670 = vperm.xlu0 %5669, %v5563
    %v5671 = vpop.permute.xlu0 %5670
    %5672 = vset.pattern.permute.xlu0 0
    %5673 = vperm.xlu0 %5672, %v5564
    %v5674 = vpop.permute.xlu0 %5673
    %5675 = vset.pattern.permute.xlu0 0
    %5676 = vperm.xlu0 %5675, %v5565
    %v5677 = vpop.permute.xlu0 %5676
    %5678 = vset.pattern.permute.xlu0 0
    %5679 = vperm.xlu0 %5678, %v5566
    %v5680 = vpop.permute.xlu0 %5679
    %5681 = vset.pattern.permute.xlu0 0
    %5682 = vperm.xlu0 %5681, %v5567
    %v5683 = vpop.permute.xlu0 %5682
    %5684 = vset.pattern.permute.xlu0 0
    %5685 = vperm.xlu0 %5684, %v5568
    %v5686 = vpop.permute.xlu0 %5685
    %5687 = vset.pattern.permute.xlu0 0
    %5688 = vperm.xlu0 %5687, %v5569
    %v5689 = vpop.permute.xlu0 %5688
    %5690 = vset.pattern.permute.xlu0 0
    %5691 = vperm.xlu0 %5690, %v5570
    %v5692 = vpop.permute.xlu0 %5691
    %5693 = vset.pattern.permute.xlu0 0
    %5694 = vperm.xlu0 %5693, %v5571
    %v5695 = vpop.permute.xlu0 %5694
    %5696 = vset.pattern.permute.xlu0 0
    %5697 = vperm.xlu0 %5696, %v5572
    %v5698 = vpop.permute.xlu0 %5697
    %5699 = vset.pattern.permute.xlu0 0
    %5700 = vperm.xlu0 %5699, %v5573
    %v5701 = vpop.permute.xlu0 %5700
    %v5702 = vperm.slane %v5608, %v946
    %v5703 = vperm.slane %v5611, %v948
    %v5704 = vsel %vm950, %v5703, %v5702
    %v5705 = vperm.slane %v5614, %v946
    %v5706 = vperm.slane %v5617, %v948
    %v5707 = vsel %vm950, %v5706, %v5705
    %v5708 = vperm.slane %v5620, %v946
    %v5709 = vperm.slane %v5623, %v948
    %v5710 = vsel %vm950, %v5709, %v5708
    %v5711 = vperm.slane %v5626, %v946
    %v5712 = vperm.slane %v5629, %v948
    %v5713 = vsel %vm950, %v5712, %v5711
    %v5714 = vperm.slane %v5632, %v946
    %v5715 = vperm.slane %v5635, %v948
    %v5716 = vsel %vm950, %v5715, %v5714
    %v5717 = vperm.slane %v5638, %v946
    %v5718 = vperm.slane %v5641, %v948
    %v5719 = vsel %vm950, %v5718, %v5717
    %v5720 = vperm.slane %v5644, %v946
    %v5721 = vperm.slane %v5647, %v948
    %v5722 = vsel %vm950, %v5721, %v5720
    %v5723 = vperm.slane %v5650, %v946
    %v5724 = vperm.slane %v5653, %v948
    %v5725 = vsel %vm950, %v5724, %v5723
    %v5726 = vperm.slane %v5656, %v946
    %v5727 = vperm.slane %v5659, %v948
    %v5728 = vsel %vm950, %v5727, %v5726
    %v5729 = vperm.slane %v5662, %v946
    %v5730 = vperm.slane %v5665, %v948
    %v5731 = vsel %vm950, %v5730, %v5729
    %v5732 = vperm.slane %v5668, %v946
    %v5733 = vperm.slane %v5671, %v948
    %v5734 = vsel %vm950, %v5733, %v5732
    %v5735 = vperm.slane %v5674, %v946
    %v5736 = vperm.slane %v5677, %v948
    %v5737 = vsel %vm950, %v5736, %v5735
    %v5738 = vperm.slane %v5680, %v946
    %v5739 = vperm.slane %v5683, %v948
    %v5740 = vsel %vm950, %v5739, %v5738
    %v5741 = vperm.slane %v5686, %v946
    %v5742 = vperm.slane %v5689, %v948
    %v5743 = vsel %vm950, %v5742, %v5741
    %v5744 = vperm.slane %v5692, %v946
    %v5745 = vperm.slane %v5695, %v948
    %v5746 = vsel %vm950, %v5745, %v5744
    %v5747 = vperm.slane %v5698, %v946
    %v5748 = vperm.slane %v5701, %v948
    %v5749 = vsel %vm950, %v5748, %v5747
    %v5750 = vsel %vm997, %v5707, %v5704
    %v5751 = vsel %vm999, %v5710, %v5750
    %v5752 = vsel %vm1001, %v5713, %v5751
    %v5753 = vsel %vm1003, %v5716, %v5752
    %v5754 = vsel %vm1005, %v5719, %v5753
    %v5755 = vsel %vm1007, %v5722, %v5754
    %v5756 = vsel %vm1009, %v5725, %v5755
    %v5757 = vsel %vm997, %v5731, %v5728
    %v5758 = vsel %vm999, %v5734, %v5757
    %v5759 = vsel %vm1001, %v5737, %v5758
    %v5760 = vsel %vm1003, %v5740, %v5759
    %v5761 = vsel %vm1005, %v5743, %v5760
    %v5762 = vsel %vm1007, %v5746, %v5761
    %v5763 = vsel %vm1009, %v5749, %v5762
    %v5766 = vsel %vm69, %v5756, -inf
    %5767 = vmax.xlane.f32.xlu0 %v5766
    %v5768 = vpop.xlane.xlu0 %5767
    %v5769 = vsel %vm69, %v5763, -inf
    %5770 = vmax.xlane.f32.xlu0 %v5769
    %v5771 = vpop.xlane.xlu0 %5770
    %v5774 = vperm.slane %v5768, 0
    %v5775 = vperm.slane %v5768, 1
    %v5776 = vperm.slane %v5768, 2
    %v5777 = vperm.slane %v5768, 3
    %v5778 = vperm.slane %v5768, 4
    %v5779 = vperm.slane %v5768, 5
    %v5780 = vperm.slane %v5768, 6
    %v5781 = vperm.slane %v5768, 7
    %v5782 = vperm.slane %v5771, 0
    %v5783 = vperm.slane %v5771, 1
    %v5784 = vperm.slane %v5771, 2
    %v5785 = vperm.slane %v5771, 3
    %v5786 = vperm.slane %v5771, 4
    %v5787 = vperm.slane %v5771, 5
    %v5788 = vperm.slane %v5771, 6
    %v5789 = vperm.slane %v5771, 7
    %v5806 = vsub.f32 %v5542, %v5774
    %v5807 = vsub.f32 %v5543, %v5774
    %v5808 = vsub.f32 %v5544, %v5775
    %v5809 = vsub.f32 %v5545, %v5775
    %v5810 = vsub.f32 %v5546, %v5776
    %v5811 = vsub.f32 %v5547, %v5776
    %v5812 = vsub.f32 %v5548, %v5777
    %v5813 = vsub.f32 %v5549, %v5777
    %v5814 = vsub.f32 %v5550, %v5778
    %v5815 = vsub.f32 %v5551, %v5778
    %v5816 = vsub.f32 %v5552, %v5779
    %v5817 = vsub.f32 %v5553, %v5779
    %v5818 = vsub.f32 %v5554, %v5780
    %v5819 = vsub.f32 %v5555, %v5780
    %v5820 = vsub.f32 %v5556, %v5781
    %v5821 = vsub.f32 %v5557, %v5781
    %v5822 = vsub.f32 %v5558, %v5782
    %v5823 = vsub.f32 %v5559, %v5782
    %v5824 = vsub.f32 %v5560, %v5783
    %v5825 = vsub.f32 %v5561, %v5783
    %v5826 = vsub.f32 %v5562, %v5784
    %v5827 = vsub.f32 %v5563, %v5784
    %v5828 = vsub.f32 %v5564, %v5785
    %v5829 = vsub.f32 %v5565, %v5785
    %v5830 = vsub.f32 %v5566, %v5786
    %v5831 = vsub.f32 %v5567, %v5786
    %v5832 = vsub.f32 %v5568, %v5787
    %v5833 = vsub.f32 %v5569, %v5787
    %v5834 = vsub.f32 %v5570, %v5788
    %v5835 = vsub.f32 %v5571, %v5788
    %v5836 = vsub.f32 %v5572, %v5789
    %v5837 = vsub.f32 %v5573, %v5789
    %v5838 = vmul.f32 %v5806, 1.442695
    %v5839 = vpow.pop %v5838
    %v5840 = vmul.f32 %v5807, 1.442695
    %v5841 = vpow.pop %v5840
    %v5842 = vmul.f32 %v5808, 1.442695
    %v5843 = vpow.pop %v5842
    %v5844 = vmul.f32 %v5809, 1.442695
    %v5845 = vpow.pop %v5844
    %v5846 = vmul.f32 %v5810, 1.442695
    %v5847 = vpow.pop %v5846
    %v5848 = vmul.f32 %v5811, 1.442695
    %v5849 = vpow.pop %v5848
    %v5850 = vmul.f32 %v5812, 1.442695
    %v5851 = vpow.pop %v5850
    %v5852 = vmul.f32 %v5813, 1.442695
    %v5853 = vpow.pop %v5852
    %v5854 = vmul.f32 %v5814, 1.442695
    %v5855 = vpow.pop %v5854
    %v5856 = vmul.f32 %v5815, 1.442695
    %v5857 = vpow.pop %v5856
    %v5858 = vmul.f32 %v5816, 1.442695
    %v5859 = vpow.pop %v5858
    %v5860 = vmul.f32 %v5817, 1.442695
    %v5861 = vpow.pop %v5860
    %v5862 = vmul.f32 %v5818, 1.442695
    %v5863 = vpow.pop %v5862
    %v5864 = vmul.f32 %v5819, 1.442695
    %v5865 = vpow.pop %v5864
    %v5866 = vmul.f32 %v5820, 1.442695
    %v5867 = vpow.pop %v5866
    %v5868 = vmul.f32 %v5821, 1.442695
    %v5869 = vpow.pop %v5868
    %v5870 = vmul.f32 %v5822, 1.442695
    %v5871 = vpow.pop %v5870
    %v5872 = vmul.f32 %v5823, 1.442695
    %v5873 = vpow.pop %v5872
    %v5874 = vmul.f32 %v5824, 1.442695
    %v5875 = vpow.pop %v5874
    %v5876 = vmul.f32 %v5825, 1.442695
    %v5877 = vpow.pop %v5876
    %v5878 = vmul.f32 %v5826, 1.442695
    %v5879 = vpow.pop %v5878
    %v5880 = vmul.f32 %v5827, 1.442695
    %v5881 = vpow.pop %v5880
    %v5882 = vmul.f32 %v5828, 1.442695
    %v5883 = vpow.pop %v5882
    %v5884 = vmul.f32 %v5829, 1.442695
    %v5885 = vpow.pop %v5884
    %v5886 = vmul.f32 %v5830, 1.442695
    %v5887 = vpow.pop %v5886
    %v5888 = vmul.f32 %v5831, 1.442695
    %v5889 = vpow.pop %v5888
    %v5890 = vmul.f32 %v5832, 1.442695
    %v5891 = vpow.pop %v5890
    %v5892 = vmul.f32 %v5833, 1.442695
    %v5893 = vpow.pop %v5892
    %v5894 = vmul.f32 %v5834, 1.442695
    %v5895 = vpow.pop %v5894
    %v5896 = vmul.f32 %v5835, 1.442695
    %v5897 = vpow.pop %v5896
    %v5898 = vmul.f32 %v5836, 1.442695
    %v5899 = vpow.pop %v5898
    %v5900 = vmul.f32 %v5837, 1.442695
    %v5901 = vpow.pop %v5900
    %5934 = vset.pattern.permute.xlu0 0
    %5935 = vperm.xlu0 %5934, %v5839
    %v5936 = vpop.permute.xlu0 %5935
    %5937 = vset.pattern.permute.xlu0 0
    %5938 = vperm.xlu0 %5937, %v5841
    %v5939 = vpop.permute.xlu0 %5938
    %5940 = vset.pattern.permute.xlu0 0
    %5941 = vperm.xlu0 %5940, %v5843
    %v5942 = vpop.permute.xlu0 %5941
    %5943 = vset.pattern.permute.xlu0 0
    %5944 = vperm.xlu0 %5943, %v5845
    %v5945 = vpop.permute.xlu0 %5944
    %5946 = vset.pattern.permute.xlu0 0
    %5947 = vperm.xlu0 %5946, %v5847
    %v5948 = vpop.permute.xlu0 %5947
    %5949 = vset.pattern.permute.xlu0 0
    %5950 = vperm.xlu0 %5949, %v5849
    %v5951 = vpop.permute.xlu0 %5950
    %5952 = vset.pattern.permute.xlu0 0
    %5953 = vperm.xlu0 %5952, %v5851
    %v5954 = vpop.permute.xlu0 %5953
    %5955 = vset.pattern.permute.xlu0 0
    %5956 = vperm.xlu0 %5955, %v5853
    %v5957 = vpop.permute.xlu0 %5956
    %5958 = vset.pattern.permute.xlu0 0
    %5959 = vperm.xlu0 %5958, %v5855
    %v5960 = vpop.permute.xlu0 %5959
    %5961 = vset.pattern.permute.xlu0 0
    %5962 = vperm.xlu0 %5961, %v5857
    %v5963 = vpop.permute.xlu0 %5962
    %5964 = vset.pattern.permute.xlu0 0
    %5965 = vperm.xlu0 %5964, %v5859
    %v5966 = vpop.permute.xlu0 %5965
    %5967 = vset.pattern.permute.xlu0 0
    %5968 = vperm.xlu0 %5967, %v5861
    %v5969 = vpop.permute.xlu0 %5968
    %5970 = vset.pattern.permute.xlu0 0
    %5971 = vperm.xlu0 %5970, %v5863
    %v5972 = vpop.permute.xlu0 %5971
    %5973 = vset.pattern.permute.xlu0 0
    %5974 = vperm.xlu0 %5973, %v5865
    %v5975 = vpop.permute.xlu0 %5974
    %5976 = vset.pattern.permute.xlu0 0
    %5977 = vperm.xlu0 %5976, %v5867
    %v5978 = vpop.permute.xlu0 %5977
    %5979 = vset.pattern.permute.xlu0 0
    %5980 = vperm.xlu0 %5979, %v5869
    %v5981 = vpop.permute.xlu0 %5980
    %5982 = vset.pattern.permute.xlu0 0
    %5983 = vperm.xlu0 %5982, %v5871
    %v5984 = vpop.permute.xlu0 %5983
    %5985 = vset.pattern.permute.xlu0 0
    %5986 = vperm.xlu0 %5985, %v5873
    %v5987 = vpop.permute.xlu0 %5986
    %5988 = vset.pattern.permute.xlu0 0
    %5989 = vperm.xlu0 %5988, %v5875
    %v5990 = vpop.permute.xlu0 %5989
    %5991 = vset.pattern.permute.xlu0 0
    %5992 = vperm.xlu0 %5991, %v5877
    %v5993 = vpop.permute.xlu0 %5992
    %5994 = vset.pattern.permute.xlu0 0
    %5995 = vperm.xlu0 %5994, %v5879
    %v5996 = vpop.permute.xlu0 %5995
    %5997 = vset.pattern.permute.xlu0 0
    %5998 = vperm.xlu0 %5997, %v5881
    %v5999 = vpop.permute.xlu0 %5998
    %6000 = vset.pattern.permute.xlu0 0
    %6001 = vperm.xlu0 %6000, %v5883
    %v6002 = vpop.permute.xlu0 %6001
    %6003 = vset.pattern.permute.xlu0 0
    %6004 = vperm.xlu0 %6003, %v5885
    %v6005 = vpop.permute.xlu0 %6004
    %6006 = vset.pattern.permute.xlu0 0
    %6007 = vperm.xlu0 %6006, %v5887
    %v6008 = vpop.permute.xlu0 %6007
    %6009 = vset.pattern.permute.xlu0 0
    %6010 = vperm.xlu0 %6009, %v5889
    %v6011 = vpop.permute.xlu0 %6010
    %6012 = vset.pattern.permute.xlu0 0
    %6013 = vperm.xlu0 %6012, %v5891
    %v6014 = vpop.permute.xlu0 %6013
    %6015 = vset.pattern.permute.xlu0 0
    %6016 = vperm.xlu0 %6015, %v5893
    %v6017 = vpop.permute.xlu0 %6016
    %6018 = vset.pattern.permute.xlu0 0
    %6019 = vperm.xlu0 %6018, %v5895
    %v6020 = vpop.permute.xlu0 %6019
    %6021 = vset.pattern.permute.xlu0 0
    %6022 = vperm.xlu0 %6021, %v5897
    %v6023 = vpop.permute.xlu0 %6022
    %6024 = vset.pattern.permute.xlu0 0
    %6025 = vperm.xlu0 %6024, %v5899
    %v6026 = vpop.permute.xlu0 %6025
    %6027 = vset.pattern.permute.xlu0 0
    %6028 = vperm.xlu0 %6027, %v5901
    %v6029 = vpop.permute.xlu0 %6028
    %v6030 = vperm.slane %v5936, %v946
    %v6031 = vperm.slane %v5939, %v948
    %v6032 = vsel %vm950, %v6031, %v6030
    %v6033 = vperm.slane %v5942, %v946
    %v6034 = vperm.slane %v5945, %v948
    %v6035 = vsel %vm950, %v6034, %v6033
    %v6036 = vperm.slane %v5948, %v946
    %v6037 = vperm.slane %v5951, %v948
    %v6038 = vsel %vm950, %v6037, %v6036
    %v6039 = vperm.slane %v5954, %v946
    %v6040 = vperm.slane %v5957, %v948
    %v6041 = vsel %vm950, %v6040, %v6039
    %v6042 = vperm.slane %v5960, %v946
    %v6043 = vperm.slane %v5963, %v948
    %v6044 = vsel %vm950, %v6043, %v6042
    %v6045 = vperm.slane %v5966, %v946
    %v6046 = vperm.slane %v5969, %v948
    %v6047 = vsel %vm950, %v6046, %v6045
    %v6048 = vperm.slane %v5972, %v946
    %v6049 = vperm.slane %v5975, %v948
    %v6050 = vsel %vm950, %v6049, %v6048
    %v6051 = vperm.slane %v5978, %v946
    %v6052 = vperm.slane %v5981, %v948
    %v6053 = vsel %vm950, %v6052, %v6051
    %v6054 = vperm.slane %v5984, %v946
    %v6055 = vperm.slane %v5987, %v948
    %v6056 = vsel %vm950, %v6055, %v6054
    %v6057 = vperm.slane %v5990, %v946
    %v6058 = vperm.slane %v5993, %v948
    %v6059 = vsel %vm950, %v6058, %v6057
    %v6060 = vperm.slane %v5996, %v946
    %v6061 = vperm.slane %v5999, %v948
    %v6062 = vsel %vm950, %v6061, %v6060
    %v6063 = vperm.slane %v6002, %v946
    %v6064 = vperm.slane %v6005, %v948
    %v6065 = vsel %vm950, %v6064, %v6063
    %v6066 = vperm.slane %v6008, %v946
    %v6067 = vperm.slane %v6011, %v948
    %v6068 = vsel %vm950, %v6067, %v6066
    %v6069 = vperm.slane %v6014, %v946
    %v6070 = vperm.slane %v6017, %v948
    %v6071 = vsel %vm950, %v6070, %v6069
    %v6072 = vperm.slane %v6020, %v946
    %v6073 = vperm.slane %v6023, %v948
    %v6074 = vsel %vm950, %v6073, %v6072
    %v6075 = vperm.slane %v6026, %v946
    %v6076 = vperm.slane %v6029, %v948
    %v6077 = vsel %vm950, %v6076, %v6075
    %v6078 = vsel %vm997, %v6035, %v6032
    %v6079 = vsel %vm999, %v6038, %v6078
    %v6080 = vsel %vm1001, %v6041, %v6079
    %v6081 = vsel %vm1003, %v6044, %v6080
    %v6082 = vsel %vm1005, %v6047, %v6081
    %v6083 = vsel %vm1007, %v6050, %v6082
    %v6084 = vsel %vm1009, %v6053, %v6083
    %v6085 = vsel %vm997, %v6059, %v6056
    %v6086 = vsel %vm999, %v6062, %v6085
    %v6087 = vsel %vm1001, %v6065, %v6086
    %v6088 = vsel %vm1003, %v6068, %v6087
    %v6089 = vsel %vm1005, %v6071, %v6088
    %v6090 = vsel %vm1007, %v6074, %v6089
    %v6091 = vsel %vm1009, %v6077, %v6090
    %v6094 = vsel %vm69, %v6084, 0.0
    %6095 = vadd.xlane.f32.xlu0 %v6094
    %v6096 = vpop.xlane.xlu0 %6095
    %v6097 = vsel %vm69, %v6091, 0.0
    %6098 = vadd.xlane.f32.xlu0 %v6097
    %v6099 = vpop.xlane.xlu0 %6098
    %v6100 = vrcp.pop %v6096
    %v6101 = vrcp.pop %v6099
    %v6104 = vperm.slane %v6100, 0
    %v6105 = vperm.slane %v6100, 1
    %v6106 = vperm.slane %v6100, 2
    %v6107 = vperm.slane %v6100, 3
    %v6108 = vperm.slane %v6100, 4
    %v6109 = vperm.slane %v6100, 5
    %v6110 = vperm.slane %v6100, 6
    %v6111 = vperm.slane %v6100, 7
    %v6112 = vperm.slane %v6101, 0
    %v6113 = vperm.slane %v6101, 1
    %v6114 = vperm.slane %v6101, 2
    %v6115 = vperm.slane %v6101, 3
    %v6116 = vperm.slane %v6101, 4
    %v6117 = vperm.slane %v6101, 5
    %v6118 = vperm.slane %v6101, 6
    %v6119 = vperm.slane %v6101, 7
    %v6136 = vmul.f32 %v5839, %v6104
    %v6137 = vmul.f32 %v5841, %v6104
    %v6138 = vmul.f32 %v5843, %v6105
    %v6139 = vmul.f32 %v5845, %v6105
    %v6140 = vmul.f32 %v5847, %v6106
    %v6141 = vmul.f32 %v5849, %v6106
    %v6142 = vmul.f32 %v5851, %v6107
    %v6143 = vmul.f32 %v5853, %v6107
    %v6144 = vmul.f32 %v5855, %v6108
    %v6145 = vmul.f32 %v5857, %v6108
    %v6146 = vmul.f32 %v5859, %v6109
    %v6147 = vmul.f32 %v5861, %v6109
    %v6148 = vmul.f32 %v5863, %v6110
    %v6149 = vmul.f32 %v5865, %v6110
    %v6150 = vmul.f32 %v5867, %v6111
    %v6151 = vmul.f32 %v5869, %v6111
    %v6152 = vmul.f32 %v5871, %v6112
    %v6153 = vmul.f32 %v5873, %v6112
    %v6154 = vmul.f32 %v5875, %v6113
    %v6155 = vmul.f32 %v5877, %v6113
    %v6156 = vmul.f32 %v5879, %v6114
    %v6157 = vmul.f32 %v5881, %v6114
    %v6158 = vmul.f32 %v5883, %v6115
    %v6159 = vmul.f32 %v5885, %v6115
    %v6160 = vmul.f32 %v5887, %v6116
    %v6161 = vmul.f32 %v5889, %v6116
    %v6162 = vmul.f32 %v5891, %v6117
    %v6163 = vmul.f32 %v5893, %v6117
    %v6164 = vmul.f32 %v5895, %v6118
    %v6165 = vmul.f32 %v5897, %v6118
    %v6166 = vmul.f32 %v5899, %v6119
    %v6167 = vmul.f32 %v5901, %v6119
    %6200 = vset.pattern.permute.xlu0 0
    %6201 = vperm.xlu0 %6200, %v6136
    %v6202 = vpop.permute.xlu0 %6201
    %6203 = vset.pattern.permute.xlu0 0
    %6204 = vperm.xlu0 %6203, %v6137
    %v6205 = vpop.permute.xlu0 %6204
    %6206 = vset.pattern.permute.xlu0 0
    %6207 = vperm.xlu0 %6206, %v6138
    %v6208 = vpop.permute.xlu0 %6207
    %6209 = vset.pattern.permute.xlu0 0
    %6210 = vperm.xlu0 %6209, %v6139
    %v6211 = vpop.permute.xlu0 %6210
    %6212 = vset.pattern.permute.xlu0 0
    %6213 = vperm.xlu0 %6212, %v6140
    %v6214 = vpop.permute.xlu0 %6213
    %6215 = vset.pattern.permute.xlu0 0
    %6216 = vperm.xlu0 %6215, %v6141
    %v6217 = vpop.permute.xlu0 %6216
    %6218 = vset.pattern.permute.xlu0 0
    %6219 = vperm.xlu0 %6218, %v6142
    %v6220 = vpop.permute.xlu0 %6219
    %6221 = vset.pattern.permute.xlu0 0
    %6222 = vperm.xlu0 %6221, %v6143
    %v6223 = vpop.permute.xlu0 %6222
    %6224 = vset.pattern.permute.xlu0 0
    %6225 = vperm.xlu0 %6224, %v6144
    %v6226 = vpop.permute.xlu0 %6225
    %6227 = vset.pattern.permute.xlu0 0
    %6228 = vperm.xlu0 %6227, %v6145
    %v6229 = vpop.permute.xlu0 %6228
    %6230 = vset.pattern.permute.xlu0 0
    %6231 = vperm.xlu0 %6230, %v6146
    %v6232 = vpop.permute.xlu0 %6231
    %6233 = vset.pattern.permute.xlu0 0
    %6234 = vperm.xlu0 %6233, %v6147
    %v6235 = vpop.permute.xlu0 %6234
    %6236 = vset.pattern.permute.xlu0 0
    %6237 = vperm.xlu0 %6236, %v6148
    %v6238 = vpop.permute.xlu0 %6237
    %6239 = vset.pattern.permute.xlu0 0
    %6240 = vperm.xlu0 %6239, %v6149
    %v6241 = vpop.permute.xlu0 %6240
    %6242 = vset.pattern.permute.xlu0 0
    %6243 = vperm.xlu0 %6242, %v6150
    %v6244 = vpop.permute.xlu0 %6243
    %6245 = vset.pattern.permute.xlu0 0
    %6246 = vperm.xlu0 %6245, %v6151
    %v6247 = vpop.permute.xlu0 %6246
    %6248 = vset.pattern.permute.xlu0 0
    %6249 = vperm.xlu0 %6248, %v6152
    %v6250 = vpop.permute.xlu0 %6249
    %6251 = vset.pattern.permute.xlu0 0
    %6252 = vperm.xlu0 %6251, %v6153
    %v6253 = vpop.permute.xlu0 %6252
    %6254 = vset.pattern.permute.xlu0 0
    %6255 = vperm.xlu0 %6254, %v6154
    %v6256 = vpop.permute.xlu0 %6255
    %6257 = vset.pattern.permute.xlu0 0
    %6258 = vperm.xlu0 %6257, %v6155
    %v6259 = vpop.permute.xlu0 %6258
    %6260 = vset.pattern.permute.xlu0 0
    %6261 = vperm.xlu0 %6260, %v6156
    %v6262 = vpop.permute.xlu0 %6261
    %6263 = vset.pattern.permute.xlu0 0
    %6264 = vperm.xlu0 %6263, %v6157
    %v6265 = vpop.permute.xlu0 %6264
    %6266 = vset.pattern.permute.xlu0 0
    %6267 = vperm.xlu0 %6266, %v6158
    %v6268 = vpop.permute.xlu0 %6267
    %6269 = vset.pattern.permute.xlu0 0
    %6270 = vperm.xlu0 %6269, %v6159
    %v6271 = vpop.permute.xlu0 %6270
    %6272 = vset.pattern.permute.xlu0 0
    %6273 = vperm.xlu0 %6272, %v6160
    %v6274 = vpop.permute.xlu0 %6273
    %6275 = vset.pattern.permute.xlu0 0
    %6276 = vperm.xlu0 %6275, %v6161
    %v6277 = vpop.permute.xlu0 %6276
    %6278 = vset.pattern.permute.xlu0 0
    %6279 = vperm.xlu0 %6278, %v6162
    %v6280 = vpop.permute.xlu0 %6279
    %6281 = vset.pattern.permute.xlu0 0
    %6282 = vperm.xlu0 %6281, %v6163
    %v6283 = vpop.permute.xlu0 %6282
    %6284 = vset.pattern.permute.xlu0 0
    %6285 = vperm.xlu0 %6284, %v6164
    %v6286 = vpop.permute.xlu0 %6285
    %6287 = vset.pattern.permute.xlu0 0
    %6288 = vperm.xlu0 %6287, %v6165
    %v6289 = vpop.permute.xlu0 %6288
    %6290 = vset.pattern.permute.xlu0 0
    %6291 = vperm.xlu0 %6290, %v6166
    %v6292 = vpop.permute.xlu0 %6291
    %6293 = vset.pattern.permute.xlu0 0
    %6294 = vperm.xlu0 %6293, %v6167
    %v6295 = vpop.permute.xlu0 %6294
    %v6296 = vperm.slane %v6202, %v946
    %v6297 = vperm.slane %v6205, %v948
    %v6298 = vsel %vm950, %v6297, %v6296
    %v6299 = vperm.slane %v6208, %v946
    %v6300 = vperm.slane %v6211, %v948
    %v6301 = vsel %vm950, %v6300, %v6299
    %v6302 = vperm.slane %v6214, %v946
    %v6303 = vperm.slane %v6217, %v948
    %v6304 = vsel %vm950, %v6303, %v6302
    %v6305 = vperm.slane %v6220, %v946
    %v6306 = vperm.slane %v6223, %v948
    %v6307 = vsel %vm950, %v6306, %v6305
    %v6308 = vperm.slane %v6226, %v946
    %v6309 = vperm.slane %v6229, %v948
    %v6310 = vsel %vm950, %v6309, %v6308
    %v6311 = vperm.slane %v6232, %v946
    %v6312 = vperm.slane %v6235, %v948
    %v6313 = vsel %vm950, %v6312, %v6311
    %v6314 = vperm.slane %v6238, %v946
    %v6315 = vperm.slane %v6241, %v948
    %v6316 = vsel %vm950, %v6315, %v6314
    %v6317 = vperm.slane %v6244, %v946
    %v6318 = vperm.slane %v6247, %v948
    %v6319 = vsel %vm950, %v6318, %v6317
    %v6320 = vperm.slane %v6250, %v946
    %v6321 = vperm.slane %v6253, %v948
    %v6322 = vsel %vm950, %v6321, %v6320
    %v6323 = vperm.slane %v6256, %v946
    %v6324 = vperm.slane %v6259, %v948
    %v6325 = vsel %vm950, %v6324, %v6323
    %v6326 = vperm.slane %v6262, %v946
    %v6327 = vperm.slane %v6265, %v948
    %v6328 = vsel %vm950, %v6327, %v6326
    %v6329 = vperm.slane %v6268, %v946
    %v6330 = vperm.slane %v6271, %v948
    %v6331 = vsel %vm950, %v6330, %v6329
    %v6332 = vperm.slane %v6274, %v946
    %v6333 = vperm.slane %v6277, %v948
    %v6334 = vsel %vm950, %v6333, %v6332
    %v6335 = vperm.slane %v6280, %v946
    %v6336 = vperm.slane %v6283, %v948
    %v6337 = vsel %vm950, %v6336, %v6335
    %v6338 = vperm.slane %v6286, %v946
    %v6339 = vperm.slane %v6289, %v948
    %v6340 = vsel %vm950, %v6339, %v6338
    %v6341 = vperm.slane %v6292, %v946
    %v6342 = vperm.slane %v6295, %v948
    %v6343 = vsel %vm950, %v6342, %v6341
    %v6344 = vsel %vm997, %v6301, %v6298
    %v6345 = vsel %vm999, %v6304, %v6344
    %v6346 = vsel %vm1001, %v6307, %v6345
    %v6347 = vsel %vm1003, %v6310, %v6346
    %v6348 = vsel %vm1005, %v6313, %v6347
    %v6349 = vsel %vm1007, %v6316, %v6348
    %v6350 = vsel %vm1009, %v6319, %v6349
    %v6351 = vsel %vm997, %v6325, %v6322
    %v6352 = vsel %vm999, %v6328, %v6351
    %v6353 = vsel %vm1001, %v6331, %v6352
    %v6354 = vsel %vm1003, %v6334, %v6353
    %v6355 = vsel %vm1005, %v6337, %v6354
    %v6356 = vsel %vm1007, %v6340, %v6355
    %v6357 = vsel %vm1009, %v6343, %v6356
    %6358 = vrot.lane.b32.xlu0 %v4058, 96
    %v6359 = vpop.permute.xlu0 %6358
    %6360 = vrot.lane.b32.xlu0 %v4061, 96
    %v6361 = vpop.permute.xlu0 %6360
    %6365 = vrot.lane.b32.xlu0 %v5132, 96
    %v6366 = vpop.permute.xlu0 %6365
    %v6368 = vsel %vm69, %v6350, 0
    %v6370 = vsel %vm69, %v6357, 0
    %6372 = vmatpush.msra.mxu0 0.0
    %6373 = vmatpush.msra.mxu0 0.0
    %6374 = vmatpush.msra.mxu0 0.0
    %6375 = vmatpush.msra.mxu0 0.0
    %6376 = vmatpush.msra.mxu0 0.0
    %6377 = vmatpush.msra.mxu0 0.0
    %6378 = vmatpush.msra.mxu0 0.0
    %6379 = vmatpush.msra.mxu0 0.0
    %6380 = vmatpush.msra.mxu0 0.0
    %6381 = vmatpush.msra.mxu0 0.0
    %6382 = vmatpush.msra.mxu0 0.0
    %6383 = vmatpush.msra.mxu0 0.0
    %6384 = vmatpush.msra.mxu0 0.0
    %6385 = vmatpush.msra.mxu0 0.0
    %6386 = vmatpush.msra.mxu0 %v6361
    %6387 = vmatpush.msra.mxu0 %v6359
    %6388 = vmatmul.f32.gmra.mxu0 %v6368
    %v6389 = vpop.f32.mrf.mxu0
    %v6390 = vadd.f32 %v6366, %v6389
    %6391 = vmatmul.f32.gmra.mxu0 %v6370
    %v6392 = vpop.f32.mrf.mxu0
    %v6393 = vadd.f32 %v6366, %v6392
    %6394 = vdwg.mxu0
    %6397 = vrot.lane.b32.xlu0 %v6390, 32
    %v6398 = vpop.permute.xlu0 %6397
    %6399 = vrot.lane.b32.xlu0 %v6393, 32
    %v6400 = vpop.permute.xlu0 %6399
    %v6403 = vsel %vm446, %v5345, %v6398
    %v6404 = vsel %vm446, %v5348, %v6400
    %v6405 = vld [vmem:[#allocation6 + $0x88] sm:$0xff]
    %v6406 = vld [vmem:[#allocation6 + $0x90] sm:$0xff]
    %v6407 = vld [vmem:[#allocation6 + $0x98] sm:$0xff]
    %v6408 = vld [vmem:[#allocation6 + $0xa0] sm:$0xff]
    %v6409 = vld [vmem:[#allocation6 + $0xa8] sm:$0xff]
    %v6410 = vld [vmem:[#allocation6 + $0xb0] sm:$0xff]
    %v6411 = vld [vmem:[#allocation6 + $0xb8] sm:$0xff]
    %v6412 = vld [vmem:[#allocation6 + $0xc0] sm:$0xff]
    %v6413 = vld [vmem:[#allocation6 + $0xc8] sm:$0x1]
    %v6414 = vperm.slane %v6413, 0
    %v6416 = vsel %vm2709, %v6403, 0
    %v6419 = vsel %vm2709, %v6404, 0
    %6421 = vmatpush.msra.mxu0 0.0
    %6422 = vmatpush.msra.mxu0 0.0
    %6423 = vmatpush.msra.mxu0 0.0
    %6424 = vmatpush.msra.mxu0 0.0
    %6425 = vmatpush.msra.mxu0 0.0
    %6426 = vmatpush.msra.mxu0 0.0
    %6427 = vmatpush.msra.mxu0 0.0
    %6428 = vmatpush.msra.mxu0 0.0
    %6429 = vmatpush.msra.mxu0 %v6412
    %6430 = vmatpush.msra.mxu0 %v6411
    %6431 = vmatpush.msra.mxu0 %v6410
    %6432 = vmatpush.msra.mxu0 %v6409
    %6433 = vmatpush.msra.mxu0 %v6408
    %6434 = vmatpush.msra.mxu0 %v6407
    %6435 = vmatpush.msra.mxu0 %v6406
    %6436 = vmatpush.msra.mxu0 %v6405
    %6437 = vmatmul.f32.gmra.mxu0 %v6416
    %v6438 = vpop.f32.mrf.mxu0
    %v6439 = vadd.f32 %v6414, %v6438
    %6440 = vmatmul.f32.gmra.mxu0 %v6419
    %v6441 = vpop.f32.mrf.mxu0
    %v6442 = vadd.f32 %v6414, %v6441
    %6443 = vdwg.mxu0
    %6444 = vst [vmem:[%s3] sm:$0xff] %v6439
    %6445 = vst [vmem:[%s3 + $0x8] sm:$0xff] %v6442
    // Predicated region
    $region26: #{simplicial_gcn_forward.1} parent=1 // pred_check
      _
    $region27: #{simplicial_gcn_forward.1} parent=1 // pred_check_branch
      %6447 = sbr.rel (0) target = $region29
    $region28: #{simplicial_gcn_forward.1} parent=1 // pred_region
      _
    $region29: #{simplicial_gcn_forward.1} parent=1 // pred_fallthru
      _
    // Predicated region
    $region30: #{simplicial_gcn_forward.1} parent=1 // pred_check
      _
    $region31: #{simplicial_gcn_forward.1} parent=1 // pred_check_branch
      %6449 = sbr.rel (0) target = $region33
    $region32: #{simplicial_gcn_forward.1} parent=1 // pred_region
      _
    $region33: #{simplicial_gcn_forward.1} parent=1 // pred_fallthru
      _
    %6450 = vsyncpa [#allocation3], 1
    %6451 = vsyncpa [#allocation5], 1

</llo_original>
